<compile_context>
chip_gen: v7x
topology: tpu7x:2x2x1
jax: 0.10.0
libtpu: 0.0.40
codegen_flags: <defaults>
</compile_context>

<pallas_src>
import numpy as np

import jax
import jax.numpy as jnp
from jax.experimental import pallas as pl
from jax.experimental.pallas import tpu as pltpu


# ----------------------------------------------------------------------------
# Static bilinear x2 upsample operators (align_corners=True), numpy, trace-time
# ----------------------------------------------------------------------------
def _upsample_matrix(n_in):
    n_out = 2 * n_in
    u = np.zeros((n_out, n_in), np.float32)
    if n_in == 1:
        u[:, 0] = 1.0
        return u
    pos = np.arange(n_out, dtype=np.float64) * (n_in - 1) / (n_out - 1)
    i0 = np.clip(np.floor(pos).astype(np.int64), 0, n_in - 2)
    frac = (pos - i0).astype(np.float32)
    u[np.arange(n_out), i0] = 1.0 - frac
    u[np.arange(n_out), i0 + 1] = frac
    return u


def _compose_upsample(n, times):
    u = np.eye(n, dtype=np.float32)
    cur = n
    for _ in range(times):
        u = _upsample_matrix(cur) @ u
        cur *= 2
    return u                                            # (n * 2**times, n)


def _uh_stack(h_in, t, k=3, p=1):
    """Row operator with the 3 ky taps stacked on rows: (k*Ho, Hin)."""
    ho = (2 ** t) * h_in
    uhp = np.pad(_compose_upsample(h_in, t), ((p, p), (0, 0)))   # (Ho+2p, Hin)
    return np.concatenate([uhp[ky:ky + ho] for ky in range(k)], axis=0)


def _band_rhs(weight, groups, w_in, t, k=3, p=1):
    """Banded RHS folding column interp + halo + kx taps + concat groups.

    weight: (K, K, Cin, Cout) BN-folded conv weight (HWIO, f32).
    groups: list of (ci, ch_off) channel groups (all share spatial width w_in),
            in the same order the lane-dense input columns are laid out.
    Returns (k * sum(w_in*ci), (2**t*w_in) * Cout) bf16, rows ordered
    ky-major then group-major then (w, ci).
    """
    wo = (2 ** t) * w_in
    uwp = np.pad(_compose_upsample(w_in, t), ((p, p), (0, 0)))    # (Wo+2p, Win)
    sel = jnp.asarray(np.stack([uwp[kx:kx + wo] for kx in range(k)], axis=0))
    cout = int(weight.shape[-1])
    tap_blocks = []
    for ky in range(k):
        per_group = []
        for ci, off in groups:
            wt = weight[ky, :, off:off + ci, :]                   # (k, ci, cout)
            b = jnp.einsum('xwv,xic->viwc', sel, wt)              # (Win, ci, Wo, cout)
            per_group.append(b.reshape(w_in * ci, wo * cout))
        tap_blocks.append(per_group[0] if len(per_group) == 1
                          else jnp.concatenate(per_group, axis=0))
    return jnp.concatenate(tap_blocks, axis=0).astype(jnp.bfloat16)


# ----------------------------------------------------------------------------
# Parameter init (deterministic, synthetic) -- BN folded into conv weight/bias
# ----------------------------------------------------------------------------
def init_basic_conv(key, cin, cout, k=3, eps=1e-5):
    kw, kg, kb, km, kv = jax.random.split(key, 5)
    w = 0.1 * jax.random.normal(kw, (k, k, cin, cout), jnp.float32)   # HWIO
    gamma = 1.0 + 0.1 * jax.random.normal(kg, (cout,), jnp.float32)
    beta = 0.1 * jax.random.normal(kb, (cout,), jnp.float32)
    mean = 0.1 * jax.random.normal(km, (cout,), jnp.float32)
    var = 1.0 + 0.1 * jnp.abs(jax.random.normal(kv, (cout,), jnp.float32))
    scale = gamma / jnp.sqrt(var + eps)
    return w * scale[None, None, None, :], beta - mean * scale


def init_aggregation(key, channel):
    keys = jax.random.split(key, 10)
    return {
        "conv_upsample1": init_basic_conv(keys[0], channel, channel),
        "conv_upsample2": init_basic_conv(keys[1], channel, channel),
        "conv_upsample3": init_basic_conv(keys[2], channel, channel),
        "conv_upsample4": init_basic_conv(keys[3], channel, channel),
        "conv_upsample5": init_basic_conv(keys[4], 2 * channel, 2 * channel),
        "conv_concat2": init_basic_conv(keys[5], 2 * channel, 2 * channel),
        "conv_concat3": init_basic_conv(keys[6], 3 * channel, 3 * channel),
        "conv4": init_basic_conv(keys[7], 3 * channel, 3 * channel),
        # conv5: 1x1 conv with bias (3C -> 1)
        "conv5": (0.1 * jax.random.normal(keys[8], (3 * channel, 1), jnp.float32),
                  0.1 * jax.random.normal(keys[9], (1,), jnp.float32)),
    }


# ----------------------------------------------------------------------------
# One-time weight preprocessing (outside the jitted forward)
# ----------------------------------------------------------------------------
def prepare_aggregation(params, h1, w1, channel):
    C = channel
    w_up1, b_up1 = params["conv_upsample1"]
    w_up2, b_up2 = params["conv_upsample2"]
    w_up3, b_up3 = params["conv_upsample3"]
    w_up4, b_up4 = params["conv_upsample4"]
    w_up5, b_up5 = params["conv_upsample5"]
    w_c2, b_c2 = params["conv_concat2"]
    w_c3, b_c3 = params["conv_concat3"]
    w_c4, b_c4 = params["conv4"]
    w5, b5 = params["conv5"]
    wo2, wo3 = 2 * w1, 4 * w1

    prep = {}
    # Row operators (bf16, taps stacked on M).
    prep["uh41"] = jnp.asarray(_uh_stack(h1, 1), jnp.bfloat16)        # x1, x2 up
    prep["uh42"] = jnp.asarray(_uh_stack(h1, 2), jnp.bfloat16)        # x1, x4 up
    prep["uh81"] = jnp.asarray(_uh_stack(2 * h1, 1), jnp.bfloat16)    # H=2H1, x2 up
    prep["uh80"] = jnp.asarray(_uh_stack(2 * h1, 0), jnp.bfloat16)    # H=2H1, same
    prep["uh160"] = jnp.asarray(_uh_stack(4 * h1, 0), jnp.bfloat16)   # H=4H1, same

    # Banded weights (bf16).  conv_upsample1 & conv_upsample4 merged (hstack).
    prep["bk14"] = jnp.concatenate([_band_rhs(w_up1, [(C, 0)], w1, 1),
                                    _band_rhs(w_up4, [(C, 0)], w1, 1)], axis=1)
    prep["bk2"] = _band_rhs(w_up2, [(C, 0)], w1, 2)
    prep["bk3"] = _band_rhs(w_up3, [(C, 0)], 2 * w1, 1)
    prep["bkc2"] = _band_rhs(w_c2, [(C, 0), (C, C)], 2 * w1, 0)
    prep["bk5"] = _band_rhs(w_up5, [(2 * C, 0)], 2 * w1, 1)
    prep["bkc3"] = _band_rhs(w_c3, [(C, 0), (2 * C, C)], 4 * w1, 0)
    prep["bk4"] = _band_rhs(w_c4, [(3 * C, 0)], 4 * w1, 0)
    # conv5 (1x1, bias) as a block-diagonal (Wo*3C, Wo) matmul.
    w5blk = jnp.eye(wo3, dtype=jnp.float32)[:, None, :] * w5[None, :, 0, None]
    prep["w5b"] = w5blk.reshape(wo3 * 3 * C, wo3).astype(jnp.bfloat16)

    # Wide biases (f32), layout matching each layer's output columns.
    prep["b14"] = jnp.concatenate([jnp.tile(b_up1, wo2), jnp.tile(b_up4, wo2)])
    prep["b2"] = jnp.tile(b_up2, wo3)
    prep["b3"] = jnp.tile(b_up3, wo3)
    prep["bc2"] = jnp.tile(b_c2, wo2)
    prep["b5"] = jnp.tile(b_up5, wo3)
    prep["bc3"] = jnp.tile(b_c3, wo3)
    prep["b4"] = jnp.tile(b_c4, wo3)
    prep["b5c"] = jnp.tile(b5, wo3)
    return prep


# ----------------------------------------------------------------------------
# Fully fused forward: ONE pallas_call for the whole Aggregation module
# ----------------------------------------------------------------------------
@jax.jit
def aggregation_forward(prep, x1, x2, x3):
    n, h1, w1, c = x1.shape
    h2, w2 = 2 * h1, 2 * w1
    h3, w3 = 4 * h1, 4 * w1

    # Lane-dense (H, W*C) views (free reshapes).
    x1f = x1.reshape(n, h1, w1 * c)
    x2f = x2.reshape(n, h2, w2 * c)
    x3f = x3.reshape(n, h3, w3 * c)

    biases = (prep["b14"], prep["b2"], prep["b3"], prep["bc2"],
              prep["b5"], prep["bc3"], prep["b4"], prep["b5c"])
    widths = [int(b.shape[0]) for b in biases]
    offs = [0]
    for wd in widths:
        offs.append(offs[-1] + wd)
    bias_cat = jnp.concatenate(biases)[None, :]           # (1, sum(widths)) f32

    consts = (prep["uh41"], prep["uh42"], prep["uh81"], prep["uh80"], prep["uh160"],
              prep["bk14"], prep["bk2"], prep["bk3"], prep["bkc2"], prep["bk5"],
              prep["bkc3"], prep["bk4"], prep["w5b"], bias_cat)

    def kernel(x1_ref, x2_ref, x3_ref,
               uh41_ref, uh42_ref, uh81_ref, uh80_ref, uh160_ref,
               bk14_ref, bk2_ref, bk3_ref, bkc2_ref, bk5_ref, bkc3_ref, bk4_ref,
               w5_ref, bias_ref, o_ref):
        bf16, f32 = jnp.bfloat16, jnp.float32

        def bias_slab(idx):
            return bias_ref[:, offs[idx]:offs[idx] + widths[idx]]

        def bconv(x_b, uh_ref, bk_ref, bias_idx):
            """upsample + 'same' pad + 3x3 conv + BN, as two bf16 MXU matmuls."""
            uh = uh_ref[...]                               # (3*Ho, Hin) bf16
            ho = uh.shape[0] // 3
            y = jnp.dot(uh, x_b, preferred_element_type=f32)   # row interp + halo
            yb = y.astype(bf16)                            # single cast
            # lane-concat the 3 tap slices -> one wide contraction (96..1152)
            lhs = jnp.concatenate([yb[k * ho:(k + 1) * ho, :] for k in range(3)],
                                  axis=-1)
            out = jnp.dot(lhs, bk_ref[...], preferred_element_type=f32)
            return out + bias_slab(bias_idx)

        x1b = x1_ref[0].astype(bf16)                       # (H1, W1*C)
        x2v = x2_ref[0]                                    # (H2, W2*C) f32
        x3v = x3_ref[0]                                    # (H3, W3*C) f32

        # conv_upsample1 & conv_upsample4 share up(x1): merged 128-lane matmul.
        o14 = bconv(x1b, uh41_ref, bk14_ref, 0)            # [:, :W2*C]=up1, rest=up4
        # cat(x2_1, t2) = o14 * [x2 | 1]   (the "* x2" only hits the up1 half)
        cat2 = (o14 * jnp.concatenate([x2v, jnp.ones_like(x2v)], axis=-1)).astype(bf16)

        # x3_1 = conv_upsample2(up(up(x1))) * conv_upsample3(up(x2)) * x3
        t1 = bconv(x1b, uh42_ref, bk2_ref, 1)              # (H3, W3*C)
        t3a = bconv(x2v.astype(bf16), uh81_ref, bk3_ref, 2)
        x3_1 = t1 * t3a * x3v                              # f32

        # x2_2 = conv_concat2(cat(x2_1, t2))
        x2_2 = bconv(cat2, uh80_ref, bkc2_ref, 3)          # (H2, W2*2C)

        # t3 = conv_upsample5(up(x2_2))
        t3 = bconv(x2_2.astype(bf16), uh81_ref, bk5_ref, 4)    # (H3, W3*2C)

        # x3_2 = conv_concat3(cat(x3_1, t3))
        cat3 = jnp.concatenate([x3_1, t3], axis=-1).astype(bf16)   # (H3, W3*3C)
        x3_2 = bconv(cat3, uh160_ref, bkc3_ref, 5)         # (H3, W3*3C)

        # x4 = conv4(x3_2)  (kept at Cout=3C -> 384-lane matmul)
        x4 = bconv(x3_2.astype(bf16), uh160_ref, bk4_ref, 6)

        # conv5: 1x1 conv with bias as a tiny block-diagonal matmul.
        out = jnp.dot(x4.astype(bf16), w5_ref[...],
                      preferred_element_type=f32) + bias_slab(7)   # (H3, W3)
        o_ref[0] = out

    in_specs = [
        pl.BlockSpec((1, h1, w1 * c), lambda i: (i, 0, 0)),
        pl.BlockSpec((1, h2, w2 * c), lambda i: (i, 0, 0)),
        pl.BlockSpec((1, h3, w3 * c), lambda i: (i, 0, 0)),
    ] + [pl.BlockSpec(a.shape, lambda i: (0, 0)) for a in consts]

    # Advisory cost estimate.
    flops = 0
    for uh, bk in ((consts[0], consts[5]), (consts[1], consts[6]),
                   (consts[2], consts[7]), (consts[3], consts[8]),
                   (consts[2], consts[9]), (consts[4], consts[10]),
                   (consts[4], consts[11])):
        kho, hin = uh.shape
        rows, cols = bk.shape
        flops += 2 * kho * hin * (rows // 3) + 2 * (kho // 3) * rows * cols
    flops += 2 * h3 * consts[12].shape[0] * consts[12].shape[1]
    flops *= n
    bytes_accessed = sum(int(np.prod(a.shape)) * a.dtype.itemsize
                         for a in (x1f, x2f, x3f) + consts) + n * h3 * w3 * 4

    out = pl.pallas_call(
        kernel,
        out_shape=jax.ShapeDtypeStruct((n, h3, w3), jnp.float32),
        grid=(n,),
        in_specs=in_specs,
        out_specs=pl.BlockSpec((1, h3, w3), lambda i: (i, 0, 0)),
        compiler_params=pltpu.CompilerParams(
            dimension_semantics=("parallel",)),
        cost_estimate=pl.CostEstimate(flops=int(flops), transcendentals=0,
                                      bytes_accessed=int(bytes_accessed)),
    )(x1f, x2f, x3f, *consts)
    return out.reshape(n, h3, w3, 1)


if __name__ == "__main__":
    key = jax.random.PRNGKey(0)
    k_params, k1, k2, k3 = jax.random.split(key, 4)

    N, C, H1, W1 = 2, 8, 4, 4
    params = init_aggregation(k_params, C)
    prep = prepare_aggregation(params, H1, W1, C)

    x1 = jax.random.normal(k1, (N, H1, W1, C), jnp.float32)
    x2 = jax.random.normal(k2, (N, 2 * H1, 2 * W1, C), jnp.float32)
    x3 = jax.random.normal(k3, (N, 4 * H1, 4 * W1, C), jnp.float32)

    out = aggregation_forward(prep, x1, x2, x3)
    out = jax.block_until_ready(out)
    assert out.shape == (N, 4 * H1, 4 * W1, 1), out.shape
    assert bool(jnp.all(jnp.isfinite(out)))
    print("KERNEL_OK")
</pallas_src>

<mosaic_0001>
module attributes {stable_mosaic.version = 11 : i64} {
  func.func @kernel(%arg0: i32, %arg1: memref<1x4x32xf32, #tpu.memory_space<vmem>>, %arg2: memref<1x8x64xf32, #tpu.memory_space<vmem>>, %arg3: memref<1x16x128xf32, #tpu.memory_space<vmem>>, %arg4: memref<24x4xbf16, #tpu.memory_space<vmem>>, %arg5: memref<48x4xbf16, #tpu.memory_space<vmem>>, %arg6: memref<48x8xbf16, #tpu.memory_space<vmem>>, %arg7: memref<24x8xbf16, #tpu.memory_space<vmem>>, %arg8: memref<48x16xbf16, #tpu.memory_space<vmem>>, %arg9: memref<96x128xbf16, #tpu.memory_space<vmem>>, %arg10: memref<96x128xbf16, #tpu.memory_space<vmem>>, %arg11: memref<192x128xbf16, #tpu.memory_space<vmem>>, %arg12: memref<384x128xbf16, #tpu.memory_space<vmem>>, %arg13: memref<384x256xbf16, #tpu.memory_space<vmem>>, %arg14: memref<1152x384xbf16, #tpu.memory_space<vmem>>, %arg15: memref<1152x384xbf16, #tpu.memory_space<vmem>>, %arg16: memref<384x16xbf16, #tpu.memory_space<vmem>>, %arg17: memref<1x1552xf32, #tpu.memory_space<vmem>>, %arg18: memref<1x16x16xf32, #tpu.memory_space<vmem>>) attributes {dimension_semantics = [#tpu.dimension_semantics<parallel>], iteration_bounds = array<i64: 2>, scalar_prefetch = 0 : i64, scratch_operands = 0 : i64, tpu.core_type = #tpu.core_type<tc>, window_params = [{transform_indices = @transform_0, window_bounds = array<i64: 1, 4, 32>}, {transform_indices = @transform_1, window_bounds = array<i64: 1, 8, 64>}, {transform_indices = @transform_2, window_bounds = array<i64: 1, 16, 128>}, {pipeline_mode = #tpu.pipeline_mode<synchronous>, transform_indices = @transform_3, window_bounds = array<i64: 24, 4>}, {pipeline_mode = #tpu.pipeline_mode<synchronous>, transform_indices = @transform_4, window_bounds = array<i64: 48, 4>}, {pipeline_mode = #tpu.pipeline_mode<synchronous>, transform_indices = @transform_5, window_bounds = array<i64: 48, 8>}, {pipeline_mode = #tpu.pipeline_mode<synchronous>, transform_indices = @transform_6, window_bounds = array<i64: 24, 8>}, {pipeline_mode = #tpu.pipeline_mode<synchronous>, transform_indices = @transform_7, window_bounds = array<i64: 48, 16>}, {pipeline_mode = #tpu.pipeline_mode<synchronous>, transform_indices = @transform_8, window_bounds = array<i64: 96, 128>}, {pipeline_mode = #tpu.pipeline_mode<synchronous>, transform_indices = @transform_9, window_bounds = array<i64: 96, 128>}, {pipeline_mode = #tpu.pipeline_mode<synchronous>, transform_indices = @transform_10, window_bounds = array<i64: 192, 128>}, {pipeline_mode = #tpu.pipeline_mode<synchronous>, transform_indices = @transform_11, window_bounds = array<i64: 384, 128>}, {pipeline_mode = #tpu.pipeline_mode<synchronous>, transform_indices = @transform_12, window_bounds = array<i64: 384, 256>}, {pipeline_mode = #tpu.pipeline_mode<synchronous>, transform_indices = @transform_13, window_bounds = array<i64: 1152, 384>}, {pipeline_mode = #tpu.pipeline_mode<synchronous>, transform_indices = @transform_14, window_bounds = array<i64: 1152, 384>}, {pipeline_mode = #tpu.pipeline_mode<synchronous>, transform_indices = @transform_15, window_bounds = array<i64: 384, 16>}, {pipeline_mode = #tpu.pipeline_mode<synchronous>, transform_indices = @transform_16, window_bounds = array<i64: 1, 1552>}, {transform_indices = @transform_17, window_bounds = array<i64: 1, 16, 16>}]} {
    %c0 = arith.constant 0 : index
    %c0_0 = arith.constant 0 : index
    %c0_1 = arith.constant 0 : index
    %0 = vector.load %arg1[%c0, %c0_0, %c0_1] : memref<1x4x32xf32, #tpu.memory_space<vmem>>, vector<1x4x32xf32>
    %1 = vector.shape_cast %0 : vector<1x4x32xf32> to vector<4x32xf32>
    %2 = arith.truncf %1 : vector<4x32xf32> to vector<4x32xbf16>
    %c0_2 = arith.constant 0 : index
    %c0_3 = arith.constant 0 : index
    %c0_4 = arith.constant 0 : index
    %3 = vector.load %arg2[%c0_2, %c0_3, %c0_4] : memref<1x8x64xf32, #tpu.memory_space<vmem>>, vector<1x8x64xf32>
    %4 = vector.shape_cast %3 : vector<1x8x64xf32> to vector<8x64xf32>
    %c0_5 = arith.constant 0 : index
    %c0_6 = arith.constant 0 : index
    %c0_7 = arith.constant 0 : index
    %5 = vector.load %arg3[%c0_5, %c0_6, %c0_7] : memref<1x16x128xf32, #tpu.memory_space<vmem>>, vector<1x16x128xf32>
    %6 = vector.shape_cast %5 : vector<1x16x128xf32> to vector<16x128xf32>
    %c0_8 = arith.constant 0 : index
    %c0_9 = arith.constant 0 : index
    %7 = vector.load %arg4[%c0_8, %c0_9] : memref<24x4xbf16, #tpu.memory_space<vmem>>, vector<24x4xbf16>
    %cst = arith.constant dense<0.000000e+00> : vector<24x32xf32>
    %8 = tpu.matmul %7, %2, %cst {dimension_numbers = #tpu.dot_dimension_numbers<[1], [0], [0], [1], [0, 0, 1, 1], [], []>} : vector<24x4xbf16>, vector<4x32xbf16>, vector<24x32xf32> -> vector<24x32xf32>
    %9 = arith.truncf %8 : vector<24x32xf32> to vector<24x32xbf16>
    %10 = vector.extract_strided_slice %9 {offsets = [0, 0], sizes = [8, 32], strides = [1, 1]} : vector<24x32xbf16> to vector<8x32xbf16>
    %11 = vector.extract_strided_slice %9 {offsets = [8, 0], sizes = [8, 32], strides = [1, 1]} : vector<24x32xbf16> to vector<8x32xbf16>
    %12 = vector.extract_strided_slice %9 {offsets = [16, 0], sizes = [8, 32], strides = [1, 1]} : vector<24x32xbf16> to vector<8x32xbf16>
    %13 = tpu.concatenate %10, %11, %12 in 1 : vector<8x32xbf16>, vector<8x32xbf16>, vector<8x32xbf16> -> vector<8x96xbf16>
    %c0_10 = arith.constant 0 : index
    %c0_11 = arith.constant 0 : index
    %14 = vector.load %arg9[%c0_10, %c0_11] : memref<96x128xbf16, #tpu.memory_space<vmem>>, vector<96x128xbf16>
    %cst_12 = arith.constant dense<0.000000e+00> : vector<8x128xf32>
    %15 = tpu.matmul %13, %14, %cst_12 {dimension_numbers = #tpu.dot_dimension_numbers<[1], [0], [0], [1], [0, 0, 1, 1], [], []>} : vector<8x96xbf16>, vector<96x128xbf16>, vector<8x128xf32> -> vector<8x128xf32>
    %c0_13 = arith.constant 0 : index
    %c0_14 = arith.constant 0 : index
    %16 = vector.load %arg17[%c0_13, %c0_14] : memref<1x1552xf32, #tpu.memory_space<vmem>>, vector<1x128xf32>
    %17 = vector.broadcast %16 : vector<1x128xf32> to vector<8x128xf32>
    %18 = arith.addf %15, %17 : vector<8x128xf32>
    %cst_15 = arith.constant 1.000000e+00 : f32
    %19 = vector.broadcast %cst_15 : f32 to vector<8x64xf32>
    %20 = tpu.concatenate %4, %19 in 1 : vector<8x64xf32>, vector<8x64xf32> -> vector<8x128xf32>
    %21 = arith.mulf %18, %20 : vector<8x128xf32>
    %22 = arith.truncf %21 : vector<8x128xf32> to vector<8x128xbf16>
    %c0_16 = arith.constant 0 : index
    %c0_17 = arith.constant 0 : index
    %23 = vector.load %arg5[%c0_16, %c0_17] : memref<48x4xbf16, #tpu.memory_space<vmem>>, vector<48x4xbf16>
    %cst_18 = arith.constant dense<0.000000e+00> : vector<48x32xf32>
    %24 = tpu.matmul %23, %2, %cst_18 {dimension_numbers = #tpu.dot_dimension_numbers<[1], [0], [0], [1], [0, 0, 1, 1], [], []>} : vector<48x4xbf16>, vector<4x32xbf16>, vector<48x32xf32> -> vector<48x32xf32>
    %25 = arith.truncf %24 : vector<48x32xf32> to vector<48x32xbf16>
    %26 = vector.extract_strided_slice %25 {offsets = [0, 0], sizes = [16, 32], strides = [1, 1]} : vector<48x32xbf16> to vector<16x32xbf16>
    %27 = vector.extract_strided_slice %25 {offsets = [16, 0], sizes = [16, 32], strides = [1, 1]} : vector<48x32xbf16> to vector<16x32xbf16>
    %28 = vector.extract_strided_slice %25 {offsets = [32, 0], sizes = [16, 32], strides = [1, 1]} : vector<48x32xbf16> to vector<16x32xbf16>
    %29 = tpu.concatenate %26, %27, %28 in 1 : vector<16x32xbf16>, vector<16x32xbf16>, vector<16x32xbf16> -> vector<16x96xbf16>
    %c0_19 = arith.constant 0 : index
    %c0_20 = arith.constant 0 : index
    %30 = vector.load %arg10[%c0_19, %c0_20] : memref<96x128xbf16, #tpu.memory_space<vmem>>, vector<96x128xbf16>
    %cst_21 = arith.constant dense<0.000000e+00> : vector<16x128xf32>
    %31 = tpu.matmul %29, %30, %cst_21 {dimension_numbers = #tpu.dot_dimension_numbers<[1], [0], [0], [1], [0, 0, 1, 1], [], []>} : vector<16x96xbf16>, vector<96x128xbf16>, vector<16x128xf32> -> vector<16x128xf32>
    %c0_22 = arith.constant 0 : index
    %c128 = arith.constant 128 : index
    %32 = vector.load %arg17[%c0_22, %c128] : memref<1x1552xf32, #tpu.memory_space<vmem>>, vector<1x128xf32>
    %33 = vector.broadcast %32 : vector<1x128xf32> to vector<16x128xf32>
    %34 = arith.addf %31, %33 : vector<16x128xf32>
    %35 = arith.truncf %4 : vector<8x64xf32> to vector<8x64xbf16>
    %c0_23 = arith.constant 0 : index
    %c0_24 = arith.constant 0 : index
    %36 = vector.load %arg6[%c0_23, %c0_24] : memref<48x8xbf16, #tpu.memory_space<vmem>>, vector<48x8xbf16>
    %cst_25 = arith.constant dense<0.000000e+00> : vector<48x64xf32>
    %37 = tpu.matmul %36, %35, %cst_25 {dimension_numbers = #tpu.dot_dimension_numbers<[1], [0], [0], [1], [0, 0, 1, 1], [], []>} : vector<48x8xbf16>, vector<8x64xbf16>, vector<48x64xf32> -> vector<48x64xf32>
    %38 = arith.truncf %37 : vector<48x64xf32> to vector<48x64xbf16>
    %39 = vector.extract_strided_slice %38 {offsets = [0, 0], sizes = [16, 64], strides = [1, 1]} : vector<48x64xbf16> to vector<16x64xbf16>
    %40 = vector.extract_strided_slice %38 {offsets = [16, 0], sizes = [16, 64], strides = [1, 1]} : vector<48x64xbf16> to vector<16x64xbf16>
    %41 = vector.extract_strided_slice %38 {offsets = [32, 0], sizes = [16, 64], strides = [1, 1]} : vector<48x64xbf16> to vector<16x64xbf16>
    %42 = tpu.concatenate %39, %40, %41 in 1 : vector<16x64xbf16>, vector<16x64xbf16>, vector<16x64xbf16> -> vector<16x192xbf16>
    %c0_26 = arith.constant 0 : index
    %c0_27 = arith.constant 0 : index
    %43 = vector.load %arg11[%c0_26, %c0_27] : memref<192x128xbf16, #tpu.memory_space<vmem>>, vector<192x128xbf16>
    %cst_28 = arith.constant dense<0.000000e+00> : vector<16x128xf32>
    %44 = tpu.matmul %42, %43, %cst_28 {dimension_numbers = #tpu.dot_dimension_numbers<[1], [0], [0], [1], [0, 0, 1, 1], [], []>} : vector<16x192xbf16>, vector<192x128xbf16>, vector<16x128xf32> -> vector<16x128xf32>
    %c0_29 = arith.constant 0 : index
    %c256 = arith.constant 256 : index
    %45 = vector.load %arg17[%c0_29, %c256] : memref<1x1552xf32, #tpu.memory_space<vmem>>, vector<1x128xf32>
    %46 = vector.broadcast %45 : vector<1x128xf32> to vector<16x128xf32>
    %47 = arith.addf %44, %46 : vector<16x128xf32>
    %48 = arith.mulf %34, %47 : vector<16x128xf32>
    %49 = arith.mulf %48, %6 : vector<16x128xf32>
    %c0_30 = arith.constant 0 : index
    %c0_31 = arith.constant 0 : index
    %50 = vector.load %arg7[%c0_30, %c0_31] : memref<24x8xbf16, #tpu.memory_space<vmem>>, vector<24x8xbf16>
    %cst_32 = arith.constant dense<0.000000e+00> : vector<24x128xf32>
    %51 = tpu.matmul %50, %22, %cst_32 {dimension_numbers = #tpu.dot_dimension_numbers<[1], [0], [0], [1], [0, 0, 1, 1], [], []>} : vector<24x8xbf16>, vector<8x128xbf16>, vector<24x128xf32> -> vector<24x128xf32>
    %52 = arith.truncf %51 : vector<24x128xf32> to vector<24x128xbf16>
    %53 = vector.extract_strided_slice %52 {offsets = [0, 0], sizes = [8, 128], strides = [1, 1]} : vector<24x128xbf16> to vector<8x128xbf16>
    %54 = vector.extract_strided_slice %52 {offsets = [8, 0], sizes = [8, 128], strides = [1, 1]} : vector<24x128xbf16> to vector<8x128xbf16>
    %55 = vector.extract_strided_slice %52 {offsets = [16, 0], sizes = [8, 128], strides = [1, 1]} : vector<24x128xbf16> to vector<8x128xbf16>
    %56 = tpu.concatenate %53, %54, %55 in 1 : vector<8x128xbf16>, vector<8x128xbf16>, vector<8x128xbf16> -> vector<8x384xbf16>
    %c0_33 = arith.constant 0 : index
    %c0_34 = arith.constant 0 : index
    %57 = vector.load %arg12[%c0_33, %c0_34] : memref<384x128xbf16, #tpu.memory_space<vmem>>, vector<384x128xbf16>
    %cst_35 = arith.constant dense<0.000000e+00> : vector<8x128xf32>
    %58 = tpu.matmul %56, %57, %cst_35 {dimension_numbers = #tpu.dot_dimension_numbers<[1], [0], [0], [1], [0, 0, 1, 1], [], []>} : vector<8x384xbf16>, vector<384x128xbf16>, vector<8x128xf32> -> vector<8x128xf32>
    %c0_36 = arith.constant 0 : index
    %c384 = arith.constant 384 : index
    %59 = vector.load %arg17[%c0_36, %c384] : memref<1x1552xf32, #tpu.memory_space<vmem>>, vector<1x128xf32>
    %60 = vector.broadcast %59 : vector<1x128xf32> to vector<8x128xf32>
    %61 = arith.addf %58, %60 : vector<8x128xf32>
    %62 = arith.truncf %61 : vector<8x128xf32> to vector<8x128xbf16>
    %c0_37 = arith.constant 0 : index
    %c0_38 = arith.constant 0 : index
    %63 = vector.load %arg6[%c0_37, %c0_38] : memref<48x8xbf16, #tpu.memory_space<vmem>>, vector<48x8xbf16>
    %cst_39 = arith.constant dense<0.000000e+00> : vector<48x128xf32>
    %64 = tpu.matmul %63, %62, %cst_39 {dimension_numbers = #tpu.dot_dimension_numbers<[1], [0], [0], [1], [0, 0, 1, 1], [], []>} : vector<48x8xbf16>, vector<8x128xbf16>, vector<48x128xf32> -> vector<48x128xf32>
    %65 = arith.truncf %64 : vector<48x128xf32> to vector<48x128xbf16>
    %66 = vector.extract_strided_slice %65 {offsets = [0, 0], sizes = [16, 128], strides = [1, 1]} : vector<48x128xbf16> to vector<16x128xbf16>
    %67 = vector.extract_strided_slice %65 {offsets = [16, 0], sizes = [16, 128], strides = [1, 1]} : vector<48x128xbf16> to vector<16x128xbf16>
    %68 = vector.extract_strided_slice %65 {offsets = [32, 0], sizes = [16, 128], strides = [1, 1]} : vector<48x128xbf16> to vector<16x128xbf16>
    %69 = tpu.concatenate %66, %67, %68 in 1 : vector<16x128xbf16>, vector<16x128xbf16>, vector<16x128xbf16> -> vector<16x384xbf16>
    %c0_40 = arith.constant 0 : index
    %c0_41 = arith.constant 0 : index
    %70 = vector.load %arg13[%c0_40, %c0_41] : memref<384x256xbf16, #tpu.memory_space<vmem>>, vector<384x256xbf16>
    %cst_42 = arith.constant dense<0.000000e+00> : vector<16x256xf32>
    %71 = tpu.matmul %69, %70, %cst_42 {dimension_numbers = #tpu.dot_dimension_numbers<[1], [0], [0], [1], [0, 0, 1, 1], [], []>} : vector<16x384xbf16>, vector<384x256xbf16>, vector<16x256xf32> -> vector<16x256xf32>
    %c0_43 = arith.constant 0 : index
    %c512 = arith.constant 512 : index
    %72 = vector.load %arg17[%c0_43, %c512] : memref<1x1552xf32, #tpu.memory_space<vmem>>, vector<1x256xf32>
    %73 = vector.broadcast %72 : vector<1x256xf32> to vector<16x256xf32>
    %74 = arith.addf %71, %73 : vector<16x256xf32>
    %75 = tpu.concatenate %49, %74 in 1 : vector<16x128xf32>, vector<16x256xf32> -> vector<16x384xf32>
    %76 = arith.truncf %75 : vector<16x384xf32> to vector<16x384xbf16>
    %c0_44 = arith.constant 0 : index
    %c0_45 = arith.constant 0 : index
    %77 = vector.load %arg8[%c0_44, %c0_45] : memref<48x16xbf16, #tpu.memory_space<vmem>>, vector<48x16xbf16>
    %cst_46 = arith.constant dense<0.000000e+00> : vector<48x384xf32>
    %78 = tpu.matmul %77, %76, %cst_46 {dimension_numbers = #tpu.dot_dimension_numbers<[1], [0], [0], [1], [0, 0, 1, 1], [], []>} : vector<48x16xbf16>, vector<16x384xbf16>, vector<48x384xf32> -> vector<48x384xf32>
    %79 = arith.truncf %78 : vector<48x384xf32> to vector<48x384xbf16>
    %80 = vector.extract_strided_slice %79 {offsets = [0, 0], sizes = [16, 384], strides = [1, 1]} : vector<48x384xbf16> to vector<16x384xbf16>
    %81 = vector.extract_strided_slice %79 {offsets = [16, 0], sizes = [16, 384], strides = [1, 1]} : vector<48x384xbf16> to vector<16x384xbf16>
    %82 = vector.extract_strided_slice %79 {offsets = [32, 0], sizes = [16, 384], strides = [1, 1]} : vector<48x384xbf16> to vector<16x384xbf16>
    %83 = tpu.concatenate %80, %81, %82 in 1 : vector<16x384xbf16>, vector<16x384xbf16>, vector<16x384xbf16> -> vector<16x1152xbf16>
    %c0_47 = arith.constant 0 : index
    %c0_48 = arith.constant 0 : index
    %84 = vector.load %arg14[%c0_47, %c0_48] : memref<1152x384xbf16, #tpu.memory_space<vmem>>, vector<1152x384xbf16>
    %cst_49 = arith.constant dense<0.000000e+00> : vector<16x384xf32>
    %85 = tpu.matmul %83, %84, %cst_49 {dimension_numbers = #tpu.dot_dimension_numbers<[1], [0], [0], [1], [0, 0, 1, 1], [], []>} : vector<16x1152xbf16>, vector<1152x384xbf16>, vector<16x384xf32> -> vector<16x384xf32>
    %c0_50 = arith.constant 0 : index
    %c768 = arith.constant 768 : index
    %86 = vector.load %arg17[%c0_50, %c768] : memref<1x1552xf32, #tpu.memory_space<vmem>>, vector<1x384xf32>
    %87 = vector.broadcast %86 : vector<1x384xf32> to vector<16x384xf32>
    %88 = arith.addf %85, %87 : vector<16x384xf32>
    %89 = arith.truncf %88 : vector<16x384xf32> to vector<16x384xbf16>
    %c0_51 = arith.constant 0 : index
    %c0_52 = arith.constant 0 : index
    %90 = vector.load %arg8[%c0_51, %c0_52] : memref<48x16xbf16, #tpu.memory_space<vmem>>, vector<48x16xbf16>
    %cst_53 = arith.constant dense<0.000000e+00> : vector<48x384xf32>
    %91 = tpu.matmul %90, %89, %cst_53 {dimension_numbers = #tpu.dot_dimension_numbers<[1], [0], [0], [1], [0, 0, 1, 1], [], []>} : vector<48x16xbf16>, vector<16x384xbf16>, vector<48x384xf32> -> vector<48x384xf32>
    %92 = arith.truncf %91 : vector<48x384xf32> to vector<48x384xbf16>
    %93 = vector.extract_strided_slice %92 {offsets = [0, 0], sizes = [16, 384], strides = [1, 1]} : vector<48x384xbf16> to vector<16x384xbf16>
    %94 = vector.extract_strided_slice %92 {offsets = [16, 0], sizes = [16, 384], strides = [1, 1]} : vector<48x384xbf16> to vector<16x384xbf16>
    %95 = vector.extract_strided_slice %92 {offsets = [32, 0], sizes = [16, 384], strides = [1, 1]} : vector<48x384xbf16> to vector<16x384xbf16>
    %96 = tpu.concatenate %93, %94, %95 in 1 : vector<16x384xbf16>, vector<16x384xbf16>, vector<16x384xbf16> -> vector<16x1152xbf16>
    %c0_54 = arith.constant 0 : index
    %c0_55 = arith.constant 0 : index
    %97 = vector.load %arg15[%c0_54, %c0_55] : memref<1152x384xbf16, #tpu.memory_space<vmem>>, vector<1152x384xbf16>
    %cst_56 = arith.constant dense<0.000000e+00> : vector<16x384xf32>
    %98 = tpu.matmul %96, %97, %cst_56 {dimension_numbers = #tpu.dot_dimension_numbers<[1], [0], [0], [1], [0, 0, 1, 1], [], []>} : vector<16x1152xbf16>, vector<1152x384xbf16>, vector<16x384xf32> -> vector<16x384xf32>
    %c0_57 = arith.constant 0 : index
    %c1152 = arith.constant 1152 : index
    %99 = vector.load %arg17[%c0_57, %c1152] : memref<1x1552xf32, #tpu.memory_space<vmem>>, vector<1x384xf32>
    %100 = vector.broadcast %99 : vector<1x384xf32> to vector<16x384xf32>
    %101 = arith.addf %98, %100 : vector<16x384xf32>
    %102 = arith.truncf %101 : vector<16x384xf32> to vector<16x384xbf16>
    %c0_58 = arith.constant 0 : index
    %c0_59 = arith.constant 0 : index
    %103 = vector.load %arg16[%c0_58, %c0_59] : memref<384x16xbf16, #tpu.memory_space<vmem>>, vector<384x16xbf16>
    %cst_60 = arith.constant dense<0.000000e+00> : vector<16x16xf32>
    %104 = tpu.matmul %102, %103, %cst_60 {dimension_numbers = #tpu.dot_dimension_numbers<[1], [0], [0], [1], [0, 0, 1, 1], [], []>} : vector<16x384xbf16>, vector<384x16xbf16>, vector<16x16xf32> -> vector<16x16xf32>
    %c0_61 = arith.constant 0 : index
    %c1536 = arith.constant 1536 : index
    %105 = vector.load %arg17[%c0_61, %c1536] : memref<1x1552xf32, #tpu.memory_space<vmem>>, vector<1x16xf32>
    %106 = vector.broadcast %105 : vector<1x16xf32> to vector<16x16xf32>
    %107 = arith.addf %104, %106 : vector<16x16xf32>
    %c0_62 = arith.constant 0 : index
    %c0_63 = arith.constant 0 : index
    %c0_64 = arith.constant 0 : index
    %108 = vector.load %arg18[%c0_62, %c0_63, %c0_64] : memref<1x16x16xf32, #tpu.memory_space<vmem>>, vector<1x16x16xf32>
    %109 = vector.shape_cast %108 : vector<1x16x16xf32> to vector<16x16xf32>
    %110 = vector.shape_cast %107 : vector<16x16xf32> to vector<1x16x16xf32>
    tpu.vector_store %arg18[%c0_62, %c0_63, %c0_64], %110 {strides = array<i32>} : memref<1x16x16xf32, #tpu.memory_space<vmem>>, vector<1x16x16xf32>,
    return
  }
  func.func @transform_0(%arg0: i32) -> (i32, i32, i32) {
    %c0_i32 = arith.constant 0 : i32
    %c0_i32_0 = arith.constant 0 : i32
    %c0_i32_1 = arith.constant 0 : i32
    return %arg0, %c0_i32, %c0_i32_0 : i32, i32, i32
  }
  func.func @transform_1(%arg0: i32) -> (i32, i32, i32) {
    %c0_i32 = arith.constant 0 : i32
    %c0_i32_0 = arith.constant 0 : i32
    %c0_i32_1 = arith.constant 0 : i32
    return %arg0, %c0_i32, %c0_i32_0 : i32, i32, i32
  }
  func.func @transform_2(%arg0: i32) -> (i32, i32, i32) {
    %c0_i32 = arith.constant 0 : i32
    %c0_i32_0 = arith.constant 0 : i32
    %c0_i32_1 = arith.constant 0 : i32
    return %arg0, %c0_i32, %c0_i32_0 : i32, i32, i32
  }
  func.func @transform_3(%arg0: i32) -> (i32, i32) {
    %c0_i32 = arith.constant 0 : i32
    %c0_i32_0 = arith.constant 0 : i32
    %c0_i32_1 = arith.constant 0 : i32
    return %c0_i32, %c0_i32_0 : i32, i32
  }
  func.func @transform_4(%arg0: i32) -> (i32, i32) {
    %c0_i32 = arith.constant 0 : i32
    %c0_i32_0 = arith.constant 0 : i32
    %c0_i32_1 = arith.constant 0 : i32
    return %c0_i32, %c0_i32_0 : i32, i32
  }
  func.func @transform_5(%arg0: i32) -> (i32, i32) {
    %c0_i32 = arith.constant 0 : i32
    %c0_i32_0 = arith.constant 0 : i32
    %c0_i32_1 = arith.constant 0 : i32
    return %c0_i32, %c0_i32_0 : i32, i32
  }
  func.func @transform_6(%arg0: i32) -> (i32, i32) {
    %c0_i32 = arith.constant 0 : i32
    %c0_i32_0 = arith.constant 0 : i32
    %c0_i32_1 = arith.constant 0 : i32
    return %c0_i32, %c0_i32_0 : i32, i32
  }
  func.func @transform_7(%arg0: i32) -> (i32, i32) {
    %c0_i32 = arith.constant 0 : i32
    %c0_i32_0 = arith.constant 0 : i32
    %c0_i32_1 = arith.constant 0 : i32
    return %c0_i32, %c0_i32_0 : i32, i32
  }
  func.func @transform_8(%arg0: i32) -> (i32, i32) {
    %c0_i32 = arith.constant 0 : i32
    %c0_i32_0 = arith.constant 0 : i32
    %c0_i32_1 = arith.constant 0 : i32
    return %c0_i32, %c0_i32_0 : i32, i32
  }
  func.func @transform_9(%arg0: i32) -> (i32, i32) {
    %c0_i32 = arith.constant 0 : i32
    %c0_i32_0 = arith.constant 0 : i32
    %c0_i32_1 = arith.constant 0 : i32
    return %c0_i32, %c0_i32_0 : i32, i32
  }
  func.func @transform_10(%arg0: i32) -> (i32, i32) {
    %c0_i32 = arith.constant 0 : i32
    %c0_i32_0 = arith.constant 0 : i32
    %c0_i32_1 = arith.constant 0 : i32
    return %c0_i32, %c0_i32_0 : i32, i32
  }
  func.func @transform_11(%arg0: i32) -> (i32, i32) {
    %c0_i32 = arith.constant 0 : i32
    %c0_i32_0 = arith.constant 0 : i32
    %c0_i32_1 = arith.constant 0 : i32
    return %c0_i32, %c0_i32_0 : i32, i32
  }
  func.func @transform_12(%arg0: i32) -> (i32, i32) {
    %c0_i32 = arith.constant 0 : i32
    %c0_i32_0 = arith.constant 0 : i32
    %c0_i32_1 = arith.constant 0 : i32
    return %c0_i32, %c0_i32_0 : i32, i32
  }
  func.func @transform_13(%arg0: i32) -> (i32, i32) {
    %c0_i32 = arith.constant 0 : i32
    %c0_i32_0 = arith.constant 0 : i32
    %c0_i32_1 = arith.constant 0 : i32
    return %c0_i32, %c0_i32_0 : i32, i32
  }
  func.func @transform_14(%arg0: i32) -> (i32, i32) {
    %c0_i32 = arith.constant 0 : i32
    %c0_i32_0 = arith.constant 0 : i32
    %c0_i32_1 = arith.constant 0 : i32
    return %c0_i32, %c0_i32_0 : i32, i32
  }
  func.func @transform_15(%arg0: i32) -> (i32, i32) {
    %c0_i32 = arith.constant 0 : i32
    %c0_i32_0 = arith.constant 0 : i32
    %c0_i32_1 = arith.constant 0 : i32
    return %c0_i32, %c0_i32_0 : i32, i32
  }
  func.func @transform_16(%arg0: i32) -> (i32, i32) {
    %c0_i32 = arith.constant 0 : i32
    %c0_i32_0 = arith.constant 0 : i32
    %c0_i32_1 = arith.constant 0 : i32
    return %c0_i32, %c0_i32_0 : i32, i32
  }
  func.func @transform_17(%arg0: i32) -> (i32, i32, i32) {
    %c0_i32 = arith.constant 0 : i32
    %c0_i32_0 = arith.constant 0 : i32
    %c0_i32_1 = arith.constant 0 : i32
    return %arg0, %c0_i32, %c0_i32_0 : i32, i32, i32
  }
}

</mosaic_0001>

<llo_original>
// kernel: custom-call
$region0: #{custom-call}
  %s0 = inlined_call_operand.vmem [shape: f32[1552], index: 0, kind: output, shape index: {}]

// kernel: aggregation_forward.1
$region0: #{aggregation_forward.1}
  #allocation0 [shape = 'u32[]', space=smem, size = 0x4, offset = 0x4, fixed_abs, tag = 'smem constant byte address 0x4 - core index']
  #allocation1 [shape = 'u32[144,128]{1,0:T(1,128)}', space=vmem, size = 0x12000, scoped, tag = 'internal scratch']
  %s0 = inlined_call_operand.vmem [shape: f32[2,4,32], index: 0, kind: input, shape index: {}]
  %s1 = inlined_call_operand.vmem [shape: f32[2,8,64], index: 1, kind: input, shape index: {}]
  %s2 = inlined_call_operand.vmem [shape: f32[2,16,128], index: 2, kind: input, shape index: {}]
  %s3 = inlined_call_operand.vmem [shape: bf16[24,4], index: 3, kind: input, shape index: {}]
  %s4 = inlined_call_operand.vmem [shape: bf16[48,4], index: 4, kind: input, shape index: {}]
  %s5 = inlined_call_operand.vmem [shape: bf16[48,8], index: 5, kind: input, shape index: {}]
  %s6 = inlined_call_operand.vmem [shape: bf16[24,8], index: 6, kind: input, shape index: {}]
  %s7 = inlined_call_operand.vmem [shape: bf16[48,16], index: 7, kind: input, shape index: {}]
  %s8 = inlined_call_operand.vmem [shape: bf16[96,128], index: 8, kind: input, shape index: {}]
  %s9 = inlined_call_operand.vmem [shape: bf16[96,128], index: 9, kind: input, shape index: {}]
  %s10 = inlined_call_operand.vmem [shape: bf16[192,128], index: 10, kind: input, shape index: {}]
  %s11 = inlined_call_operand.vmem [shape: bf16[384,128], index: 11, kind: input, shape index: {}]
  %s12 = inlined_call_operand.vmem [shape: bf16[384,256], index: 12, kind: input, shape index: {}]
  %s13 = inlined_call_operand.hbm [shape: bf16[1152,384], index: 13, kind: input, shape index: {}]
  %s14 = inlined_call_operand.hbm [shape: bf16[1152,384], index: 14, kind: input, shape index: {}]
  %s15 = inlined_call_operand.vmem [shape: bf16[384,16], index: 15, kind: input, shape index: {}]
  %s16 = inlined_call_operand.vmem [shape: f32[1,1552], index: 16, kind: input, shape index: {}]
  %s17 = inlined_call_operand.hbm [shape: f32[2,16,16], index: 17, kind: output, shape index: {}]
  %s18 = sld [smem:[#allocation0]]
  $region109: #{aggregation_forward.1} parent=0
    _
  %s20 = ssub.s32 1, %s18
  %s21 = scalar_select 0, %s20, %s18
  $region1: #{aggregation_forward.1} parent=0
    #allocation2 [shape = 'u8[884736]{0}', space=vmem, size = 0xd8000, scoped, tag = 'input window, operand 13, single buffered']
    #allocation3 [shape = 's32[2]{0}', space=sflag, size = 0x8, scoped, tag = 'scoped memory for aggregation_forward.1']
    #allocation4 [shape = 's32[2]{0}', space=sflag, size = 0x8, scoped, tag = 'scoped memory for aggregation_forward.1']
    #allocation5 [shape = 'u8[884736]{0}', space=vmem, size = 0xd8000, scoped, tag = 'input window, operand 14, single buffered']
    #allocation6 [shape = 's32[1]{0}', space=sflag, size = 0x4, scoped, tag = 'scoped memory for aggregation_forward.1']
    #allocation7 [shape = 'u8[16384]{0}', space=vmem, size = 0x4000, scoped, tag = 'output window, operand 0']
    %22 = vsyncpa [#allocation3], 0
    %23 = vsyncpa [#allocation6], 0
    %24 = vsyncpa [#allocation4], 0
    %s25 = scalar_lea.sflag [#allocation4], 1
    %26 = vsyncpa %s25, 0
    loop: start=0, step=1, limit=4
    $region2: #{aggregation_forward.1} parent=1 // loop_pre_header
      _
    $region3: #{aggregation_forward.1} parent=1 // loop_header
      %s28 = sphi 0, %s32
      %p29 = scmp.ge.s32.totalorder %s28, 4
      %s38 = sphi 0, %s40
      %s41 = sphi 0, %s38
      %s42 = sphi 0, %s41
      %s58 = sphi 0, %s42
      %s64 = sphi 0, %s66
      %s67 = sphi 0, %s64
      %s68 = sphi 0, %s67
      %s84 = sphi 0, %s68
      %s90 = sphi 0, %s92
      %s93 = sphi 0, %s90
      %s94 = sphi 0, %s93
      %s110 = sphi 0, %s94
      %s114 = sphi 0, %s114
      %s116 = sphi 0, %s114
      %s117 = sphi 0, %s116
      %s131 = sphi 0, %s117
      %s135 = sphi 0, %s135
      %s137 = sphi 0, %s135
      %s138 = sphi 0, %s137
      %s152 = sphi 0, %s138
      %s156 = sphi 0, %s156
      %s158 = sphi 0, %s156
      %s159 = sphi 0, %s158
      %s173 = sphi 0, %s159
      %s177 = sphi 0, %s177
      %s179 = sphi 0, %s177
      %s180 = sphi 0, %s179
      %s194 = sphi 0, %s180
      %s198 = sphi 0, %s198
      %s200 = sphi 0, %s198
      %s201 = sphi 0, %s200
      %s215 = sphi 0, %s201
      %s219 = sphi 0, %s219
      %s221 = sphi 0, %s219
      %s222 = sphi 0, %s221
      %s236 = sphi 0, %s222
      %s240 = sphi 0, %s240
      %s242 = sphi 0, %s240
      %s243 = sphi 0, %s242
      %s257 = sphi 0, %s243
      %s261 = sphi 0, %s261
      %s263 = sphi 0, %s261
      %s264 = sphi 0, %s263
      %s278 = sphi 0, %s264
      %s282 = sphi 0, %s282
      %s284 = sphi 0, %s282
      %s285 = sphi 0, %s284
      %s299 = sphi 0, %s285
      %s303 = sphi 0, %s303
      %s305 = sphi 0, %s303
      %s306 = sphi 0, %s305
      %s320 = sphi 0, %s306
      %s324 = sphi 0, %s324
      %s326 = sphi 0, %s324
      %s327 = sphi 0, %s326
      %s341 = sphi 0, %s327
      %s345 = sphi 0, %s345
      %s347 = sphi 0, %s345
      %s348 = sphi 0, %s347
      %s362 = sphi 0, %s348
      %s366 = sphi 0, %s366
      %s368 = sphi 0, %s366
      %s369 = sphi 0, %s368
      %s383 = sphi 0, %s369
      %s387 = sphi 0, %s387
      %s389 = sphi 0, %s387
      %s390 = sphi 0, %s389
      %s404 = sphi 0, %s390
      %s410 = sphi 0, %s412
      %s413 = sphi 0, %s410
      %s414 = sphi 0, %s413
      %s430 = sphi 0, %s414
    $region4: #{aggregation_forward.1} parent=1 // loop_header_branch
      %31 = sbr.rel (%p29) target = $region8
    $region5: #{aggregation_forward.1} parent=1 // loop_body
      %s33 = ssub.s32 %s28, 1
      %s34 = ssub.s32 %s28, 2
      %s35 = sadd.s32 %s28, 1
      %s36 = ssub.s32 %s28, %s35
      %p37 = scmp.eq.s32.totalorder %s36, 0
      %s39 = sadd.s32 %s38, 1
      %s40 = scalar_select %p37, %s38, %s39
      %p43 = pneg %p37
      %p44 = scmp.eq.s32.totalorder %s28, 1
      %p45 = por %p43, %p44
      %p46 = scmp.ne.s32.totalorder %s38, %s41
      %p47 = scmp.eq.s32.totalorder %s28, 0
      %p48 = por %p46, %p47
      %p49 = scmp.ne.s32.totalorder %s38, %s41
      %p50 = scmp.eq.s32.totalorder %s33, 1
      %p51 = por %p49, %p50
      %p52 = scmp.ne.s32.totalorder %s41, %s42
      %p53 = scmp.eq.s32.totalorder %s33, 0
      %p54 = por %p52, %p53
      %p55 = scmp.ne.s32.totalorder %s41, %s42
      %p56 = scmp.eq.s32.totalorder %s34, 1
      %p57 = por %p55, %p56
      %p59 = scmp.ne.s32.totalorder %s42, %s58
      %p60 = scmp.eq.s32.totalorder %s34, 0
      %p61 = por %p59, %p60
      %s62 = ssub.s32 %s28, %s35
      %p63 = scmp.eq.s32.totalorder %s62, 0
      %s65 = sadd.s32 %s64, 1
      %s66 = scalar_select %p63, %s64, %s65
      %p69 = pneg %p63
      %p70 = scmp.eq.s32.totalorder %s28, 1
      %p71 = por %p69, %p70
      %p72 = scmp.ne.s32.totalorder %s64, %s67
      %p73 = scmp.eq.s32.totalorder %s28, 0
      %p74 = por %p72, %p73
      %p75 = scmp.ne.s32.totalorder %s64, %s67
      %p76 = scmp.eq.s32.totalorder %s33, 1
      %p77 = por %p75, %p76
      %p78 = scmp.ne.s32.totalorder %s67, %s68
      %p79 = scmp.eq.s32.totalorder %s33, 0
      %p80 = por %p78, %p79
      %p81 = scmp.ne.s32.totalorder %s67, %s68
      %p82 = scmp.eq.s32.totalorder %s34, 1
      %p83 = por %p81, %p82
      %p85 = scmp.ne.s32.totalorder %s68, %s84
      %p86 = scmp.eq.s32.totalorder %s34, 0
      %p87 = por %p85, %p86
      %s88 = ssub.s32 %s28, %s35
      %p89 = scmp.eq.s32.totalorder %s88, 0
      %s91 = sadd.s32 %s90, 1
      %s92 = scalar_select %p89, %s90, %s91
      %p95 = pneg %p89
      %p96 = scmp.eq.s32.totalorder %s28, 1
      %p97 = por %p95, %p96
      %p98 = scmp.ne.s32.totalorder %s90, %s93
      %p99 = scmp.eq.s32.totalorder %s28, 0
      %p100 = por %p98, %p99
      %p101 = scmp.ne.s32.totalorder %s90, %s93
      %p102 = scmp.eq.s32.totalorder %s33, 1
      %p103 = por %p101, %p102
      %p104 = scmp.ne.s32.totalorder %s93, %s94
      %p105 = scmp.eq.s32.totalorder %s33, 0
      %p106 = por %p104, %p105
      %p107 = scmp.ne.s32.totalorder %s93, %s94
      %p108 = scmp.eq.s32.totalorder %s34, 1
      %p109 = por %p107, %p108
      %p111 = scmp.ne.s32.totalorder %s94, %s110
      %p112 = scmp.eq.s32.totalorder %s34, 0
      %p113 = por %p111, %p112
      %s115 = sadd.s32 %s114, 1
      %p118 = scmp.eq.s32.totalorder %s28, 1
      %p119 = scmp.ne.s32.totalorder %s114, %s116
      %p120 = scmp.eq.s32.totalorder %s28, 0
      %p121 = por %p119, %p120
      %p122 = scmp.ne.s32.totalorder %s114, %s116
      %p123 = scmp.eq.s32.totalorder %s33, 1
      %p124 = por %p122, %p123
      %p125 = scmp.ne.s32.totalorder %s116, %s117
      %p126 = scmp.eq.s32.totalorder %s33, 0
      %p127 = por %p125, %p126
      %p128 = scmp.ne.s32.totalorder %s116, %s117
      %p129 = scmp.eq.s32.totalorder %s34, 1
      %p130 = por %p128, %p129
      %p132 = scmp.ne.s32.totalorder %s117, %s131
      %p133 = scmp.eq.s32.totalorder %s34, 0
      %p134 = por %p132, %p133
      %s136 = sadd.s32 %s135, 1
      %p139 = scmp.eq.s32.totalorder %s28, 1
      %p140 = scmp.ne.s32.totalorder %s135, %s137
      %p141 = scmp.eq.s32.totalorder %s28, 0
      %p142 = por %p140, %p141
      %p143 = scmp.ne.s32.totalorder %s135, %s137
      %p144 = scmp.eq.s32.totalorder %s33, 1
      %p145 = por %p143, %p144
      %p146 = scmp.ne.s32.totalorder %s137, %s138
      %p147 = scmp.eq.s32.totalorder %s33, 0
      %p148 = por %p146, %p147
      %p149 = scmp.ne.s32.totalorder %s137, %s138
      %p150 = scmp.eq.s32.totalorder %s34, 1
      %p151 = por %p149, %p150
      %p153 = scmp.ne.s32.totalorder %s138, %s152
      %p154 = scmp.eq.s32.totalorder %s34, 0
      %p155 = por %p153, %p154
      %s157 = sadd.s32 %s156, 1
      %p160 = scmp.eq.s32.totalorder %s28, 1
      %p161 = scmp.ne.s32.totalorder %s156, %s158
      %p162 = scmp.eq.s32.totalorder %s28, 0
      %p163 = por %p161, %p162
      %p164 = scmp.ne.s32.totalorder %s156, %s158
      %p165 = scmp.eq.s32.totalorder %s33, 1
      %p166 = por %p164, %p165
      %p167 = scmp.ne.s32.totalorder %s158, %s159
      %p168 = scmp.eq.s32.totalorder %s33, 0
      %p169 = por %p167, %p168
      %p170 = scmp.ne.s32.totalorder %s158, %s159
      %p171 = scmp.eq.s32.totalorder %s34, 1
      %p172 = por %p170, %p171
      %p174 = scmp.ne.s32.totalorder %s159, %s173
      %p175 = scmp.eq.s32.totalorder %s34, 0
      %p176 = por %p174, %p175
      %s178 = sadd.s32 %s177, 1
      %p181 = scmp.eq.s32.totalorder %s28, 1
      %p182 = scmp.ne.s32.totalorder %s177, %s179
      %p183 = scmp.eq.s32.totalorder %s28, 0
      %p184 = por %p182, %p183
      %p185 = scmp.ne.s32.totalorder %s177, %s179
      %p186 = scmp.eq.s32.totalorder %s33, 1
      %p187 = por %p185, %p186
      %p188 = scmp.ne.s32.totalorder %s179, %s180
      %p189 = scmp.eq.s32.totalorder %s33, 0
      %p190 = por %p188, %p189
      %p191 = scmp.ne.s32.totalorder %s179, %s180
      %p192 = scmp.eq.s32.totalorder %s34, 1
      %p193 = por %p191, %p192
      %p195 = scmp.ne.s32.totalorder %s180, %s194
      %p196 = scmp.eq.s32.totalorder %s34, 0
      %p197 = por %p195, %p196
      %s199 = sadd.s32 %s198, 1
      %p202 = scmp.eq.s32.totalorder %s28, 1
      %p203 = scmp.ne.s32.totalorder %s198, %s200
      %p204 = scmp.eq.s32.totalorder %s28, 0
      %p205 = por %p203, %p204
      %p206 = scmp.ne.s32.totalorder %s198, %s200
      %p207 = scmp.eq.s32.totalorder %s33, 1
      %p208 = por %p206, %p207
      %p209 = scmp.ne.s32.totalorder %s200, %s201
      %p210 = scmp.eq.s32.totalorder %s33, 0
      %p211 = por %p209, %p210
      %p212 = scmp.ne.s32.totalorder %s200, %s201
      %p213 = scmp.eq.s32.totalorder %s34, 1
      %p214 = por %p212, %p213
      %p216 = scmp.ne.s32.totalorder %s201, %s215
      %p217 = scmp.eq.s32.totalorder %s34, 0
      %p218 = por %p216, %p217
      %s220 = sadd.s32 %s219, 1
      %p223 = scmp.eq.s32.totalorder %s28, 1
      %p224 = scmp.ne.s32.totalorder %s219, %s221
      %p225 = scmp.eq.s32.totalorder %s28, 0
      %p226 = por %p224, %p225
      %p227 = scmp.ne.s32.totalorder %s219, %s221
      %p228 = scmp.eq.s32.totalorder %s33, 1
      %p229 = por %p227, %p228
      %p230 = scmp.ne.s32.totalorder %s221, %s222
      %p231 = scmp.eq.s32.totalorder %s33, 0
      %p232 = por %p230, %p231
      %p233 = scmp.ne.s32.totalorder %s221, %s222
      %p234 = scmp.eq.s32.totalorder %s34, 1
      %p235 = por %p233, %p234
      %p237 = scmp.ne.s32.totalorder %s222, %s236
      %p238 = scmp.eq.s32.totalorder %s34, 0
      %p239 = por %p237, %p238
      %s241 = sadd.s32 %s240, 1
      %p244 = scmp.eq.s32.totalorder %s28, 1
      %p245 = scmp.ne.s32.totalorder %s240, %s242
      %p246 = scmp.eq.s32.totalorder %s28, 0
      %p247 = por %p245, %p246
      %p248 = scmp.ne.s32.totalorder %s240, %s242
      %p249 = scmp.eq.s32.totalorder %s33, 1
      %p250 = por %p248, %p249
      %p251 = scmp.ne.s32.totalorder %s242, %s243
      %p252 = scmp.eq.s32.totalorder %s33, 0
      %p253 = por %p251, %p252
      %p254 = scmp.ne.s32.totalorder %s242, %s243
      %p255 = scmp.eq.s32.totalorder %s34, 1
      %p256 = por %p254, %p255
      %p258 = scmp.ne.s32.totalorder %s243, %s257
      %p259 = scmp.eq.s32.totalorder %s34, 0
      %p260 = por %p258, %p259
      %s262 = sadd.s32 %s261, 1
      %p265 = scmp.eq.s32.totalorder %s28, 1
      %p266 = scmp.ne.s32.totalorder %s261, %s263
      %p267 = scmp.eq.s32.totalorder %s28, 0
      %p268 = por %p266, %p267
      %p269 = scmp.ne.s32.totalorder %s261, %s263
      %p270 = scmp.eq.s32.totalorder %s33, 1
      %p271 = por %p269, %p270
      %p272 = scmp.ne.s32.totalorder %s263, %s264
      %p273 = scmp.eq.s32.totalorder %s33, 0
      %p274 = por %p272, %p273
      %p275 = scmp.ne.s32.totalorder %s263, %s264
      %p276 = scmp.eq.s32.totalorder %s34, 1
      %p277 = por %p275, %p276
      %p279 = scmp.ne.s32.totalorder %s264, %s278
      %p280 = scmp.eq.s32.totalorder %s34, 0
      %p281 = por %p279, %p280
      %s283 = sadd.s32 %s282, 1
      %p286 = scmp.eq.s32.totalorder %s28, 1
      %p287 = scmp.ne.s32.totalorder %s282, %s284
      %p288 = scmp.eq.s32.totalorder %s28, 0
      %p289 = por %p287, %p288
      %p290 = scmp.ne.s32.totalorder %s282, %s284
      %p291 = scmp.eq.s32.totalorder %s33, 1
      %p292 = por %p290, %p291
      %p293 = scmp.ne.s32.totalorder %s284, %s285
      %p294 = scmp.eq.s32.totalorder %s33, 0
      %p295 = por %p293, %p294
      %p296 = scmp.ne.s32.totalorder %s284, %s285
      %p297 = scmp.eq.s32.totalorder %s34, 1
      %p298 = por %p296, %p297
      %p300 = scmp.ne.s32.totalorder %s285, %s299
      %p301 = scmp.eq.s32.totalorder %s34, 0
      %p302 = por %p300, %p301
      %s304 = sadd.s32 %s303, 1
      %p307 = scmp.eq.s32.totalorder %s28, 1
      %p308 = scmp.ne.s32.totalorder %s303, %s305
      %p309 = scmp.eq.s32.totalorder %s28, 0
      %p310 = por %p308, %p309
      %p311 = scmp.ne.s32.totalorder %s303, %s305
      %p312 = scmp.eq.s32.totalorder %s33, 1
      %p313 = por %p311, %p312
      %p314 = scmp.ne.s32.totalorder %s305, %s306
      %p315 = scmp.eq.s32.totalorder %s33, 0
      %p316 = por %p314, %p315
      %p317 = scmp.ne.s32.totalorder %s305, %s306
      %p318 = scmp.eq.s32.totalorder %s34, 1
      %p319 = por %p317, %p318
      %p321 = scmp.ne.s32.totalorder %s306, %s320
      %p322 = scmp.eq.s32.totalorder %s34, 0
      %p323 = por %p321, %p322
      %s325 = sadd.s32 %s324, 1
      %p328 = scmp.eq.s32.totalorder %s28, 1
      %p329 = scmp.ne.s32.totalorder %s324, %s326
      %p330 = scmp.eq.s32.totalorder %s28, 0
      %p331 = por %p329, %p330
      %p332 = scmp.ne.s32.totalorder %s324, %s326
      %p333 = scmp.eq.s32.totalorder %s33, 1
      %p334 = por %p332, %p333
      %p335 = scmp.ne.s32.totalorder %s326, %s327
      %p336 = scmp.eq.s32.totalorder %s33, 0
      %p337 = por %p335, %p336
      %p338 = scmp.ne.s32.totalorder %s326, %s327
      %p339 = scmp.eq.s32.totalorder %s34, 1
      %p340 = por %p338, %p339
      %p342 = scmp.ne.s32.totalorder %s327, %s341
      %p343 = scmp.eq.s32.totalorder %s34, 0
      %p344 = por %p342, %p343
      %s346 = sadd.s32 %s345, 1
      %p349 = scmp.eq.s32.totalorder %s28, 1
      %p350 = scmp.ne.s32.totalorder %s345, %s347
      %p351 = scmp.eq.s32.totalorder %s28, 0
      %p352 = por %p350, %p351
      %p353 = scmp.ne.s32.totalorder %s345, %s347
      %p354 = scmp.eq.s32.totalorder %s33, 1
      %p355 = por %p353, %p354
      %p356 = scmp.ne.s32.totalorder %s347, %s348
      %p357 = scmp.eq.s32.totalorder %s33, 0
      %p358 = por %p356, %p357
      %p359 = scmp.ne.s32.totalorder %s347, %s348
      %p360 = scmp.eq.s32.totalorder %s34, 1
      %p361 = por %p359, %p360
      %p363 = scmp.ne.s32.totalorder %s348, %s362
      %p364 = scmp.eq.s32.totalorder %s34, 0
      %p365 = por %p363, %p364
      %s367 = sadd.s32 %s366, 1
      %p370 = scmp.eq.s32.totalorder %s28, 1
      %p371 = scmp.ne.s32.totalorder %s366, %s368
      %p372 = scmp.eq.s32.totalorder %s28, 0
      %p373 = por %p371, %p372
      %p374 = scmp.ne.s32.totalorder %s366, %s368
      %p375 = scmp.eq.s32.totalorder %s33, 1
      %p376 = por %p374, %p375
      %p377 = scmp.ne.s32.totalorder %s368, %s369
      %p378 = scmp.eq.s32.totalorder %s33, 0
      %p379 = por %p377, %p378
      %p380 = scmp.ne.s32.totalorder %s368, %s369
      %p381 = scmp.eq.s32.totalorder %s34, 1
      %p382 = por %p380, %p381
      %p384 = scmp.ne.s32.totalorder %s369, %s383
      %p385 = scmp.eq.s32.totalorder %s34, 0
      %p386 = por %p384, %p385
      %s388 = sadd.s32 %s387, 1
      %p391 = scmp.eq.s32.totalorder %s28, 1
      %p392 = scmp.ne.s32.totalorder %s387, %s389
      %p393 = scmp.eq.s32.totalorder %s28, 0
      %p394 = por %p392, %p393
      %p395 = scmp.ne.s32.totalorder %s387, %s389
      %p396 = scmp.eq.s32.totalorder %s33, 1
      %p397 = por %p395, %p396
      %p398 = scmp.ne.s32.totalorder %s389, %s390
      %p399 = scmp.eq.s32.totalorder %s33, 0
      %p400 = por %p398, %p399
      %p401 = scmp.ne.s32.totalorder %s389, %s390
      %p402 = scmp.eq.s32.totalorder %s34, 1
      %p403 = por %p401, %p402
      %p405 = scmp.ne.s32.totalorder %s390, %s404
      %p406 = scmp.eq.s32.totalorder %s34, 0
      %p407 = por %p405, %p406
      %s408 = ssub.s32 %s28, %s35
      %p409 = scmp.eq.s32.totalorder %s408, 0
      %s411 = sadd.s32 %s410, 1
      %s412 = scalar_select %p409, %s410, %s411
      %p415 = pneg %p409
      %p416 = scmp.eq.s32.totalorder %s28, 1
      %p417 = por %p415, %p416
      %p418 = scmp.ne.s32.totalorder %s410, %s413
      %p419 = scmp.eq.s32.totalorder %s28, 0
      %p420 = por %p418, %p419
      %p421 = scmp.ne.s32.totalorder %s410, %s413
      %p422 = scmp.eq.s32.totalorder %s33, 1
      %p423 = por %p421, %p422
      %p424 = scmp.ne.s32.totalorder %s413, %s414
      %p425 = scmp.eq.s32.totalorder %s33, 0
      %p426 = por %p424, %p425
      %p427 = scmp.ne.s32.totalorder %s413, %s414
      %p428 = scmp.eq.s32.totalorder %s34, 1
      %p429 = por %p427, %p428
      %p431 = scmp.ne.s32.totalorder %s414, %s430
      %p432 = scmp.eq.s32.totalorder %s34, 0
      %p433 = por %p431, %p432
      %p434 = scmp.le.s32.totalorder 1, %s28
      %p435 = scmp.lt.s32.totalorder %s28, 3
      %p436 = pnand %p434, %p435
      %p437 = pneg %p436
      // Predicated region
      $region9: #{aggregation_forward.1} parent=5 // pred_check
        _
      $region10: #{aggregation_forward.1} parent=5 // pred_check_branch
        %439 = sbr.rel (%p436) target = $region12
      $region11: #{aggregation_forward.1} parent=5 // pred_region
        %s440 = ssub.s32 %s28, 1
        // Predicated region
        $region13: #{aggregation_forward.1} parent=11 // pred_check
          %p441 = pneg %p127
        $region14: #{aggregation_forward.1} parent=11 // pred_check_branch
          %443 = sbr.rel (%p441) target = $region16
        $region15: #{aggregation_forward.1} parent=11 // pred_region
          _
        $region16: #{aggregation_forward.1} parent=11 // pred_fallthru
          _
        // Predicated region
        $region17: #{aggregation_forward.1} parent=11 // pred_check
          %p444 = pneg %p148
        $region18: #{aggregation_forward.1} parent=11 // pred_check_branch
          %446 = sbr.rel (%p444) target = $region20
        $region19: #{aggregation_forward.1} parent=11 // pred_region
          _
        $region20: #{aggregation_forward.1} parent=11 // pred_fallthru
          _
        // Predicated region
        $region21: #{aggregation_forward.1} parent=11 // pred_check
          %p447 = pneg %p169
        $region22: #{aggregation_forward.1} parent=11 // pred_check_branch
          %449 = sbr.rel (%p447) target = $region24
        $region23: #{aggregation_forward.1} parent=11 // pred_region
          _
        $region24: #{aggregation_forward.1} parent=11 // pred_fallthru
          _
        // Predicated region
        $region25: #{aggregation_forward.1} parent=11 // pred_check
          %p450 = pneg %p190
        $region26: #{aggregation_forward.1} parent=11 // pred_check_branch
          %452 = sbr.rel (%p450) target = $region28
        $region27: #{aggregation_forward.1} parent=11 // pred_region
          _
        $region28: #{aggregation_forward.1} parent=11 // pred_fallthru
          _
        // Predicated region
        $region29: #{aggregation_forward.1} parent=11 // pred_check
          %p453 = pneg %p211
        $region30: #{aggregation_forward.1} parent=11 // pred_check_branch
          %455 = sbr.rel (%p453) target = $region32
        $region31: #{aggregation_forward.1} parent=11 // pred_region
          _
        $region32: #{aggregation_forward.1} parent=11 // pred_fallthru
          _
        // Predicated region
        $region33: #{aggregation_forward.1} parent=11 // pred_check
          %p456 = pneg %p232
        $region34: #{aggregation_forward.1} parent=11 // pred_check_branch
          %458 = sbr.rel (%p456) target = $region36
        $region35: #{aggregation_forward.1} parent=11 // pred_region
          _
        $region36: #{aggregation_forward.1} parent=11 // pred_fallthru
          _
        // Predicated region
        $region37: #{aggregation_forward.1} parent=11 // pred_check
          %p459 = pneg %p253
        $region38: #{aggregation_forward.1} parent=11 // pred_check_branch
          %461 = sbr.rel (%p459) target = $region40
        $region39: #{aggregation_forward.1} parent=11 // pred_region
          _
        $region40: #{aggregation_forward.1} parent=11 // pred_fallthru
          _
        // Predicated region
        $region41: #{aggregation_forward.1} parent=11 // pred_check
          %p462 = pneg %p274
        $region42: #{aggregation_forward.1} parent=11 // pred_check_branch
          %464 = sbr.rel (%p462) target = $region44
        $region43: #{aggregation_forward.1} parent=11 // pred_region
          _
        $region44: #{aggregation_forward.1} parent=11 // pred_fallthru
          _
        // Predicated region
        $region45: #{aggregation_forward.1} parent=11 // pred_check
          %p465 = pneg %p295
        $region46: #{aggregation_forward.1} parent=11 // pred_check_branch
          %467 = sbr.rel (%p465) target = $region48
        $region47: #{aggregation_forward.1} parent=11 // pred_region
          _
        $region48: #{aggregation_forward.1} parent=11 // pred_fallthru
          _
        // Predicated region
        $region49: #{aggregation_forward.1} parent=11 // pred_check
          %p468 = pneg %p316
        $region50: #{aggregation_forward.1} parent=11 // pred_check_branch
          %470 = sbr.rel (%p468) target = $region52
        $region51: #{aggregation_forward.1} parent=11 // pred_region
          _
        $region52: #{aggregation_forward.1} parent=11 // pred_fallthru
          _
        // Predicated region
        $region53: #{aggregation_forward.1} parent=11 // pred_check
          %p471 = pneg %p337
        $region54: #{aggregation_forward.1} parent=11 // pred_check_branch
          %473 = sbr.rel (%p471) target = $region56
        $region55: #{aggregation_forward.1} parent=11 // pred_region
          %s475 = ssub.s32 27648, 27648
          %476 = vsyncadd [#allocation3], %s475
          %s477 = sshll.u32 [#allocation2], 4
          %s478 = int_to_ptr.vmem [resolvable:$true] %s477
          %483 = dma.hbm_to_vmem [thread:$0]  %s13, 27648, %s478, [#allocation3], 192, 192, 12
        $region56: #{aggregation_forward.1} parent=11 // pred_fallthru
          _
        // Predicated region
        $region57: #{aggregation_forward.1} parent=11 // pred_check
          %p484 = pneg %p358
        $region58: #{aggregation_forward.1} parent=11 // pred_check_branch
          %486 = sbr.rel (%p484) target = $region60
        $region59: #{aggregation_forward.1} parent=11 // pred_region
          %s488 = ssub.s32 27648, 27648
          %489 = vsyncadd [#allocation6], %s488
          %s490 = sshll.u32 [#allocation5], 4
          %s491 = int_to_ptr.vmem [resolvable:$true] %s490
          %496 = dma.hbm_to_vmem [thread:$0]  %s14, 27648, %s491, [#allocation6], 192, 192, 12
        $region60: #{aggregation_forward.1} parent=11 // pred_fallthru
          _
        // Predicated region
        $region61: #{aggregation_forward.1} parent=11 // pred_check
          %p497 = pneg %p379
        $region62: #{aggregation_forward.1} parent=11 // pred_check_branch
          %499 = sbr.rel (%p497) target = $region64
        $region63: #{aggregation_forward.1} parent=11 // pred_region
          _
        $region64: #{aggregation_forward.1} parent=11 // pred_fallthru
          _
        // Predicated region
        $region65: #{aggregation_forward.1} parent=11 // pred_check
          %p500 = pneg %p400
        $region66: #{aggregation_forward.1} parent=11 // pred_check_branch
          %502 = sbr.rel (%p500) target = $region68
        $region67: #{aggregation_forward.1} parent=11 // pred_region
          _
        $region68: #{aggregation_forward.1} parent=11 // pred_fallthru
          _
      $region12: #{aggregation_forward.1} parent=5 // pred_fallthru
        _
      %p503 = scmp.lt.s32.totalorder %s28, 2
      // Predicated region
      $region69: #{aggregation_forward.1} parent=5 // pred_check
        %p504 = pneg %p503
      $region70: #{aggregation_forward.1} parent=5 // pred_check_branch
        %506 = sbr.rel (%p504) target = $region72
      $region71: #{aggregation_forward.1} parent=5 // pred_region
        // Predicated region
        $region73: #{aggregation_forward.1} parent=71 // pred_check
          %p507 = pneg %p48
        $region74: #{aggregation_forward.1} parent=71 // pred_check_branch
          %509 = sbr.rel (%p507) target = $region76
        $region75: #{aggregation_forward.1} parent=71 // pred_region
          %p510 = scmp.lt.s32.totalorder %s28, 1
          %s511 = scalar_select %p510, %s28, 1
          %s512 = smul.addr %s511, 4
          %s513 = scalar_lea.vmem %s0, %s512
        $region76: #{aggregation_forward.1} parent=71 // pred_fallthru
          _
        // Predicated region
        $region77: #{aggregation_forward.1} parent=71 // pred_check
          %p514 = pneg %p74
        $region78: #{aggregation_forward.1} parent=71 // pred_check_branch
          %516 = sbr.rel (%p514) target = $region80
        $region79: #{aggregation_forward.1} parent=71 // pred_region
          %p517 = scmp.lt.s32.totalorder %s28, 1
          %s518 = scalar_select %p517, %s28, 1
          %s519 = smul.addr %s518, 8
          %s520 = scalar_lea.vmem %s1, %s519
        $region80: #{aggregation_forward.1} parent=71 // pred_fallthru
          _
        // Predicated region
        $region81: #{aggregation_forward.1} parent=71 // pred_check
          %p521 = pneg %p100
        $region82: #{aggregation_forward.1} parent=71 // pred_check_branch
          %523 = sbr.rel (%p521) target = $region84
        $region83: #{aggregation_forward.1} parent=71 // pred_region
          %p524 = scmp.lt.s32.totalorder %s28, 1
          %s525 = scalar_select %p524, %s28, 1
          %s526 = smul.addr %s525, 2
          %s527 = smul.addr %s526, 8
          %s528 = scalar_lea.vmem %s2, %s527
        $region84: #{aggregation_forward.1} parent=71 // pred_fallthru
          _
      $region72: #{aggregation_forward.1} parent=5 // pred_fallthru
        _
      %p529 = scmp.le.s32.totalorder 1, %s28
      %p530 = scmp.lt.s32.totalorder %s28, 3
      %p531 = pnand %p529, %p530
      %p532 = pneg %p531
      // Predicated region
      $region85: #{aggregation_forward.1} parent=5 // pred_check
        _
      $region86: #{aggregation_forward.1} parent=5 // pred_check_branch
        %534 = sbr.rel (%p531) target = $region88
      $region87: #{aggregation_forward.1} parent=5 // pred_region
        %s535 = ssub.s32 %s28, 1
        // Predicated region
        $region89: #{aggregation_forward.1} parent=87 // pred_check
          %p536 = pneg %p337
        $region90: #{aggregation_forward.1} parent=87 // pred_check_branch
          %538 = sbr.rel (%p536) target = $region92
        $region91: #{aggregation_forward.1} parent=87 // pred_region
          %539 = dma.done [#allocation3], 27648
        $region92: #{aggregation_forward.1} parent=87 // pred_fallthru
          _
        // Predicated region
        $region93: #{aggregation_forward.1} parent=87 // pred_check
          %p540 = pneg %p358
        $region94: #{aggregation_forward.1} parent=87 // pred_check_branch
          %542 = sbr.rel (%p540) target = $region96
        $region95: #{aggregation_forward.1} parent=87 // pred_region
          %543 = dma.done [#allocation6], 27648
        $region96: #{aggregation_forward.1} parent=87 // pred_fallthru
          _
        %p544 = scmp.lt.s32.totalorder %s33, 1
        %s545 = scalar_select %p544, %s33, 1
        %s546 = smul.addr %s545, 4
        %s547 = scalar_lea.vmem %s0, %s546
        %p548 = pneg %p54
        %p549 = pneg %p51
        %p550 = scmp.lt.s32.totalorder %s33, 1
        %s551 = scalar_select %p550, %s33, 1
        %s552 = smul.addr %s551, 8
        %s553 = scalar_lea.vmem %s1, %s552
        %p554 = pneg %p80
        %p555 = pneg %p77
        %p556 = scmp.lt.s32.totalorder %s33, 1
        %s557 = scalar_select %p556, %s33, 1
        %s558 = smul.addr %s557, 2
        %s559 = smul.addr %s558, 8
        %s560 = scalar_lea.vmem %s2, %s559
        %p561 = pneg %p106
        %p562 = pneg %p103
        %p563 = pneg %p127
        %p564 = pneg %p124
        %p565 = pneg %p148
        %p566 = pneg %p145
        %p567 = pneg %p169
        %p568 = pneg %p166
        %p569 = pneg %p190
        %p570 = pneg %p187
        %p571 = pneg %p211
        %p572 = pneg %p208
        %p573 = pneg %p232
        %p574 = pneg %p229
        %p575 = pneg %p253
        %p576 = pneg %p250
        %p577 = pneg %p274
        %p578 = pneg %p271
        %p579 = pneg %p295
        %p580 = pneg %p292
        %p581 = pneg %p316
        %p582 = pneg %p313
        %p583 = pneg %p337
        %p584 = pneg %p334
        %p585 = pneg %p358
        %p586 = pneg %p355
        %p587 = pneg %p379
        %p588 = pneg %p376
        %p589 = pneg %p400
        %p590 = pneg %p397
        %p591 = pneg %p426
        %p592 = pneg %p423
        %s593 = sand.u32 %s413, 1
        %s594 = scalar_lea.sflag [#allocation4], %s593
        %s595 = sand.u32 %s413, 1
        %s596 = smul.addr %s595, 16
        %s597 = scalar_lea.vmem [#allocation7], %s596
        %p598 = scmp.lt.s32.totalorder %s33, 1
        %s599 = scalar_select %p598, %s33, 1
        %s600 = smul.addr %s599, 4
        %s601 = scalar_lea.vmem %s0, %s600
        %p602 = scmp.lt.s32.totalorder %s33, 1
        %s603 = scalar_select %p602, %s33, 1
        %s604 = smul.addr %s603, 8
        %s605 = scalar_lea.vmem %s1, %s604
        %p606 = scmp.lt.s32.totalorder %s33, 1
        %s607 = scalar_select %p606, %s33, 1
        %s608 = smul.addr %s607, 2
        %s609 = smul.addr %s608, 8
        %s610 = scalar_lea.vmem %s2, %s609
        %v612 = vld [vmem:[%s601] sm:$0xf]
        %v613 = vpack.c.bf16 %v612, %v612
        %v614 = vld [vmem:[%s605] sm:$0xff]
        %v615 = vld [vmem:[%s610] sm:$0xff]
        %v616 = vld [vmem:[%s610 + $0x8] sm:$0xff]
        %v617 = vld [vmem:[%s3] sm:$0xf]
        %v618 = vld [vmem:[%s3 + $0x4] sm:$0xf]
        %v619 = vld [vmem:[%s3 + $0x8] sm:$0xf]
        %v623 = vunpack.c.l.b16 %v617
        %v624 = vunpack.c.l.b16 %v618
        %v625 = vunpack.c.l.b16 %v619
        %v626 = vpack.c.b16 %v624, %v623
        %v627 = vpack.c.b16 %v625, %v625
        %vm628 = vcmask 31744
        %v630 = vsel %vm628, %v626, 0
        %v633 = vsel %vm628, %v627, 0
        %vm635 = vcmask 1041408
        %v637 = vsel %vm635, %v613, 0
        %639 = vmatprep.subr.bf16.mxu0 0
        %640 = vmatpush1.bf16.msra.mxu0 %v637
        %641 = vmatprep.subr.bf16.mxu0 0
        %642 = vmatpush1.bf16.msra.mxu0 0
        %643 = vmatprep.subr.bf16.mxu0 0
        %644 = vmatpush1.bf16.msra.mxu0 0
        %645 = vmatprep.subr.bf16.mxu0 0
        %646 = vmatpush1.bf16.msra.mxu0 0
        %647 = vmatprep.subr.bf16.mxu0 0
        %648 = vmatpush1.bf16.msra.mxu0 0
        %649 = vmatprep.subr.bf16.mxu0 0
        %650 = vmatpush1.bf16.msra.mxu0 0
        %651 = vmatprep.subr.bf16.mxu0 0
        %652 = vmatpush1.bf16.msra.mxu0 0
        %653 = vmatprep.subr.bf16.mxu0 0
        %654 = vmatpush1.bf16.msra.mxu0 0
        %655 = vmatprep.subr.bf16.mxu0 0
        %656 = vmatpush1.bf16.msra.mxu0 0
        %657 = vmatprep.subr.bf16.mxu0 0
        %658 = vmatpush1.bf16.msra.mxu0 0
        %659 = vmatprep.subr.bf16.mxu0 0
        %660 = vmatpush1.bf16.msra.mxu0 0
        %661 = vmatprep.subr.bf16.mxu0 0
        %662 = vmatpush1.bf16.msra.mxu0 0
        %663 = vmatprep.subr.bf16.mxu0 0
        %664 = vmatpush1.bf16.msra.mxu0 0
        %665 = vmatprep.subr.bf16.mxu0 0
        %666 = vmatpush1.bf16.msra.mxu0 0
        %667 = vmatprep.subr.bf16.mxu0 0
        %668 = vmatpush1.bf16.msra.mxu0 0
        %669 = vmatprep.subr.bf16.mxu0 0
        %670 = vmatpush1.bf16.msra.mxu0 0
        %671 = vmatprep.mubr.bf16.mxu0 0
        %672 = vmatmul.mubr.bf16.gmra.mrb[0].mxu0 %v630
        %v673 = vpop.f32.mrb[0].mxu0
        %v674 = vadd.f32 0.0, %v673
        %v675 = vpop.f32.mrb[0].mxu0
        %v676 = vpop.f32.mrb[0].mxu0
        %v677 = vadd.f32 0.0, %v676
        %v678 = vpop.f32.mrb[0].mxu0
        %679 = vmatprep.mubr.bf16.mxu0 0
        %680 = vmatmul.mubr.bf16.gmra.mrb[0].mxu0 %v633
        %v681 = vpop.f32.mrb[0].mxu0
        %v682 = vadd.f32 0.0, %v681
        %v683 = vpop.f32.mrb[0].mxu0
        %v684 = vpop.f32.mrb[0].mxu0
        %v685 = vpop.f32.mrb[0].mxu0
        %686 = vdwg.mxu0
        %v687 = vpack.c.bf16 %v677, %v674
        %v688 = vpack.c.bf16 %v682, %v682
        %v690 = vrot.slane %v687, 4
        %691 = vrot.lane.b32.xlu0 %v690, 32
        %v692 = vpop.permute.xlu0 %691
        %694 = vrot.lane.b32.xlu0 %v688, 64
        %v695 = vpop.permute.xlu0 %694
        %vm696 = vcmask 261120
        %v699 = vsel %vm696, %v687, %v692
        %vm700 = vcmask 523264
        %v702 = vsel %vm700, %v699, %v695
        %v703 = vld [vmem:[%s8] sm:$0xf]
        %v704 = vld [vmem:[%s8 + $0x4] sm:$0xf]
        %v705 = vld [vmem:[%s8 + $0x8] sm:$0xf]
        %v706 = vld [vmem:[%s8 + $0xc] sm:$0xf]
        %v707 = vld [vmem:[%s8 + $0x10] sm:$0xf]
        %v708 = vld [vmem:[%s8 + $0x14] sm:$0xf]
        %v709 = vld [vmem:[%s8 + $0x18] sm:$0xf]
        %v710 = vld [vmem:[%s8 + $0x1c] sm:$0xf]
        %v711 = vld [vmem:[%s8 + $0x20] sm:$0xf]
        %v712 = vld [vmem:[%s8 + $0x24] sm:$0xf]
        %v713 = vld [vmem:[%s8 + $0x28] sm:$0xf]
        %v714 = vld [vmem:[%s8 + $0x2c] sm:$0xf]
        %v715 = vld [vmem:[%s16] sm:$0x1]
        %v717 = vlaneseq
        %v718 = vshrl.u32 %v717, 7
        %v719 = vsub.s32 0, %v718
        %v720 = vrot.slane %v715, %v719
        %v734 = vunpack.c.l.b16 %v703
        %v735 = vunpack.c.l.b16 %v704
        %v736 = vunpack.c.l.b16 %v705
        %v737 = vunpack.c.l.b16 %v706
        %v738 = vunpack.c.l.b16 %v707
        %v739 = vunpack.c.l.b16 %v708
        %v740 = vunpack.c.l.b16 %v709
        %v741 = vunpack.c.l.b16 %v710
        %v742 = vunpack.c.l.b16 %v711
        %v743 = vunpack.c.l.b16 %v712
        %v744 = vunpack.c.l.b16 %v713
        %v745 = vunpack.c.l.b16 %v714
        %v746 = vpack.c.b16 %v735, %v734
        %v747 = vpack.c.b16 %v737, %v736
        %v748 = vpack.c.b16 %v739, %v738
        %v749 = vpack.c.b16 %v741, %v740
        %v750 = vpack.c.b16 %v743, %v742
        %v751 = vpack.c.b16 %v745, %v744
        %vm758 = vcmask 785408
        %v759 = vsel %vm758, %v702, 0
        %761 = vmatprep.subr.bf16.mxu0 0
        %762 = vmatpush1.bf16.msra.mxu0 %v746
        %763 = vmatprep.subr.bf16.mxu0 0
        %764 = vmatpush1.bf16.msra.mxu0 %v747
        %765 = vmatprep.subr.bf16.mxu0 0
        %766 = vmatpush1.bf16.msra.mxu0 %v748
        %767 = vmatprep.subr.bf16.mxu0 0
        %768 = vmatpush1.bf16.msra.mxu0 %v749
        %769 = vmatprep.subr.bf16.mxu0 0
        %770 = vmatpush1.bf16.msra.mxu0 %v750
        %771 = vmatprep.subr.bf16.mxu0 0
        %772 = vmatpush1.bf16.msra.mxu0 %v751
        %773 = vmatprep.subr.bf16.mxu0 0
        %774 = vmatpush1.bf16.msra.mxu0 0
        %775 = vmatprep.subr.bf16.mxu0 0
        %776 = vmatpush1.bf16.msra.mxu0 0
        %777 = vmatprep.subr.bf16.mxu0 0
        %778 = vmatpush1.bf16.msra.mxu0 0
        %779 = vmatprep.subr.bf16.mxu0 0
        %780 = vmatpush1.bf16.msra.mxu0 0
        %781 = vmatprep.subr.bf16.mxu0 0
        %782 = vmatpush1.bf16.msra.mxu0 0
        %783 = vmatprep.subr.bf16.mxu0 0
        %784 = vmatpush1.bf16.msra.mxu0 0
        %785 = vmatprep.subr.bf16.mxu0 0
        %786 = vmatpush1.bf16.msra.mxu0 0
        %787 = vmatprep.subr.bf16.mxu0 0
        %788 = vmatpush1.bf16.msra.mxu0 0
        %789 = vmatprep.subr.bf16.mxu0 0
        %790 = vmatpush1.bf16.msra.mxu0 0
        %791 = vmatprep.subr.bf16.mxu0 0
        %792 = vmatpush1.bf16.msra.mxu0 0
        %793 = vmatprep.mubr.bf16.mxu0 0
        %794 = vmatmul.mubr.bf16.gmra.mrb[0].mxu0 %v759
        %v795 = vpop.f32.mrb[0].mxu0
        %v796 = vadd.f32 %v720, %v795
        %v797 = vpop.f32.mrb[0].mxu0
        %v798 = vpop.f32.mrb[0].mxu0
        %v799 = vpop.f32.mrb[0].mxu0
        %800 = vdwg.mxu0
        %v801 = vsel %vm700, %v614, 1.0
        %v802 = vmul.f32 %v796, %v801
        %v803 = vpack.c.bf16 %v802, %v802
        %v804 = vld [vmem:[%s4] sm:$0xf]
        %v805 = vld [vmem:[%s4 + $0x4] sm:$0xf]
        %v806 = vld [vmem:[%s4 + $0x8] sm:$0xf]
        %v807 = vld [vmem:[%s4 + $0xc] sm:$0xf]
        %v808 = vld [vmem:[%s4 + $0x10] sm:$0xf]
        %v809 = vld [vmem:[%s4 + $0x14] sm:$0xf]
        %v816 = vunpack.c.l.b16 %v804
        %v817 = vunpack.c.l.b16 %v805
        %v818 = vunpack.c.l.b16 %v806
        %v819 = vunpack.c.l.b16 %v807
        %v820 = vunpack.c.l.b16 %v808
        %v821 = vunpack.c.l.b16 %v809
        %v822 = vpack.c.b16 %v817, %v816
        %v823 = vpack.c.b16 %v819, %v818
        %v824 = vpack.c.b16 %v821, %v820
        %v826 = vsel %vm628, %v822, 0
        %v829 = vsel %vm628, %v823, 0
        %v832 = vsel %vm628, %v824, 0
        %834 = vmatprep.subr.bf16.mxu0 0
        %835 = vmatpush1.bf16.msra.mxu0 %v637
        %836 = vmatprep.subr.bf16.mxu0 0
        %837 = vmatpush1.bf16.msra.mxu0 0
        %838 = vmatprep.subr.bf16.mxu0 0
        %839 = vmatpush1.bf16.msra.mxu0 0
        %840 = vmatprep.subr.bf16.mxu0 0
        %841 = vmatpush1.bf16.msra.mxu0 0
        %842 = vmatprep.subr.bf16.mxu0 0
        %843 = vmatpush1.bf16.msra.mxu0 0
        %844 = vmatprep.subr.bf16.mxu0 0
        %845 = vmatpush1.bf16.msra.mxu0 0
        %846 = vmatprep.subr.bf16.mxu0 0
        %847 = vmatpush1.bf16.msra.mxu0 0
        %848 = vmatprep.subr.bf16.mxu0 0
        %849 = vmatpush1.bf16.msra.mxu0 0
        %850 = vmatprep.subr.bf16.mxu0 0
        %851 = vmatpush1.bf16.msra.mxu0 0
        %852 = vmatprep.subr.bf16.mxu0 0
        %853 = vmatpush1.bf16.msra.mxu0 0
        %854 = vmatprep.subr.bf16.mxu0 0
        %855 = vmatpush1.bf16.msra.mxu0 0
        %856 = vmatprep.subr.bf16.mxu0 0
        %857 = vmatpush1.bf16.msra.mxu0 0
        %858 = vmatprep.subr.bf16.mxu0 0
        %859 = vmatpush1.bf16.msra.mxu0 0
        %860 = vmatprep.subr.bf16.mxu0 0
        %861 = vmatpush1.bf16.msra.mxu0 0
        %862 = vmatprep.subr.bf16.mxu0 0
        %863 = vmatpush1.bf16.msra.mxu0 0
        %864 = vmatprep.subr.bf16.mxu0 0
        %865 = vmatpush1.bf16.msra.mxu0 0
        %866 = vmatprep.mubr.bf16.mxu0 0
        %867 = vmatmul.mubr.bf16.gmra.mrb[0].mxu0 %v826
        %v868 = vpop.f32.mrb[0].mxu0
        %v869 = vadd.f32 0.0, %v868
        %v870 = vpop.f32.mrb[0].mxu0
        %v871 = vpop.f32.mrb[0].mxu0
        %v872 = vadd.f32 0.0, %v871
        %v873 = vpop.f32.mrb[0].mxu0
        %874 = vmatprep.mubr.bf16.mxu0 0
        %875 = vmatmul.mubr.bf16.gmra.mrb[0].mxu0 %v829
        %v876 = vpop.f32.mrb[0].mxu0
        %v877 = vadd.f32 0.0, %v876
        %v878 = vpop.f32.mrb[0].mxu0
        %v879 = vpop.f32.mrb[0].mxu0
        %v880 = vadd.f32 0.0, %v879
        %v881 = vpop.f32.mrb[0].mxu0
        %882 = vmatprep.mubr.bf16.mxu0 0
        %883 = vmatmul.mubr.bf16.gmra.mrb[0].mxu0 %v832
        %v884 = vpop.f32.mrb[0].mxu0
        %v885 = vadd.f32 0.0, %v884
        %v886 = vpop.f32.mrb[0].mxu0
        %v887 = vpop.f32.mrb[0].mxu0
        %v888 = vadd.f32 0.0, %v887
        %v889 = vpop.f32.mrb[0].mxu0
        %890 = vdwg.mxu0
        %v891 = vpack.c.bf16 %v872, %v869
        %v892 = vpack.c.bf16 %v880, %v877
        %v893 = vpack.c.bf16 %v888, %v885
        %895 = vrot.lane.b32.xlu0 %v892, 32
        %v896 = vpop.permute.xlu0 %895
        %898 = vrot.lane.b32.xlu0 %v893, 64
        %v899 = vpop.permute.xlu0 %898
        %v902 = vsel %vm696, %v891, %v896
        %v904 = vsel %vm700, %v902, %v899
        %v905 = vld [vmem:[%s9] sm:$0xf]
        %v906 = vld [vmem:[%s9 + $0x4] sm:$0xf]
        %v907 = vld [vmem:[%s9 + $0x8] sm:$0xf]
        %v908 = vld [vmem:[%s9 + $0xc] sm:$0xf]
        %v909 = vld [vmem:[%s9 + $0x10] sm:$0xf]
        %v910 = vld [vmem:[%s9 + $0x14] sm:$0xf]
        %v911 = vld [vmem:[%s9 + $0x18] sm:$0xf]
        %v912 = vld [vmem:[%s9 + $0x1c] sm:$0xf]
        %v913 = vld [vmem:[%s9 + $0x20] sm:$0xf]
        %v914 = vld [vmem:[%s9 + $0x24] sm:$0xf]
        %v915 = vld [vmem:[%s9 + $0x28] sm:$0xf]
        %v916 = vld [vmem:[%s9 + $0x2c] sm:$0xf]
        %v917 = vld [vmem:[%s16 + $0x1] sm:$0x1]
        %v919 = vlaneseq
        %v920 = vshrl.u32 %v919, 7
        %v921 = vsub.s32 0, %v920
        %v922 = vrot.slane %v917, %v921
        %v936 = vunpack.c.l.b16 %v905
        %v937 = vunpack.c.l.b16 %v906
        %v938 = vunpack.c.l.b16 %v907
        %v939 = vunpack.c.l.b16 %v908
        %v940 = vunpack.c.l.b16 %v909
        %v941 = vunpack.c.l.b16 %v910
        %v942 = vunpack.c.l.b16 %v911
        %v943 = vunpack.c.l.b16 %v912
        %v944 = vunpack.c.l.b16 %v913
        %v945 = vunpack.c.l.b16 %v914
        %v946 = vunpack.c.l.b16 %v915
        %v947 = vunpack.c.l.b16 %v916
        %v948 = vpack.c.b16 %v937, %v936
        %v949 = vpack.c.b16 %v939, %v938
        %v950 = vpack.c.b16 %v941, %v940
        %v951 = vpack.c.b16 %v943, %v942
        %v952 = vpack.c.b16 %v945, %v944
        %v953 = vpack.c.b16 %v947, %v946
        %v960 = vsel %vm758, %v904, 0
        %962 = vmatprep.subr.bf16.mxu0 0
        %963 = vmatpush1.bf16.msra.mxu0 %v948
        %964 = vmatprep.subr.bf16.mxu0 0
        %965 = vmatpush1.bf16.msra.mxu0 %v949
        %966 = vmatprep.subr.bf16.mxu0 0
        %967 = vmatpush1.bf16.msra.mxu0 %v950
        %968 = vmatprep.subr.bf16.mxu0 0
        %969 = vmatpush1.bf16.msra.mxu0 %v951
        %970 = vmatprep.subr.bf16.mxu0 0
        %971 = vmatpush1.bf16.msra.mxu0 %v952
        %972 = vmatprep.subr.bf16.mxu0 0
        %973 = vmatpush1.bf16.msra.mxu0 %v953
        %974 = vmatprep.subr.bf16.mxu0 0
        %975 = vmatpush1.bf16.msra.mxu0 0
        %976 = vmatprep.subr.bf16.mxu0 0
        %977 = vmatpush1.bf16.msra.mxu0 0
        %978 = vmatprep.subr.bf16.mxu0 0
        %979 = vmatpush1.bf16.msra.mxu0 0
        %980 = vmatprep.subr.bf16.mxu0 0
        %981 = vmatpush1.bf16.msra.mxu0 0
        %982 = vmatprep.subr.bf16.mxu0 0
        %983 = vmatpush1.bf16.msra.mxu0 0
        %984 = vmatprep.subr.bf16.mxu0 0
        %985 = vmatpush1.bf16.msra.mxu0 0
        %986 = vmatprep.subr.bf16.mxu0 0
        %987 = vmatpush1.bf16.msra.mxu0 0
        %988 = vmatprep.subr.bf16.mxu0 0
        %989 = vmatpush1.bf16.msra.mxu0 0
        %990 = vmatprep.subr.bf16.mxu0 0
        %991 = vmatpush1.bf16.msra.mxu0 0
        %992 = vmatprep.subr.bf16.mxu0 0
        %993 = vmatpush1.bf16.msra.mxu0 0
        %994 = vmatprep.mubr.bf16.mxu0 0
        %995 = vmatmul.mubr.bf16.gmra.mrb[0].mxu0 %v960
        %v996 = vpop.f32.mrb[0].mxu0
        %v997 = vadd.f32 %v922, %v996
        %v998 = vpop.f32.mrb[0].mxu0
        %v999 = vpop.f32.mrb[0].mxu0
        %v1000 = vadd.f32 %v922, %v999
        %v1001 = vpop.f32.mrb[0].mxu0
        %1002 = vdwg.mxu0
        %v1003 = vpack.c.bf16 %v614, %v614
        %v1004 = vld [vmem:[%s5] sm:$0xf]
        %v1005 = vld [vmem:[%s5 + $0x4] sm:$0xf]
        %v1006 = vld [vmem:[%s5 + $0x8] sm:$0xf]
        %v1007 = vld [vmem:[%s5 + $0xc] sm:$0xf]
        %v1008 = vld [vmem:[%s5 + $0x10] sm:$0xf]
        %v1009 = vld [vmem:[%s5 + $0x14] sm:$0xf]
        %v1016 = vunpack.c.l.b16 %v1004
        %v1017 = vunpack.c.l.b16 %v1005
        %v1018 = vunpack.c.l.b16 %v1006
        %v1019 = vunpack.c.l.b16 %v1007
        %v1020 = vunpack.c.l.b16 %v1008
        %v1021 = vunpack.c.l.b16 %v1009
        %v1022 = vpack.c.b16 %v1017, %v1016
        %v1023 = vpack.c.b16 %v1019, %v1018
        %v1024 = vpack.c.b16 %v1021, %v1020
        %vm1025 = vcmask 64512
        %v1027 = vsel %vm1025, %v1022, 0
        %v1030 = vsel %vm1025, %v1023, 0
        %v1033 = vsel %vm1025, %v1024, 0
        %vm1035 = vcmask 1043456
        %v1037 = vsel %vm1035, %v1003, 0
        %1039 = vmatprep.subr.bf16.mxu0 0
        %1040 = vmatpush1.bf16.msra.mxu0 %v1037
        %1041 = vmatprep.subr.bf16.mxu0 0
        %1042 = vmatpush1.bf16.msra.mxu0 0
        %1043 = vmatprep.subr.bf16.mxu0 0
        %1044 = vmatpush1.bf16.msra.mxu0 0
        %1045 = vmatprep.subr.bf16.mxu0 0
        %1046 = vmatpush1.bf16.msra.mxu0 0
        %1047 = vmatprep.subr.bf16.mxu0 0
        %1048 = vmatpush1.bf16.msra.mxu0 0
        %1049 = vmatprep.subr.bf16.mxu0 0
        %1050 = vmatpush1.bf16.msra.mxu0 0
        %1051 = vmatprep.subr.bf16.mxu0 0
        %1052 = vmatpush1.bf16.msra.mxu0 0
        %1053 = vmatprep.subr.bf16.mxu0 0
        %1054 = vmatpush1.bf16.msra.mxu0 0
        %1055 = vmatprep.subr.bf16.mxu0 0
        %1056 = vmatpush1.bf16.msra.mxu0 0
        %1057 = vmatprep.subr.bf16.mxu0 0
        %1058 = vmatpush1.bf16.msra.mxu0 0
        %1059 = vmatprep.subr.bf16.mxu0 0
        %1060 = vmatpush1.bf16.msra.mxu0 0
        %1061 = vmatprep.subr.bf16.mxu0 0
        %1062 = vmatpush1.bf16.msra.mxu0 0
        %1063 = vmatprep.subr.bf16.mxu0 0
        %1064 = vmatpush1.bf16.msra.mxu0 0
        %1065 = vmatprep.subr.bf16.mxu0 0
        %1066 = vmatpush1.bf16.msra.mxu0 0
        %1067 = vmatprep.subr.bf16.mxu0 0
        %1068 = vmatpush1.bf16.msra.mxu0 0
        %1069 = vmatprep.subr.bf16.mxu0 0
        %1070 = vmatpush1.bf16.msra.mxu0 0
        %1071 = vmatprep.mubr.bf16.mxu0 0
        %1072 = vmatmul.mubr.bf16.gmra.mrb[0].mxu0 %v1027
        %v1073 = vpop.f32.mrb[0].mxu0
        %v1074 = vadd.f32 0.0, %v1073
        %v1075 = vpop.f32.mrb[0].mxu0
        %v1076 = vpop.f32.mrb[0].mxu0
        %v1077 = vadd.f32 0.0, %v1076
        %v1078 = vpop.f32.mrb[0].mxu0
        %1079 = vmatprep.mubr.bf16.mxu0 0
        %1080 = vmatmul.mubr.bf16.gmra.mrb[0].mxu0 %v1030
        %v1081 = vpop.f32.mrb[0].mxu0
        %v1082 = vadd.f32 0.0, %v1081
        %v1083 = vpop.f32.mrb[0].mxu0
        %v1084 = vpop.f32.mrb[0].mxu0
        %v1085 = vadd.f32 0.0, %v1084
        %v1086 = vpop.f32.mrb[0].mxu0
        %1087 = vmatprep.mubr.bf16.mxu0 0
        %1088 = vmatmul.mubr.bf16.gmra.mrb[0].mxu0 %v1033
        %v1089 = vpop.f32.mrb[0].mxu0
        %v1090 = vadd.f32 0.0, %v1089
        %v1091 = vpop.f32.mrb[0].mxu0
        %v1092 = vpop.f32.mrb[0].mxu0
        %v1093 = vadd.f32 0.0, %v1092
        %v1094 = vpop.f32.mrb[0].mxu0
        %1095 = vdwg.mxu0
        %v1096 = vpack.c.bf16 %v1077, %v1074
        %v1097 = vpack.c.bf16 %v1085, %v1082
        %v1098 = vpack.c.bf16 %v1093, %v1090
        %1100 = vrot.lane.b32.xlu0 %v1097, 64
        %v1101 = vpop.permute.xlu0 %1100
        %v1104 = vsel %vm700, %v1096, %v1101
        %v1106 = vld [vmem:[%s10] sm:$0xf]
        %v1107 = vld [vmem:[%s10 + $0x4] sm:$0xf]
        %v1108 = vld [vmem:[%s10 + $0x8] sm:$0xf]
        %v1109 = vld [vmem:[%s10 + $0xc] sm:$0xf]
        %v1110 = vld [vmem:[%s10 + $0x10] sm:$0xf]
        %v1111 = vld [vmem:[%s10 + $0x14] sm:$0xf]
        %v1112 = vld [vmem:[%s10 + $0x18] sm:$0xf]
        %v1113 = vld [vmem:[%s10 + $0x1c] sm:$0xf]
        %v1114 = vld [vmem:[%s10 + $0x20] sm:$0xf]
        %v1115 = vld [vmem:[%s10 + $0x24] sm:$0xf]
        %v1116 = vld [vmem:[%s10 + $0x28] sm:$0xf]
        %v1117 = vld [vmem:[%s10 + $0x2c] sm:$0xf]
        %v1118 = vld [vmem:[%s10 + $0x30] sm:$0xf]
        %v1119 = vld [vmem:[%s10 + $0x34] sm:$0xf]
        %v1120 = vld [vmem:[%s10 + $0x38] sm:$0xf]
        %v1121 = vld [vmem:[%s10 + $0x3c] sm:$0xf]
        %v1122 = vld [vmem:[%s10 + $0x40] sm:$0xf]
        %v1123 = vld [vmem:[%s10 + $0x44] sm:$0xf]
        %v1124 = vld [vmem:[%s10 + $0x48] sm:$0xf]
        %v1125 = vld [vmem:[%s10 + $0x4c] sm:$0xf]
        %v1126 = vld [vmem:[%s10 + $0x50] sm:$0xf]
        %v1127 = vld [vmem:[%s10 + $0x54] sm:$0xf]
        %v1128 = vld [vmem:[%s10 + $0x58] sm:$0xf]
        %v1129 = vld [vmem:[%s10 + $0x5c] sm:$0xf]
        %v1130 = vld [vmem:[%s16 + $0x2] sm:$0x1]
        %v1132 = vlaneseq
        %v1133 = vshrl.u32 %v1132, 7
        %v1134 = vsub.s32 0, %v1133
        %v1135 = vrot.slane %v1130, %v1134
        %v1161 = vunpack.c.l.b16 %v1106
        %v1162 = vunpack.c.l.b16 %v1107
        %v1163 = vunpack.c.l.b16 %v1108
        %v1164 = vunpack.c.l.b16 %v1109
        %v1165 = vunpack.c.l.b16 %v1110
        %v1166 = vunpack.c.l.b16 %v1111
        %v1167 = vunpack.c.l.b16 %v1112
        %v1168 = vunpack.c.l.b16 %v1113
        %v1169 = vunpack.c.l.b16 %v1114
        %v1170 = vunpack.c.l.b16 %v1115
        %v1171 = vunpack.c.l.b16 %v1116
        %v1172 = vunpack.c.l.b16 %v1117
        %v1173 = vunpack.c.l.b16 %v1118
        %v1174 = vunpack.c.l.b16 %v1119
        %v1175 = vunpack.c.l.b16 %v1120
        %v1176 = vunpack.c.l.b16 %v1121
        %v1177 = vunpack.c.l.b16 %v1122
        %v1178 = vunpack.c.l.b16 %v1123
        %v1179 = vunpack.c.l.b16 %v1124
        %v1180 = vunpack.c.l.b16 %v1125
        %v1181 = vunpack.c.l.b16 %v1126
        %v1182 = vunpack.c.l.b16 %v1127
        %v1183 = vunpack.c.l.b16 %v1128
        %v1184 = vunpack.c.l.b16 %v1129
        %v1185 = vpack.c.b16 %v1162, %v1161
        %v1186 = vpack.c.b16 %v1164, %v1163
        %v1187 = vpack.c.b16 %v1166, %v1165
        %v1188 = vpack.c.b16 %v1168, %v1167
        %v1189 = vpack.c.b16 %v1170, %v1169
        %v1190 = vpack.c.b16 %v1172, %v1171
        %v1191 = vpack.c.b16 %v1174, %v1173
        %v1192 = vpack.c.b16 %v1176, %v1175
        %v1193 = vpack.c.b16 %v1178, %v1177
        %v1194 = vpack.c.b16 %v1180, %v1179
        %v1195 = vpack.c.b16 %v1182, %v1181
        %v1196 = vpack.c.b16 %v1184, %v1183
        %v1210 = vsel %vm700, %v1098, 0
        %1212 = vmatprep.subr.bf16.mxu0 0
        %1213 = vmatpush1.bf16.msra.mxu0 %v1185
        %1214 = vmatprep.subr.bf16.mxu0 0
        %1215 = vmatpush1.bf16.msra.mxu0 %v1186
        %1216 = vmatprep.subr.bf16.mxu0 0
        %1217 = vmatpush1.bf16.msra.mxu0 %v1187
        %1218 = vmatprep.subr.bf16.mxu0 0
        %1219 = vmatpush1.bf16.msra.mxu0 %v1188
        %1220 = vmatprep.subr.bf16.mxu0 0
        %1221 = vmatpush1.bf16.msra.mxu0 %v1189
        %1222 = vmatprep.subr.bf16.mxu0 0
        %1223 = vmatpush1.bf16.msra.mxu0 %v1190
        %1224 = vmatprep.subr.bf16.mxu0 0
        %1225 = vmatpush1.bf16.msra.mxu0 %v1191
        %1226 = vmatprep.subr.bf16.mxu0 0
        %1227 = vmatpush1.bf16.msra.mxu0 %v1192
        %1228 = vmatprep.subr.bf16.mxu0 0
        %1229 = vmatpush1.bf16.msra.mxu0 %v1193
        %1230 = vmatprep.subr.bf16.mxu0 0
        %1231 = vmatpush1.bf16.msra.mxu0 %v1194
        %1232 = vmatprep.subr.bf16.mxu0 0
        %1233 = vmatpush1.bf16.msra.mxu0 %v1195
        %1234 = vmatprep.subr.bf16.mxu0 0
        %1235 = vmatpush1.bf16.msra.mxu0 %v1196
        %1236 = vmatprep.subr.bf16.mxu0 0
        %1237 = vmatpush1.bf16.msra.mxu0 0
        %1238 = vmatprep.subr.bf16.mxu0 0
        %1239 = vmatpush1.bf16.msra.mxu0 0
        %1240 = vmatprep.subr.bf16.mxu0 0
        %1241 = vmatpush1.bf16.msra.mxu0 0
        %1242 = vmatprep.subr.bf16.mxu0 0
        %1243 = vmatpush1.bf16.msra.mxu0 0
        %1244 = vmatprep.mubr.bf16.mxu0 %v1210
        %1245 = vmatmul.mubr.bf16.gmra.mrb[0].mxu0 %v1104
        %v1246 = vpop.f32.mrb[0].mxu0
        %v1247 = vadd.f32 %v1135, %v1246
        %v1248 = vpop.f32.mrb[0].mxu0
        %v1249 = vpop.f32.mrb[0].mxu0
        %v1250 = vadd.f32 %v1135, %v1249
        %v1251 = vpop.f32.mrb[0].mxu0
        %1252 = vdwg.mxu0
        %v1253 = vmul.f32 %v997, %v1247
        %v1254 = vmul.f32 %v1000, %v1250
        %v1255 = vmul.f32 %v1253, %v615
        %v1256 = vmul.f32 %v1254, %v616
        %v1257 = vld [vmem:[%s6] sm:$0xf]
        %v1258 = vld [vmem:[%s6 + $0x4] sm:$0xf]
        %v1259 = vld [vmem:[%s6 + $0x8] sm:$0xf]
        %v1263 = vunpack.c.l.b16 %v1257
        %v1264 = vunpack.c.l.b16 %v1258
        %v1265 = vunpack.c.l.b16 %v1259
        %v1266 = vpack.c.b16 %v1264, %v1263
        %v1267 = vpack.c.b16 %v1265, %v1265
        %v1269 = vsel %vm1025, %v1266, 0
        %v1272 = vsel %vm1025, %v1267, 0
        %v1275 = vsel %vm1035, %v803, 0
        %1277 = vmatprep.subr.bf16.mxu0 0
        %1278 = vmatpush1.bf16.msra.mxu0 %v1275
        %1279 = vmatprep.subr.bf16.mxu0 0
        %1280 = vmatpush1.bf16.msra.mxu0 0
        %1281 = vmatprep.subr.bf16.mxu0 0
        %1282 = vmatpush1.bf16.msra.mxu0 0
        %1283 = vmatprep.subr.bf16.mxu0 0
        %1284 = vmatpush1.bf16.msra.mxu0 0
        %1285 = vmatprep.subr.bf16.mxu0 0
        %1286 = vmatpush1.bf16.msra.mxu0 0
        %1287 = vmatprep.subr.bf16.mxu0 0
        %1288 = vmatpush1.bf16.msra.mxu0 0
        %1289 = vmatprep.subr.bf16.mxu0 0
        %1290 = vmatpush1.bf16.msra.mxu0 0
        %1291 = vmatprep.subr.bf16.mxu0 0
        %1292 = vmatpush1.bf16.msra.mxu0 0
        %1293 = vmatprep.subr.bf16.mxu0 0
        %1294 = vmatpush1.bf16.msra.mxu0 0
        %1295 = vmatprep.subr.bf16.mxu0 0
        %1296 = vmatpush1.bf16.msra.mxu0 0
        %1297 = vmatprep.subr.bf16.mxu0 0
        %1298 = vmatpush1.bf16.msra.mxu0 0
        %1299 = vmatprep.subr.bf16.mxu0 0
        %1300 = vmatpush1.bf16.msra.mxu0 0
        %1301 = vmatprep.subr.bf16.mxu0 0
        %1302 = vmatpush1.bf16.msra.mxu0 0
        %1303 = vmatprep.subr.bf16.mxu0 0
        %1304 = vmatpush1.bf16.msra.mxu0 0
        %1305 = vmatprep.subr.bf16.mxu0 0
        %1306 = vmatpush1.bf16.msra.mxu0 0
        %1307 = vmatprep.subr.bf16.mxu0 0
        %1308 = vmatpush1.bf16.msra.mxu0 0
        %1309 = vmatprep.mubr.bf16.mxu0 0
        %1310 = vmatmul.mubr.bf16.gmra.mrb[0].mxu0 %v1269
        %v1311 = vpop.f32.mrb[0].mxu0
        %v1312 = vadd.f32 0.0, %v1311
        %v1313 = vpop.f32.mrb[0].mxu0
        %v1314 = vpop.f32.mrb[0].mxu0
        %v1315 = vadd.f32 0.0, %v1314
        %v1316 = vpop.f32.mrb[0].mxu0
        %1317 = vmatprep.mubr.bf16.mxu0 0
        %1318 = vmatmul.mubr.bf16.gmra.mrb[0].mxu0 %v1272
        %v1319 = vpop.f32.mrb[0].mxu0
        %v1320 = vadd.f32 0.0, %v1319
        %v1321 = vpop.f32.mrb[0].mxu0
        %v1322 = vpop.f32.mrb[0].mxu0
        %v1323 = vpop.f32.mrb[0].mxu0
        %1324 = vdwg.mxu0
        %v1325 = vpack.c.bf16 %v1315, %v1312
        %v1326 = vpack.c.bf16 %v1320, %v1320
        %v1328 = vrot.slane %v1325, 4
        %v1330 = vld [vmem:[%s11] sm:$0xf]
        %v1331 = vld [vmem:[%s11 + $0x4] sm:$0xf]
        %v1332 = vld [vmem:[%s11 + $0x8] sm:$0xf]
        %v1333 = vld [vmem:[%s11 + $0xc] sm:$0xf]
        %v1334 = vld [vmem:[%s11 + $0x10] sm:$0xf]
        %v1335 = vld [vmem:[%s11 + $0x14] sm:$0xf]
        %v1336 = vld [vmem:[%s11 + $0x18] sm:$0xf]
        %v1337 = vld [vmem:[%s11 + $0x1c] sm:$0xf]
        %v1338 = vld [vmem:[%s11 + $0x20] sm:$0xf]
        %v1339 = vld [vmem:[%s11 + $0x24] sm:$0xf]
        %v1340 = vld [vmem:[%s11 + $0x28] sm:$0xf]
        %v1341 = vld [vmem:[%s11 + $0x2c] sm:$0xf]
        %v1342 = vld [vmem:[%s11 + $0x30] sm:$0xf]
        %v1343 = vld [vmem:[%s11 + $0x34] sm:$0xf]
        %v1344 = vld [vmem:[%s11 + $0x38] sm:$0xf]
        %v1345 = vld [vmem:[%s11 + $0x3c] sm:$0xf]
        %v1346 = vld [vmem:[%s11 + $0x40] sm:$0xf]
        %v1347 = vld [vmem:[%s11 + $0x44] sm:$0xf]
        %v1348 = vld [vmem:[%s11 + $0x48] sm:$0xf]
        %v1349 = vld [vmem:[%s11 + $0x4c] sm:$0xf]
        %v1350 = vld [vmem:[%s11 + $0x50] sm:$0xf]
        %v1351 = vld [vmem:[%s11 + $0x54] sm:$0xf]
        %v1352 = vld [vmem:[%s11 + $0x58] sm:$0xf]
        %v1353 = vld [vmem:[%s11 + $0x5c] sm:$0xf]
        %v1354 = vld [vmem:[%s11 + $0x60] sm:$0xf]
        %v1355 = vld [vmem:[%s11 + $0x64] sm:$0xf]
        %v1356 = vld [vmem:[%s11 + $0x68] sm:$0xf]
        %v1357 = vld [vmem:[%s11 + $0x6c] sm:$0xf]
        %v1358 = vld [vmem:[%s11 + $0x70] sm:$0xf]
        %v1359 = vld [vmem:[%s11 + $0x74] sm:$0xf]
        %v1360 = vld [vmem:[%s11 + $0x78] sm:$0xf]
        %v1361 = vld [vmem:[%s11 + $0x7c] sm:$0xf]
        %v1362 = vld [vmem:[%s11 + $0x80] sm:$0xf]
        %v1363 = vld [vmem:[%s11 + $0x84] sm:$0xf]
        %v1364 = vld [vmem:[%s11 + $0x88] sm:$0xf]
        %v1365 = vld [vmem:[%s11 + $0x8c] sm:$0xf]
        %v1366 = vld [vmem:[%s11 + $0x90] sm:$0xf]
        %v1367 = vld [vmem:[%s11 + $0x94] sm:$0xf]
        %v1368 = vld [vmem:[%s11 + $0x98] sm:$0xf]
        %v1369 = vld [vmem:[%s11 + $0x9c] sm:$0xf]
        %v1370 = vld [vmem:[%s11 + $0xa0] sm:$0xf]
        %v1371 = vld [vmem:[%s11 + $0xa4] sm:$0xf]
        %v1372 = vld [vmem:[%s11 + $0xa8] sm:$0xf]
        %v1373 = vld [vmem:[%s11 + $0xac] sm:$0xf]
        %v1374 = vld [vmem:[%s11 + $0xb0] sm:$0xf]
        %v1375 = vld [vmem:[%s11 + $0xb4] sm:$0xf]
        %v1376 = vld [vmem:[%s11 + $0xb8] sm:$0xf]
        %v1377 = vld [vmem:[%s11 + $0xbc] sm:$0xf]
        %v1378 = vld [vmem:[%s16 + $0x3] sm:$0x1]
        %v1380 = vlaneseq
        %v1381 = vshrl.u32 %v1380, 7
        %v1382 = vsub.s32 0, %v1381
        %v1383 = vrot.slane %v1378, %v1382
        %v1433 = vunpack.c.l.b16 %v1330
        %v1434 = vunpack.c.l.b16 %v1331
        %v1435 = vunpack.c.l.b16 %v1332
        %v1436 = vunpack.c.l.b16 %v1333
        %v1437 = vunpack.c.l.b16 %v1334
        %v1438 = vunpack.c.l.b16 %v1335
        %v1439 = vunpack.c.l.b16 %v1336
        %v1440 = vunpack.c.l.b16 %v1337
        %v1441 = vunpack.c.l.b16 %v1338
        %v1442 = vunpack.c.l.b16 %v1339
        %v1443 = vunpack.c.l.b16 %v1340
        %v1444 = vunpack.c.l.b16 %v1341
        %v1445 = vunpack.c.l.b16 %v1342
        %v1446 = vunpack.c.l.b16 %v1343
        %v1447 = vunpack.c.l.b16 %v1344
        %v1448 = vunpack.c.l.b16 %v1345
        %v1449 = vunpack.c.l.b16 %v1346
        %v1450 = vunpack.c.l.b16 %v1347
        %v1451 = vunpack.c.l.b16 %v1348
        %v1452 = vunpack.c.l.b16 %v1349
        %v1453 = vunpack.c.l.b16 %v1350
        %v1454 = vunpack.c.l.b16 %v1351
        %v1455 = vunpack.c.l.b16 %v1352
        %v1456 = vunpack.c.l.b16 %v1353
        %v1457 = vunpack.c.l.b16 %v1354
        %v1458 = vunpack.c.l.b16 %v1355
        %v1459 = vunpack.c.l.b16 %v1356
        %v1460 = vunpack.c.l.b16 %v1357
        %v1461 = vunpack.c.l.b16 %v1358
        %v1462 = vunpack.c.l.b16 %v1359
        %v1463 = vunpack.c.l.b16 %v1360
        %v1464 = vunpack.c.l.b16 %v1361
        %v1465 = vunpack.c.l.b16 %v1362
        %v1466 = vunpack.c.l.b16 %v1363
        %v1467 = vunpack.c.l.b16 %v1364
        %v1468 = vunpack.c.l.b16 %v1365
        %v1469 = vunpack.c.l.b16 %v1366
        %v1470 = vunpack.c.l.b16 %v1367
        %v1471 = vunpack.c.l.b16 %v1368
        %v1472 = vunpack.c.l.b16 %v1369
        %v1473 = vunpack.c.l.b16 %v1370
        %v1474 = vunpack.c.l.b16 %v1371
        %v1475 = vunpack.c.l.b16 %v1372
        %v1476 = vunpack.c.l.b16 %v1373
        %v1477 = vunpack.c.l.b16 %v1374
        %v1478 = vunpack.c.l.b16 %v1375
        %v1479 = vunpack.c.l.b16 %v1376
        %v1480 = vunpack.c.l.b16 %v1377
        %v1481 = vpack.c.b16 %v1434, %v1433
        %v1482 = vpack.c.b16 %v1436, %v1435
        %v1483 = vpack.c.b16 %v1438, %v1437
        %v1484 = vpack.c.b16 %v1440, %v1439
        %v1485 = vpack.c.b16 %v1442, %v1441
        %v1486 = vpack.c.b16 %v1444, %v1443
        %v1487 = vpack.c.b16 %v1446, %v1445
        %v1488 = vpack.c.b16 %v1448, %v1447
        %v1489 = vpack.c.b16 %v1450, %v1449
        %v1490 = vpack.c.b16 %v1452, %v1451
        %v1491 = vpack.c.b16 %v1454, %v1453
        %v1492 = vpack.c.b16 %v1456, %v1455
        %v1493 = vpack.c.b16 %v1458, %v1457
        %v1494 = vpack.c.b16 %v1460, %v1459
        %v1495 = vpack.c.b16 %v1462, %v1461
        %v1496 = vpack.c.b16 %v1464, %v1463
        %v1497 = vpack.c.b16 %v1466, %v1465
        %v1498 = vpack.c.b16 %v1468, %v1467
        %v1499 = vpack.c.b16 %v1470, %v1469
        %v1500 = vpack.c.b16 %v1472, %v1471
        %v1501 = vpack.c.b16 %v1474, %v1473
        %v1502 = vpack.c.b16 %v1476, %v1475
        %v1503 = vpack.c.b16 %v1478, %v1477
        %v1504 = vpack.c.b16 %v1480, %v1479
        %1529 = vmatprep.subr.bf16.mxu0 0
        %1530 = vmatpush1.bf16.msra.mxu0 %v1481
        %1531 = vmatprep.subr.bf16.mxu0 0
        %1532 = vmatpush1.bf16.msra.mxu0 %v1482
        %1533 = vmatprep.subr.bf16.mxu0 0
        %1534 = vmatpush1.bf16.msra.mxu0 %v1483
        %1535 = vmatprep.subr.bf16.mxu0 0
        %1536 = vmatpush1.bf16.msra.mxu0 %v1484
        %1537 = vmatprep.subr.bf16.mxu0 0
        %1538 = vmatpush1.bf16.msra.mxu0 %v1485
        %1539 = vmatprep.subr.bf16.mxu0 0
        %1540 = vmatpush1.bf16.msra.mxu0 %v1486
        %1541 = vmatprep.subr.bf16.mxu0 0
        %1542 = vmatpush1.bf16.msra.mxu0 %v1487
        %1543 = vmatprep.subr.bf16.mxu0 0
        %1544 = vmatpush1.bf16.msra.mxu0 %v1488
        %1545 = vmatprep.subr.bf16.mxu0 0
        %1546 = vmatpush1.bf16.msra.mxu0 %v1489
        %1547 = vmatprep.subr.bf16.mxu0 0
        %1548 = vmatpush1.bf16.msra.mxu0 %v1490
        %1549 = vmatprep.subr.bf16.mxu0 0
        %1550 = vmatpush1.bf16.msra.mxu0 %v1491
        %1551 = vmatprep.subr.bf16.mxu0 0
        %1552 = vmatpush1.bf16.msra.mxu0 %v1492
        %1553 = vmatprep.subr.bf16.mxu0 0
        %1554 = vmatpush1.bf16.msra.mxu0 %v1493
        %1555 = vmatprep.subr.bf16.mxu0 0
        %1556 = vmatpush1.bf16.msra.mxu0 %v1494
        %1557 = vmatprep.subr.bf16.mxu0 0
        %1558 = vmatpush1.bf16.msra.mxu0 %v1495
        %1559 = vmatprep.subr.bf16.mxu0 0
        %1560 = vmatpush1.bf16.msra.mxu0 %v1496
        %1561 = vmatprep.mubr.bf16.mxu0 %v1328
        %1562 = vmatmul.mubr.bf16.gmra.mrb[0].mxu0 %v1325
        %v1563 = vpop.f32.mrb[0].mxu0
        %v1564 = vadd.f32 %v1383, %v1563
        %v1565 = vpop.f32.mrb[0].mxu0
        %v1566 = vpop.f32.mrb[0].mxu0
        %v1567 = vpop.f32.mrb[0].mxu0
        %1568 = vdwg.mxu0
        %1569 = vmatprep.subr.bf16.mxu0 0
        %1570 = vmatpush1.bf16.msra.mxu0 %v1497
        %1571 = vmatprep.subr.bf16.mxu0 0
        %1572 = vmatpush1.bf16.msra.mxu0 %v1498
        %1573 = vmatprep.subr.bf16.mxu0 0
        %1574 = vmatpush1.bf16.msra.mxu0 %v1499
        %1575 = vmatprep.subr.bf16.mxu0 0
        %1576 = vmatpush1.bf16.msra.mxu0 %v1500
        %1577 = vmatprep.subr.bf16.mxu0 0
        %1578 = vmatpush1.bf16.msra.mxu0 %v1501
        %1579 = vmatprep.subr.bf16.mxu0 0
        %1580 = vmatpush1.bf16.msra.mxu0 %v1502
        %1581 = vmatprep.subr.bf16.mxu0 0
        %1582 = vmatpush1.bf16.msra.mxu0 %v1503
        %1583 = vmatprep.subr.bf16.mxu0 0
        %1584 = vmatpush1.bf16.msra.mxu0 %v1504
        %1585 = vmatprep.subr.bf16.mxu0 0
        %1586 = vmatpush1.bf16.msra.mxu0 0
        %1587 = vmatprep.subr.bf16.mxu0 0
        %1588 = vmatpush1.bf16.msra.mxu0 0
        %1589 = vmatprep.subr.bf16.mxu0 0
        %1590 = vmatpush1.bf16.msra.mxu0 0
        %1591 = vmatprep.subr.bf16.mxu0 0
        %1592 = vmatpush1.bf16.msra.mxu0 0
        %1593 = vmatprep.subr.bf16.mxu0 0
        %1594 = vmatpush1.bf16.msra.mxu0 0
        %1595 = vmatprep.subr.bf16.mxu0 0
        %1596 = vmatpush1.bf16.msra.mxu0 0
        %1597 = vmatprep.subr.bf16.mxu0 0
        %1598 = vmatpush1.bf16.msra.mxu0 0
        %1599 = vmatprep.subr.bf16.mxu0 0
        %1600 = vmatpush1.bf16.msra.mxu0 0
        %1601 = vmatprep.mubr.bf16.mxu0 0
        %1602 = vmatmul.mubr.bf16.gmra.mrb[0].mxu0 %v1326
        %v1603 = vpop.f32.mrb[0].mxu0
        %v1604 = vadd.f32 %v1564, %v1603
        %v1605 = vpop.f32.mrb[0].mxu0
        %v1606 = vpop.f32.mrb[0].mxu0
        %v1607 = vpop.f32.mrb[0].mxu0
        %1608 = vdwg.mxu0
        %v1609 = vpack.c.bf16 %v1604, %v1604
        %v1611 = vsel %vm1035, %v1609, 0
        %1613 = vmatprep.subr.bf16.mxu0 0
        %1614 = vmatpush1.bf16.msra.mxu0 %v1611
        %1615 = vmatprep.subr.bf16.mxu0 0
        %1616 = vmatpush1.bf16.msra.mxu0 0
        %1617 = vmatprep.subr.bf16.mxu0 0
        %1618 = vmatpush1.bf16.msra.mxu0 0
        %1619 = vmatprep.subr.bf16.mxu0 0
        %1620 = vmatpush1.bf16.msra.mxu0 0
        %1621 = vmatprep.subr.bf16.mxu0 0
        %1622 = vmatpush1.bf16.msra.mxu0 0
        %1623 = vmatprep.subr.bf16.mxu0 0
        %1624 = vmatpush1.bf16.msra.mxu0 0
        %1625 = vmatprep.subr.bf16.mxu0 0
        %1626 = vmatpush1.bf16.msra.mxu0 0
        %1627 = vmatprep.subr.bf16.mxu0 0
        %1628 = vmatpush1.bf16.msra.mxu0 0
        %1629 = vmatprep.subr.bf16.mxu0 0
        %1630 = vmatpush1.bf16.msra.mxu0 0
        %1631 = vmatprep.subr.bf16.mxu0 0
        %1632 = vmatpush1.bf16.msra.mxu0 0
        %1633 = vmatprep.subr.bf16.mxu0 0
        %1634 = vmatpush1.bf16.msra.mxu0 0
        %1635 = vmatprep.subr.bf16.mxu0 0
        %1636 = vmatpush1.bf16.msra.mxu0 0
        %1637 = vmatprep.subr.bf16.mxu0 0
        %1638 = vmatpush1.bf16.msra.mxu0 0
        %1639 = vmatprep.subr.bf16.mxu0 0
        %1640 = vmatpush1.bf16.msra.mxu0 0
        %1641 = vmatprep.subr.bf16.mxu0 0
        %1642 = vmatpush1.bf16.msra.mxu0 0
        %1643 = vmatprep.subr.bf16.mxu0 0
        %1644 = vmatpush1.bf16.msra.mxu0 0
        %1645 = vmatprep.mubr.bf16.mxu0 0
        %1646 = vmatmul.mubr.bf16.gmra.mrb[0].mxu0 %v1027
        %v1647 = vpop.f32.mrb[0].mxu0
        %v1648 = vadd.f32 0.0, %v1647
        %v1649 = vpop.f32.mrb[0].mxu0
        %v1650 = vpop.f32.mrb[0].mxu0
        %v1651 = vadd.f32 0.0, %v1650
        %v1652 = vpop.f32.mrb[0].mxu0
        %1653 = vmatprep.mubr.bf16.mxu0 0
        %1654 = vmatmul.mubr.bf16.gmra.mrb[0].mxu0 %v1030
        %v1655 = vpop.f32.mrb[0].mxu0
        %v1656 = vadd.f32 0.0, %v1655
        %v1657 = vpop.f32.mrb[0].mxu0
        %v1658 = vpop.f32.mrb[0].mxu0
        %v1659 = vadd.f32 0.0, %v1658
        %v1660 = vpop.f32.mrb[0].mxu0
        %1661 = vmatprep.mubr.bf16.mxu0 0
        %1662 = vmatmul.mubr.bf16.gmra.mrb[0].mxu0 %v1033
        %v1663 = vpop.f32.mrb[0].mxu0
        %v1664 = vadd.f32 0.0, %v1663
        %v1665 = vpop.f32.mrb[0].mxu0
        %v1666 = vpop.f32.mrb[0].mxu0
        %v1667 = vadd.f32 0.0, %v1666
        %v1668 = vpop.f32.mrb[0].mxu0
        %1669 = vdwg.mxu0
        %v1670 = vpack.c.bf16 %v1651, %v1648
        %v1671 = vpack.c.bf16 %v1659, %v1656
        %v1672 = vpack.c.bf16 %v1667, %v1664
        %v1673 = vld [vmem:[%s12] sm:$0xff]
        %v1674 = vld [vmem:[%s12 + $0x8] sm:$0xff]
        %v1675 = vld [vmem:[%s12 + $0x10] sm:$0xff]
        %v1676 = vld [vmem:[%s12 + $0x18] sm:$0xff]
        %v1677 = vld [vmem:[%s12 + $0x20] sm:$0xff]
        %v1678 = vld [vmem:[%s12 + $0x28] sm:$0xff]
        %v1679 = vld [vmem:[%s12 + $0x30] sm:$0xff]
        %v1680 = vld [vmem:[%s12 + $0x38] sm:$0xff]
        %v1681 = vld [vmem:[%s12 + $0x40] sm:$0xff]
        %v1682 = vld [vmem:[%s12 + $0x48] sm:$0xff]
        %v1683 = vld [vmem:[%s12 + $0x50] sm:$0xff]
        %v1684 = vld [vmem:[%s12 + $0x58] sm:$0xff]
        %v1685 = vld [vmem:[%s12 + $0x60] sm:$0xff]
        %v1686 = vld [vmem:[%s12 + $0x68] sm:$0xff]
        %v1687 = vld [vmem:[%s12 + $0x70] sm:$0xff]
        %v1688 = vld [vmem:[%s12 + $0x78] sm:$0xff]
        %v1689 = vld [vmem:[%s12 + $0x80] sm:$0xff]
        %v1690 = vld [vmem:[%s12 + $0x88] sm:$0xff]
        %v1691 = vld [vmem:[%s12 + $0x90] sm:$0xff]
        %v1692 = vld [vmem:[%s12 + $0x98] sm:$0xff]
        %v1693 = vld [vmem:[%s12 + $0xa0] sm:$0xff]
        %v1694 = vld [vmem:[%s12 + $0xa8] sm:$0xff]
        %v1695 = vld [vmem:[%s12 + $0xb0] sm:$0xff]
        %v1696 = vld [vmem:[%s12 + $0xb8] sm:$0xff]
        %v1697 = vld [vmem:[%s12 + $0xc0] sm:$0xff]
        %v1698 = vld [vmem:[%s12 + $0xc8] sm:$0xff]
        %v1699 = vld [vmem:[%s12 + $0xd0] sm:$0xff]
        %v1700 = vld [vmem:[%s12 + $0xd8] sm:$0xff]
        %v1701 = vld [vmem:[%s12 + $0xe0] sm:$0xff]
        %v1702 = vld [vmem:[%s12 + $0xe8] sm:$0xff]
        %v1703 = vld [vmem:[%s12 + $0xf0] sm:$0xff]
        %v1704 = vld [vmem:[%s12 + $0xf8] sm:$0xff]
        %v1705 = vld [vmem:[%s12 + $0x100] sm:$0xff]
        %v1706 = vld [vmem:[%s12 + $0x108] sm:$0xff]
        %v1707 = vld [vmem:[%s12 + $0x110] sm:$0xff]
        %v1708 = vld [vmem:[%s12 + $0x118] sm:$0xff]
        %v1709 = vld [vmem:[%s12 + $0x120] sm:$0xff]
        %v1710 = vld [vmem:[%s12 + $0x128] sm:$0xff]
        %v1711 = vld [vmem:[%s12 + $0x130] sm:$0xff]
        %v1712 = vld [vmem:[%s12 + $0x138] sm:$0xff]
        %v1713 = vld [vmem:[%s12 + $0x140] sm:$0xff]
        %v1714 = vld [vmem:[%s12 + $0x148] sm:$0xff]
        %v1715 = vld [vmem:[%s12 + $0x150] sm:$0xff]
        %v1716 = vld [vmem:[%s12 + $0x158] sm:$0xff]
        %v1717 = vld [vmem:[%s12 + $0x160] sm:$0xff]
        %v1718 = vld [vmem:[%s12 + $0x168] sm:$0xff]
        %v1719 = vld [vmem:[%s12 + $0x170] sm:$0xff]
        %v1720 = vld [vmem:[%s12 + $0x178] sm:$0xff]
        %v1721 = vld [vmem:[%s16 + $0x4] sm:$0x3]
        %v1723 = vlaneseq
        %v1724 = vshrl.u32 %v1723, 7
        %v1725 = vsub.s32 0, %v1724
        %v1726 = vrot.slane %v1721, %v1725
        %v1727 = vlaneseq
        %v1728 = vshrl.u32 %v1727, 7
        %v1729 = vsub.s32 1, %v1728
        %v1730 = vrot.slane %v1721, %v1729
        %v1781 = vunpack.c.l.b16 %v1673
        %v1782 = vunpack.c.h.b16 %v1673
        %v1783 = vunpack.c.l.b16 %v1674
        %v1784 = vunpack.c.h.b16 %v1674
        %v1785 = vunpack.c.l.b16 %v1675
        %v1786 = vunpack.c.h.b16 %v1675
        %v1787 = vunpack.c.l.b16 %v1676
        %v1788 = vunpack.c.h.b16 %v1676
        %v1789 = vunpack.c.l.b16 %v1677
        %v1790 = vunpack.c.h.b16 %v1677
        %v1791 = vunpack.c.l.b16 %v1678
        %v1792 = vunpack.c.h.b16 %v1678
        %v1793 = vunpack.c.l.b16 %v1679
        %v1794 = vunpack.c.h.b16 %v1679
        %v1795 = vunpack.c.l.b16 %v1680
        %v1796 = vunpack.c.h.b16 %v1680
        %v1797 = vunpack.c.l.b16 %v1681
        %v1798 = vunpack.c.h.b16 %v1681
        %v1799 = vunpack.c.l.b16 %v1682
        %v1800 = vunpack.c.h.b16 %v1682
        %v1801 = vunpack.c.l.b16 %v1683
        %v1802 = vunpack.c.h.b16 %v1683
        %v1803 = vunpack.c.l.b16 %v1684
        %v1804 = vunpack.c.h.b16 %v1684
        %v1805 = vunpack.c.l.b16 %v1685
        %v1806 = vunpack.c.h.b16 %v1685
        %v1807 = vunpack.c.l.b16 %v1686
        %v1808 = vunpack.c.h.b16 %v1686
        %v1809 = vunpack.c.l.b16 %v1687
        %v1810 = vunpack.c.h.b16 %v1687
        %v1811 = vunpack.c.l.b16 %v1688
        %v1812 = vunpack.c.h.b16 %v1688
        %v1813 = vunpack.c.l.b16 %v1689
        %v1814 = vunpack.c.h.b16 %v1689
        %v1815 = vunpack.c.l.b16 %v1690
        %v1816 = vunpack.c.h.b16 %v1690
        %v1817 = vunpack.c.l.b16 %v1691
        %v1818 = vunpack.c.h.b16 %v1691
        %v1819 = vunpack.c.l.b16 %v1692
        %v1820 = vunpack.c.h.b16 %v1692
        %v1821 = vunpack.c.l.b16 %v1693
        %v1822 = vunpack.c.h.b16 %v1693
        %v1823 = vunpack.c.l.b16 %v1694
        %v1824 = vunpack.c.h.b16 %v1694
        %v1825 = vunpack.c.l.b16 %v1695
        %v1826 = vunpack.c.h.b16 %v1695
        %v1827 = vunpack.c.l.b16 %v1696
        %v1828 = vunpack.c.h.b16 %v1696
        %v1829 = vunpack.c.l.b16 %v1697
        %v1830 = vunpack.c.h.b16 %v1697
        %v1831 = vunpack.c.l.b16 %v1698
        %v1832 = vunpack.c.h.b16 %v1698
        %v1833 = vunpack.c.l.b16 %v1699
        %v1834 = vunpack.c.h.b16 %v1699
        %v1835 = vunpack.c.l.b16 %v1700
        %v1836 = vunpack.c.h.b16 %v1700
        %v1837 = vunpack.c.l.b16 %v1701
        %v1838 = vunpack.c.h.b16 %v1701
        %v1839 = vunpack.c.l.b16 %v1702
        %v1840 = vunpack.c.h.b16 %v1702
        %v1841 = vunpack.c.l.b16 %v1703
        %v1842 = vunpack.c.h.b16 %v1703
        %v1843 = vunpack.c.l.b16 %v1704
        %v1844 = vunpack.c.h.b16 %v1704
        %v1845 = vunpack.c.l.b16 %v1705
        %v1846 = vunpack.c.h.b16 %v1705
        %v1847 = vunpack.c.l.b16 %v1706
        %v1848 = vunpack.c.h.b16 %v1706
        %v1849 = vunpack.c.l.b16 %v1707
        %v1850 = vunpack.c.h.b16 %v1707
        %v1851 = vunpack.c.l.b16 %v1708
        %v1852 = vunpack.c.h.b16 %v1708
        %v1853 = vunpack.c.l.b16 %v1709
        %v1854 = vunpack.c.h.b16 %v1709
        %v1855 = vunpack.c.l.b16 %v1710
        %v1856 = vunpack.c.h.b16 %v1710
        %v1857 = vunpack.c.l.b16 %v1711
        %v1858 = vunpack.c.h.b16 %v1711
        %v1859 = vunpack.c.l.b16 %v1712
        %v1860 = vunpack.c.h.b16 %v1712
        %v1861 = vunpack.c.l.b16 %v1713
        %v1862 = vunpack.c.h.b16 %v1713
        %v1863 = vunpack.c.l.b16 %v1714
        %v1864 = vunpack.c.h.b16 %v1714
        %v1865 = vunpack.c.l.b16 %v1715
        %v1866 = vunpack.c.h.b16 %v1715
        %v1867 = vunpack.c.l.b16 %v1716
        %v1868 = vunpack.c.h.b16 %v1716
        %v1869 = vunpack.c.l.b16 %v1717
        %v1870 = vunpack.c.h.b16 %v1717
        %v1871 = vunpack.c.l.b16 %v1718
        %v1872 = vunpack.c.h.b16 %v1718
        %v1873 = vunpack.c.l.b16 %v1719
        %v1874 = vunpack.c.h.b16 %v1719
        %v1875 = vunpack.c.l.b16 %v1720
        %v1876 = vunpack.c.h.b16 %v1720
        %v1877 = vpack.c.b16 %v1783, %v1781
        %v1878 = vpack.c.b16 %v1784, %v1782
        %v1879 = vpack.c.b16 %v1787, %v1785
        %v1880 = vpack.c.b16 %v1788, %v1786
        %v1881 = vpack.c.b16 %v1791, %v1789
        %v1882 = vpack.c.b16 %v1792, %v1790
        %v1883 = vpack.c.b16 %v1795, %v1793
        %v1884 = vpack.c.b16 %v1796, %v1794
        %v1885 = vpack.c.b16 %v1799, %v1797
        %v1886 = vpack.c.b16 %v1800, %v1798
        %v1887 = vpack.c.b16 %v1803, %v1801
        %v1888 = vpack.c.b16 %v1804, %v1802
        %v1889 = vpack.c.b16 %v1807, %v1805
        %v1890 = vpack.c.b16 %v1808, %v1806
        %v1891 = vpack.c.b16 %v1811, %v1809
        %v1892 = vpack.c.b16 %v1812, %v1810
        %v1893 = vpack.c.b16 %v1815, %v1813
        %v1894 = vpack.c.b16 %v1816, %v1814
        %v1895 = vpack.c.b16 %v1819, %v1817
        %v1896 = vpack.c.b16 %v1820, %v1818
        %v1897 = vpack.c.b16 %v1823, %v1821
        %v1898 = vpack.c.b16 %v1824, %v1822
        %v1899 = vpack.c.b16 %v1827, %v1825
        %v1900 = vpack.c.b16 %v1828, %v1826
        %v1901 = vpack.c.b16 %v1831, %v1829
        %v1902 = vpack.c.b16 %v1832, %v1830
        %v1903 = vpack.c.b16 %v1835, %v1833
        %v1904 = vpack.c.b16 %v1836, %v1834
        %v1905 = vpack.c.b16 %v1839, %v1837
        %v1906 = vpack.c.b16 %v1840, %v1838
        %v1907 = vpack.c.b16 %v1843, %v1841
        %v1908 = vpack.c.b16 %v1844, %v1842
        %v1909 = vpack.c.b16 %v1847, %v1845
        %v1910 = vpack.c.b16 %v1848, %v1846
        %v1911 = vpack.c.b16 %v1851, %v1849
        %v1912 = vpack.c.b16 %v1852, %v1850
        %v1913 = vpack.c.b16 %v1855, %v1853
        %v1914 = vpack.c.b16 %v1856, %v1854
        %v1915 = vpack.c.b16 %v1859, %v1857
        %v1916 = vpack.c.b16 %v1860, %v1858
        %v1917 = vpack.c.b16 %v1863, %v1861
        %v1918 = vpack.c.b16 %v1864, %v1862
        %v1919 = vpack.c.b16 %v1867, %v1865
        %v1920 = vpack.c.b16 %v1868, %v1866
        %v1921 = vpack.c.b16 %v1871, %v1869
        %v1922 = vpack.c.b16 %v1872, %v1870
        %v1923 = vpack.c.b16 %v1875, %v1873
        %v1924 = vpack.c.b16 %v1876, %v1874
        %1973 = vmatprep.subr.bf16.mxu0 %v1878
        %1974 = vmatpush1.bf16.msra.mxu0 %v1877
        %1975 = vmatprep.subr.bf16.mxu0 %v1880
        %1976 = vmatpush1.bf16.msra.mxu0 %v1879
        %1977 = vmatprep.subr.bf16.mxu0 %v1882
        %1978 = vmatpush1.bf16.msra.mxu0 %v1881
        %1979 = vmatprep.subr.bf16.mxu0 %v1884
        %1980 = vmatpush1.bf16.msra.mxu0 %v1883
        %1981 = vmatprep.subr.bf16.mxu0 %v1886
        %1982 = vmatpush1.bf16.msra.mxu0 %v1885
        %1983 = vmatprep.subr.bf16.mxu0 %v1888
        %1984 = vmatpush1.bf16.msra.mxu0 %v1887
        %1985 = vmatprep.subr.bf16.mxu0 %v1890
        %1986 = vmatpush1.bf16.msra.mxu0 %v1889
        %1987 = vmatprep.subr.bf16.mxu0 %v1892
        %1988 = vmatpush1.bf16.msra.mxu0 %v1891
        %1989 = vmatprep.subr.bf16.mxu0 %v1894
        %1990 = vmatpush1.bf16.msra.mxu0 %v1893
        %1991 = vmatprep.subr.bf16.mxu0 %v1896
        %1992 = vmatpush1.bf16.msra.mxu0 %v1895
        %1993 = vmatprep.subr.bf16.mxu0 %v1898
        %1994 = vmatpush1.bf16.msra.mxu0 %v1897
        %1995 = vmatprep.subr.bf16.mxu0 %v1900
        %1996 = vmatpush1.bf16.msra.mxu0 %v1899
        %1997 = vmatprep.subr.bf16.mxu0 %v1902
        %1998 = vmatpush1.bf16.msra.mxu0 %v1901
        %1999 = vmatprep.subr.bf16.mxu0 %v1904
        %2000 = vmatpush1.bf16.msra.mxu0 %v1903
        %2001 = vmatprep.subr.bf16.mxu0 %v1906
        %2002 = vmatpush1.bf16.msra.mxu0 %v1905
        %2003 = vmatprep.subr.bf16.mxu0 %v1908
        %2004 = vmatpush1.bf16.msra.mxu0 %v1907
        %2005 = vmatprep.mubr.bf16.mxu0 %v1671
        %2006 = vmatmul.mubr.bf16.gmra.mrb[0].mxu0 %v1670
        %v2007 = vpop.f32.mrb[0].mxu0
        %v2008 = vadd.f32 %v1726, %v2007
        %v2009 = vpop.f32.mrb[0].mxu0
        %v2010 = vadd.f32 %v1730, %v2009
        %v2011 = vpop.f32.mrb[0].mxu0
        %v2012 = vadd.f32 %v1726, %v2011
        %v2013 = vpop.f32.mrb[0].mxu0
        %v2014 = vadd.f32 %v1730, %v2013
        %2015 = vdwg.mxu0
        %2016 = vmatprep.subr.bf16.mxu0 %v1910
        %2017 = vmatpush1.bf16.msra.mxu0 %v1909
        %2018 = vmatprep.subr.bf16.mxu0 %v1912
        %2019 = vmatpush1.bf16.msra.mxu0 %v1911
        %2020 = vmatprep.subr.bf16.mxu0 %v1914
        %2021 = vmatpush1.bf16.msra.mxu0 %v1913
        %2022 = vmatprep.subr.bf16.mxu0 %v1916
        %2023 = vmatpush1.bf16.msra.mxu0 %v1915
        %2024 = vmatprep.subr.bf16.mxu0 %v1918
        %2025 = vmatpush1.bf16.msra.mxu0 %v1917
        %2026 = vmatprep.subr.bf16.mxu0 %v1920
        %2027 = vmatpush1.bf16.msra.mxu0 %v1919
        %2028 = vmatprep.subr.bf16.mxu0 %v1922
        %2029 = vmatpush1.bf16.msra.mxu0 %v1921
        %2030 = vmatprep.subr.bf16.mxu0 %v1924
        %2031 = vmatpush1.bf16.msra.mxu0 %v1923
        %2032 = vmatprep.subr.bf16.mxu0 0
        %2033 = vmatpush1.bf16.msra.mxu0 0
        %2034 = vmatprep.subr.bf16.mxu0 0
        %2035 = vmatpush1.bf16.msra.mxu0 0
        %2036 = vmatprep.subr.bf16.mxu0 0
        %2037 = vmatpush1.bf16.msra.mxu0 0
        %2038 = vmatprep.subr.bf16.mxu0 0
        %2039 = vmatpush1.bf16.msra.mxu0 0
        %2040 = vmatprep.subr.bf16.mxu0 0
        %2041 = vmatpush1.bf16.msra.mxu0 0
        %2042 = vmatprep.subr.bf16.mxu0 0
        %2043 = vmatpush1.bf16.msra.mxu0 0
        %2044 = vmatprep.subr.bf16.mxu0 0
        %2045 = vmatpush1.bf16.msra.mxu0 0
        %2046 = vmatprep.subr.bf16.mxu0 0
        %2047 = vmatpush1.bf16.msra.mxu0 0
        %2048 = vmatprep.mubr.bf16.mxu0 0
        %2049 = vmatmul.mubr.bf16.gmra.mrb[0].mxu0 %v1672
        %v2050 = vpop.f32.mrb[0].mxu0
        %v2051 = vadd.f32 %v2008, %v2050
        %v2052 = vpop.f32.mrb[0].mxu0
        %v2053 = vadd.f32 %v2010, %v2052
        %v2054 = vpop.f32.mrb[0].mxu0
        %v2055 = vadd.f32 %v2012, %v2054
        %v2056 = vpop.f32.mrb[0].mxu0
        %v2057 = vadd.f32 %v2014, %v2056
        %2058 = vdwg.mxu0
        %v2059 = vpack.c.bf16 %v1256, %v1255
        %v2060 = vpack.c.bf16 %v2055, %v2051
        %v2061 = vpack.c.bf16 %v2057, %v2053
        %v2062 = vld [vmem:[%s7] sm:$0xf]
        %v2063 = vld [vmem:[%s7 + $0x4] sm:$0xf]
        %v2064 = vld [vmem:[%s7 + $0x8] sm:$0xf]
        %v2065 = vld [vmem:[%s7 + $0xc] sm:$0xf]
        %v2066 = vld [vmem:[%s7 + $0x10] sm:$0xf]
        %v2067 = vld [vmem:[%s7 + $0x14] sm:$0xf]
        %v2074 = vunpack.c.l.b16 %v2062
        %v2075 = vunpack.c.l.b16 %v2063
        %v2076 = vunpack.c.l.b16 %v2064
        %v2077 = vunpack.c.l.b16 %v2065
        %v2078 = vunpack.c.l.b16 %v2066
        %v2079 = vunpack.c.l.b16 %v2067
        %v2080 = vpack.c.b16 %v2075, %v2074
        %v2081 = vpack.c.b16 %v2077, %v2076
        %v2082 = vpack.c.b16 %v2079, %v2078
        %vm2083 = vcmask 130048
        %v2085 = vsel %vm2083, %v2080, 0
        %v2088 = vsel %vm2083, %v2081, 0
        %v2091 = vsel %vm2083, %v2082, 0
        %2093 = vmatprep.subr.bf16.mxu0 %v2060
        %2094 = vmatpush1.bf16.msra.mxu0 %v2059
        %2095 = vmatprep.subr.bf16.mxu0 0
        %2096 = vmatpush1.bf16.msra.mxu0 0
        %2097 = vmatprep.subr.bf16.mxu0 0
        %2098 = vmatpush1.bf16.msra.mxu0 0
        %2099 = vmatprep.subr.bf16.mxu0 0
        %2100 = vmatpush1.bf16.msra.mxu0 0
        %2101 = vmatprep.subr.bf16.mxu0 0
        %2102 = vmatpush1.bf16.msra.mxu0 0
        %2103 = vmatprep.subr.bf16.mxu0 0
        %2104 = vmatpush1.bf16.msra.mxu0 0
        %2105 = vmatprep.subr.bf16.mxu0 0
        %2106 = vmatpush1.bf16.msra.mxu0 0
        %2107 = vmatprep.subr.bf16.mxu0 0
        %2108 = vmatpush1.bf16.msra.mxu0 0
        %2109 = vmatprep.subr.bf16.mxu0 0
        %2110 = vmatpush1.bf16.msra.mxu0 0
        %2111 = vmatprep.subr.bf16.mxu0 0
        %2112 = vmatpush1.bf16.msra.mxu0 0
        %2113 = vmatprep.subr.bf16.mxu0 0
        %2114 = vmatpush1.bf16.msra.mxu0 0
        %2115 = vmatprep.subr.bf16.mxu0 0
        %2116 = vmatpush1.bf16.msra.mxu0 0
        %2117 = vmatprep.subr.bf16.mxu0 0
        %2118 = vmatpush1.bf16.msra.mxu0 0
        %2119 = vmatprep.subr.bf16.mxu0 0
        %2120 = vmatpush1.bf16.msra.mxu0 0
        %2121 = vmatprep.subr.bf16.mxu0 0
        %2122 = vmatpush1.bf16.msra.mxu0 0
        %2123 = vmatprep.subr.bf16.mxu0 0
        %2124 = vmatpush1.bf16.msra.mxu0 0
        %2125 = vmatprep.mubr.bf16.mxu0 0
        %2126 = vmatmul.mubr.bf16.gmra.mrb[0].mxu0 %v2085
        %v2127 = vpop.f32.mrb[0].mxu0
        %v2128 = vadd.f32 0.0, %v2127
        %v2129 = vpop.f32.mrb[0].mxu0
        %v2130 = vadd.f32 0.0, %v2129
        %v2131 = vpop.f32.mrb[0].mxu0
        %v2132 = vadd.f32 0.0, %v2131
        %v2133 = vpop.f32.mrb[0].mxu0
        %v2134 = vadd.f32 0.0, %v2133
        %2135 = vmatprep.mubr.bf16.mxu0 0
        %2136 = vmatmul.mubr.bf16.gmra.mrb[0].mxu0 %v2088
        %v2137 = vpop.f32.mrb[0].mxu0
        %v2138 = vadd.f32 0.0, %v2137
        %v2139 = vpop.f32.mrb[0].mxu0
        %v2140 = vadd.f32 0.0, %v2139
        %v2141 = vpop.f32.mrb[0].mxu0
        %v2142 = vadd.f32 0.0, %v2141
        %v2143 = vpop.f32.mrb[0].mxu0
        %v2144 = vadd.f32 0.0, %v2143
        %2145 = vmatprep.mubr.bf16.mxu0 0
        %2146 = vmatmul.mubr.bf16.gmra.mrb[0].mxu0 %v2091
        %v2147 = vpop.f32.mrb[0].mxu0
        %v2148 = vadd.f32 0.0, %v2147
        %v2149 = vpop.f32.mrb[0].mxu0
        %v2150 = vadd.f32 0.0, %v2149
        %v2151 = vpop.f32.mrb[0].mxu0
        %v2152 = vadd.f32 0.0, %v2151
        %v2153 = vpop.f32.mrb[0].mxu0
        %v2154 = vadd.f32 0.0, %v2153
        %2155 = vdwg.mxu0
        %2156 = vmatprep.subr.bf16.mxu0 0
        %2157 = vmatpush1.bf16.msra.mxu0 %v2061
        %2158 = vmatprep.subr.bf16.mxu0 0
        %2159 = vmatpush1.bf16.msra.mxu0 0
        %2160 = vmatprep.subr.bf16.mxu0 0
        %2161 = vmatpush1.bf16.msra.mxu0 0
        %2162 = vmatprep.subr.bf16.mxu0 0
        %2163 = vmatpush1.bf16.msra.mxu0 0
        %2164 = vmatprep.subr.bf16.mxu0 0
        %2165 = vmatpush1.bf16.msra.mxu0 0
        %2166 = vmatprep.subr.bf16.mxu0 0
        %2167 = vmatpush1.bf16.msra.mxu0 0
        %2168 = vmatprep.subr.bf16.mxu0 0
        %2169 = vmatpush1.bf16.msra.mxu0 0
        %2170 = vmatprep.subr.bf16.mxu0 0
        %2171 = vmatpush1.bf16.msra.mxu0 0
        %2172 = vmatprep.subr.bf16.mxu0 0
        %2173 = vmatpush1.bf16.msra.mxu0 0
        %2174 = vmatprep.subr.bf16.mxu0 0
        %2175 = vmatpush1.bf16.msra.mxu0 0
        %2176 = vmatprep.subr.bf16.mxu0 0
        %2177 = vmatpush1.bf16.msra.mxu0 0
        %2178 = vmatprep.subr.bf16.mxu0 0
        %2179 = vmatpush1.bf16.msra.mxu0 0
        %2180 = vmatprep.subr.bf16.mxu0 0
        %2181 = vmatpush1.bf16.msra.mxu0 0
        %2182 = vmatprep.subr.bf16.mxu0 0
        %2183 = vmatpush1.bf16.msra.mxu0 0
        %2184 = vmatprep.subr.bf16.mxu0 0
        %2185 = vmatpush1.bf16.msra.mxu0 0
        %2186 = vmatprep.subr.bf16.mxu0 0
        %2187 = vmatpush1.bf16.msra.mxu0 0
        %2188 = vmatprep.mubr.bf16.mxu0 0
        %2189 = vmatmul.mubr.bf16.gmra.mrb[0].mxu0 %v2085
        %v2190 = vpop.f32.mrb[0].mxu0
        %v2191 = vadd.f32 0.0, %v2190
        %v2192 = vpop.f32.mrb[0].mxu0
        %v2193 = vpop.f32.mrb[0].mxu0
        %v2194 = vadd.f32 0.0, %v2193
        %v2195 = vpop.f32.mrb[0].mxu0
        %2196 = vmatprep.mubr.bf16.mxu0 0
        %2197 = vmatmul.mubr.bf16.gmra.mrb[0].mxu0 %v2088
        %v2198 = vpop.f32.mrb[0].mxu0
        %v2199 = vadd.f32 0.0, %v2198
        %v2200 = vpop.f32.mrb[0].mxu0
        %v2201 = vpop.f32.mrb[0].mxu0
        %v2202 = vadd.f32 0.0, %v2201
        %v2203 = vpop.f32.mrb[0].mxu0
        %2204 = vmatprep.mubr.bf16.mxu0 0
        %2205 = vmatmul.mubr.bf16.gmra.mrb[0].mxu0 %v2091
        %v2206 = vpop.f32.mrb[0].mxu0
        %v2207 = vadd.f32 0.0, %v2206
        %v2208 = vpop.f32.mrb[0].mxu0
        %v2209 = vpop.f32.mrb[0].mxu0
        %v2210 = vadd.f32 0.0, %v2209
        %v2211 = vpop.f32.mrb[0].mxu0
        %2212 = vdwg.mxu0
        %v2213 = vpack.c.bf16 %v2132, %v2128
        %v2214 = vpack.c.bf16 %v2134, %v2130
        %v2215 = vpack.c.bf16 %v2194, %v2191
        %v2216 = vpack.c.bf16 %v2142, %v2138
        %v2217 = vpack.c.bf16 %v2144, %v2140
        %v2218 = vpack.c.bf16 %v2202, %v2199
        %v2219 = vpack.c.bf16 %v2152, %v2148
        %v2220 = vpack.c.bf16 %v2154, %v2150
        %v2221 = vpack.c.bf16 %v2210, %v2207
        %v2222 = vld [vmem:[#allocation2] sm:$0xff]
        %v2223 = vld [vmem:[#allocation2 + $0x8] sm:$0xf]
        %v2224 = vld [vmem:[#allocation2 + $0xc] sm:$0xff]
        %v2225 = vld [vmem:[#allocation2 + $0x14] sm:$0xf]
        %v2226 = vld [vmem:[#allocation2 + $0x18] sm:$0xff]
        %v2227 = vld [vmem:[#allocation2 + $0x20] sm:$0xf]
        %v2228 = vld [vmem:[#allocation2 + $0x24] sm:$0xff]
        %v2229 = vld [vmem:[#allocation2 + $0x2c] sm:$0xf]
        %v2230 = vld [vmem:[#allocation2 + $0x30] sm:$0xff]
        %v2231 = vld [vmem:[#allocation2 + $0x38] sm:$0xf]
        %v2232 = vld [vmem:[#allocation2 + $0x3c] sm:$0xff]
        %v2233 = vld [vmem:[#allocation2 + $0x44] sm:$0xf]
        %v2234 = vld [vmem:[#allocation2 + $0x48] sm:$0xff]
        %v2235 = vld [vmem:[#allocation2 + $0x50] sm:$0xf]
        %v2236 = vld [vmem:[#allocation2 + $0x54] sm:$0xff]
        %v2237 = vld [vmem:[#allocation2 + $0x5c] sm:$0xf]
        %v2238 = vld [vmem:[#allocation2 + $0x60] sm:$0xff]
        %v2239 = vld [vmem:[#allocation2 + $0x68] sm:$0xf]
        %v2240 = vld [vmem:[#allocation2 + $0x6c] sm:$0xff]
        %v2241 = vld [vmem:[#allocation2 + $0x74] sm:$0xf]
        %v2242 = vld [vmem:[#allocation2 + $0x78] sm:$0xff]
        %v2243 = vld [vmem:[#allocation2 + $0x80] sm:$0xf]
        %v2244 = vld [vmem:[#allocation2 + $0x84] sm:$0xff]
        %v2245 = vld [vmem:[#allocation2 + $0x8c] sm:$0xf]
        %v2246 = vld [vmem:[#allocation2 + $0x90] sm:$0xff]
        %v2247 = vld [vmem:[#allocation2 + $0x98] sm:$0xf]
        %v2248 = vld [vmem:[#allocation2 + $0x9c] sm:$0xff]
        %v2249 = vld [vmem:[#allocation2 + $0xa4] sm:$0xf]
        %v2250 = vld [vmem:[#allocation2 + $0xa8] sm:$0xff]
        %v2251 = vld [vmem:[#allocation2 + $0xb0] sm:$0xf]
        %v2252 = vld [vmem:[#allocation2 + $0xb4] sm:$0xff]
        %v2253 = vld [vmem:[#allocation2 + $0xbc] sm:$0xf]
        %v2254 = vld [vmem:[#allocation2 + $0xc0] sm:$0xff]
        %v2255 = vld [vmem:[#allocation2 + $0xc8] sm:$0xf]
        %v2256 = vld [vmem:[#allocation2 + $0xcc] sm:$0xff]
        %v2257 = vld [vmem:[#allocation2 + $0xd4] sm:$0xf]
        %v2258 = vld [vmem:[#allocation2 + $0xd8] sm:$0xff]
        %v2259 = vld [vmem:[#allocation2 + $0xe0] sm:$0xf]
        %v2260 = vld [vmem:[#allocation2 + $0xe4] sm:$0xff]
        %v2261 = vld [vmem:[#allocation2 + $0xec] sm:$0xf]
        %v2262 = vld [vmem:[#allocation2 + $0xf0] sm:$0xff]
        %v2263 = vld [vmem:[#allocation2 + $0xf8] sm:$0xf]
        %v2264 = vld [vmem:[#allocation2 + $0xfc] sm:$0xff]
        %v2265 = vld [vmem:[#allocation2 + $0x104] sm:$0xf]
        %v2266 = vld [vmem:[#allocation2 + $0x108] sm:$0xff]
        %v2267 = vld [vmem:[#allocation2 + $0x110] sm:$0xf]
        %v2268 = vld [vmem:[#allocation2 + $0x114] sm:$0xff]
        %v2269 = vld [vmem:[#allocation2 + $0x11c] sm:$0xf]
        %v2270 = vld [vmem:[#allocation2 + $0x120] sm:$0xff]
        %v2271 = vld [vmem:[#allocation2 + $0x128] sm:$0xf]
        %v2272 = vld [vmem:[#allocation2 + $0x12c] sm:$0xff]
        %v2273 = vld [vmem:[#allocation2 + $0x134] sm:$0xf]
        %v2274 = vld [vmem:[#allocation2 + $0x138] sm:$0xff]
        %v2275 = vld [vmem:[#allocation2 + $0x140] sm:$0xf]
        %v2276 = vld [vmem:[#allocation2 + $0x144] sm:$0xff]
        %v2277 = vld [vmem:[#allocation2 + $0x14c] sm:$0xf]
        %v2278 = vld [vmem:[#allocation2 + $0x150] sm:$0xff]
        %v2279 = vld [vmem:[#allocation2 + $0x158] sm:$0xf]
        %v2280 = vld [vmem:[#allocation2 + $0x15c] sm:$0xff]
        %v2281 = vld [vmem:[#allocation2 + $0x164] sm:$0xf]
        %v2282 = vld [vmem:[#allocation2 + $0x168] sm:$0xff]
        %v2283 = vld [vmem:[#allocation2 + $0x170] sm:$0xf]
        %v2284 = vld [vmem:[#allocation2 + $0x174] sm:$0xff]
        %v2285 = vld [vmem:[#allocation2 + $0x17c] sm:$0xf]
        %v2286 = vld [vmem:[#allocation2 + $0x180] sm:$0xff]
        %v2287 = vld [vmem:[#allocation2 + $0x188] sm:$0xf]
        %v2288 = vld [vmem:[#allocation2 + $0x18c] sm:$0xff]
        %v2289 = vld [vmem:[#allocation2 + $0x194] sm:$0xf]
        %v2290 = vld [vmem:[#allocation2 + $0x198] sm:$0xff]
        %v2291 = vld [vmem:[#allocation2 + $0x1a0] sm:$0xf]
        %v2292 = vld [vmem:[#allocation2 + $0x1a4] sm:$0xff]
        %v2293 = vld [vmem:[#allocation2 + $0x1ac] sm:$0xf]
        %v2294 = vld [vmem:[#allocation2 + $0x1b0] sm:$0xff]
        %v2295 = vld [vmem:[#allocation2 + $0x1b8] sm:$0xf]
        %v2296 = vld [vmem:[#allocation2 + $0x1bc] sm:$0xff]
        %v2297 = vld [vmem:[#allocation2 + $0x1c4] sm:$0xf]
        %v2298 = vld [vmem:[#allocation2 + $0x1c8] sm:$0xff]
        %v2299 = vld [vmem:[#allocation2 + $0x1d0] sm:$0xf]
        %v2300 = vld [vmem:[#allocation2 + $0x1d4] sm:$0xff]
        %v2301 = vld [vmem:[#allocation2 + $0x1dc] sm:$0xf]
        %v2302 = vld [vmem:[#allocation2 + $0x1e0] sm:$0xff]
        %v2303 = vld [vmem:[#allocation2 + $0x1e8] sm:$0xf]
        %v2304 = vld [vmem:[#allocation2 + $0x1ec] sm:$0xff]
        %v2305 = vld [vmem:[#allocation2 + $0x1f4] sm:$0xf]
        %v2306 = vld [vmem:[#allocation2 + $0x1f8] sm:$0xff]
        %v2307 = vld [vmem:[#allocation2 + $0x200] sm:$0xf]
        %v2308 = vld [vmem:[#allocation2 + $0x204] sm:$0xff]
        %v2309 = vld [vmem:[#allocation2 + $0x20c] sm:$0xf]
        %v2310 = vld [vmem:[#allocation2 + $0x210] sm:$0xff]
        %v2311 = vld [vmem:[#allocation2 + $0x218] sm:$0xf]
        %v2312 = vld [vmem:[#allocation2 + $0x21c] sm:$0xff]
        %v2313 = vld [vmem:[#allocation2 + $0x224] sm:$0xf]
        %v2314 = vld [vmem:[#allocation2 + $0x228] sm:$0xff]
        %v2315 = vld [vmem:[#allocation2 + $0x230] sm:$0xf]
        %v2316 = vld [vmem:[#allocation2 + $0x234] sm:$0xff]
        %v2317 = vld [vmem:[#allocation2 + $0x23c] sm:$0xf]
        %v2318 = vld [vmem:[#allocation2 + $0x240] sm:$0xff]
        %v2319 = vld [vmem:[#allocation2 + $0x248] sm:$0xf]
        %v2320 = vld [vmem:[#allocation2 + $0x24c] sm:$0xff]
        %v2321 = vld [vmem:[#allocation2 + $0x254] sm:$0xf]
        %v2322 = vld [vmem:[#allocation2 + $0x258] sm:$0xff]
        %v2323 = vld [vmem:[#allocation2 + $0x260] sm:$0xf]
        %v2324 = vld [vmem:[#allocation2 + $0x264] sm:$0xff]
        %v2325 = vld [vmem:[#allocation2 + $0x26c] sm:$0xf]
        %v2326 = vld [vmem:[#allocation2 + $0x270] sm:$0xff]
        %v2327 = vld [vmem:[#allocation2 + $0x278] sm:$0xf]
        %v2328 = vld [vmem:[#allocation2 + $0x27c] sm:$0xff]
        %v2329 = vld [vmem:[#allocation2 + $0x284] sm:$0xf]
        %v2330 = vld [vmem:[#allocation2 + $0x288] sm:$0xff]
        %v2331 = vld [vmem:[#allocation2 + $0x290] sm:$0xf]
        %v2332 = vld [vmem:[#allocation2 + $0x294] sm:$0xff]
        %v2333 = vld [vmem:[#allocation2 + $0x29c] sm:$0xf]
        %v2334 = vld [vmem:[#allocation2 + $0x2a0] sm:$0xff]
        %v2335 = vld [vmem:[#allocation2 + $0x2a8] sm:$0xf]
        %v2336 = vld [vmem:[#allocation2 + $0x2ac] sm:$0xff]
        %v2337 = vld [vmem:[#allocation2 + $0x2b4] sm:$0xf]
        %v2338 = vld [vmem:[#allocation2 + $0x2b8] sm:$0xff]
        %v2339 = vld [vmem:[#allocation2 + $0x2c0] sm:$0xf]
        %v2340 = vld [vmem:[#allocation2 + $0x2c4] sm:$0xff]
        %v2341 = vld [vmem:[#allocation2 + $0x2cc] sm:$0xf]
        %v2342 = vld [vmem:[#allocation2 + $0x2d0] sm:$0xff]
        %v2343 = vld [vmem:[#allocation2 + $0x2d8] sm:$0xf]
        %v2344 = vld [vmem:[#allocation2 + $0x2dc] sm:$0xff]
        %v2345 = vld [vmem:[#allocation2 + $0x2e4] sm:$0xf]
        %v2346 = vld [vmem:[#allocation2 + $0x2e8] sm:$0xff]
        %v2347 = vld [vmem:[#allocation2 + $0x2f0] sm:$0xf]
        %v2348 = vld [vmem:[#allocation2 + $0x2f4] sm:$0xff]
        %v2349 = vld [vmem:[#allocation2 + $0x2fc] sm:$0xf]
        %v2350 = vld [vmem:[#allocation2 + $0x300] sm:$0xff]
        %v2351 = vld [vmem:[#allocation2 + $0x308] sm:$0xf]
        %v2352 = vld [vmem:[#allocation2 + $0x30c] sm:$0xff]
        %v2353 = vld [vmem:[#allocation2 + $0x314] sm:$0xf]
        %v2354 = vld [vmem:[#allocation2 + $0x318] sm:$0xff]
        %v2355 = vld [vmem:[#allocation2 + $0x320] sm:$0xf]
        %v2356 = vld [vmem:[#allocation2 + $0x324] sm:$0xff]
        %v2357 = vld [vmem:[#allocation2 + $0x32c] sm:$0xf]
        %v2358 = vld [vmem:[#allocation2 + $0x330] sm:$0xff]
        %v2359 = vld [vmem:[#allocation2 + $0x338] sm:$0xf]
        %v2360 = vld [vmem:[#allocation2 + $0x33c] sm:$0xff]
        %v2361 = vld [vmem:[#allocation2 + $0x344] sm:$0xf]
        %v2362 = vld [vmem:[#allocation2 + $0x348] sm:$0xff]
        %v2363 = vld [vmem:[#allocation2 + $0x350] sm:$0xf]
        %v2364 = vld [vmem:[#allocation2 + $0x354] sm:$0xff]
        %v2365 = vld [vmem:[#allocation2 + $0x35c] sm:$0xf]
        %v2366 = vld [vmem:[#allocation2 + $0x360] sm:$0xff]
        %v2367 = vld [vmem:[#allocation2 + $0x368] sm:$0xf]
        %v2368 = vld [vmem:[#allocation2 + $0x36c] sm:$0xff]
        %v2369 = vld [vmem:[#allocation2 + $0x374] sm:$0xf]
        %v2370 = vld [vmem:[#allocation2 + $0x378] sm:$0xff]
        %v2371 = vld [vmem:[#allocation2 + $0x380] sm:$0xf]
        %v2372 = vld [vmem:[#allocation2 + $0x384] sm:$0xff]
        %v2373 = vld [vmem:[#allocation2 + $0x38c] sm:$0xf]
        %v2374 = vld [vmem:[#allocation2 + $0x390] sm:$0xff]
        %v2375 = vld [vmem:[#allocation2 + $0x398] sm:$0xf]
        %v2376 = vld [vmem:[#allocation2 + $0x39c] sm:$0xff]
        %v2377 = vld [vmem:[#allocation2 + $0x3a4] sm:$0xf]
        %v2378 = vld [vmem:[#allocation2 + $0x3a8] sm:$0xff]
        %v2379 = vld [vmem:[#allocation2 + $0x3b0] sm:$0xf]
        %v2380 = vld [vmem:[#allocation2 + $0x3b4] sm:$0xff]
        %v2381 = vld [vmem:[#allocation2 + $0x3bc] sm:$0xf]
        %v2382 = vld [vmem:[#allocation2 + $0x3c0] sm:$0xff]
        %v2383 = vld [vmem:[#allocation2 + $0x3c8] sm:$0xf]
        %v2384 = vld [vmem:[#allocation2 + $0x3cc] sm:$0xff]
        %v2385 = vld [vmem:[#allocation2 + $0x3d4] sm:$0xf]
        %v2386 = vld [vmem:[#allocation2 + $0x3d8] sm:$0xff]
        %v2387 = vld [vmem:[#allocation2 + $0x3e0] sm:$0xf]
        %v2388 = vld [vmem:[#allocation2 + $0x3e4] sm:$0xff]
        %v2389 = vld [vmem:[#allocation2 + $0x3ec] sm:$0xf]
        %v2390 = vld [vmem:[#allocation2 + $0x3f0] sm:$0xff]
        %v2391 = vld [vmem:[#allocation2 + $0x3f8] sm:$0xf]
        %v2392 = vld [vmem:[#allocation2 + $0x3fc] sm:$0xff]
        %v2393 = vld [vmem:[#allocation2 + $0x404] sm:$0xf]
        %v2394 = vld [vmem:[#allocation2 + $0x408] sm:$0xff]
        %v2395 = vld [vmem:[#allocation2 + $0x410] sm:$0xf]
        %v2396 = vld [vmem:[#allocation2 + $0x414] sm:$0xff]
        %v2397 = vld [vmem:[#allocation2 + $0x41c] sm:$0xf]
        %v2398 = vld [vmem:[#allocation2 + $0x420] sm:$0xff]
        %v2399 = vld [vmem:[#allocation2 + $0x428] sm:$0xf]
        %v2400 = vld [vmem:[#allocation2 + $0x42c] sm:$0xff]
        %v2401 = vld [vmem:[#allocation2 + $0x434] sm:$0xf]
        %v2402 = vld [vmem:[#allocation2 + $0x438] sm:$0xff]
        %v2403 = vld [vmem:[#allocation2 + $0x440] sm:$0xf]
        %v2404 = vld [vmem:[#allocation2 + $0x444] sm:$0xff]
        %v2405 = vld [vmem:[#allocation2 + $0x44c] sm:$0xf]
        %v2406 = vld [vmem:[#allocation2 + $0x450] sm:$0xff]
        %v2407 = vld [vmem:[#allocation2 + $0x458] sm:$0xf]
        %v2408 = vld [vmem:[#allocation2 + $0x45c] sm:$0xff]
        %v2409 = vld [vmem:[#allocation2 + $0x464] sm:$0xf]
        %v2410 = vld [vmem:[#allocation2 + $0x468] sm:$0xff]
        %v2411 = vld [vmem:[#allocation2 + $0x470] sm:$0xf]
        %v2412 = vld [vmem:[#allocation2 + $0x474] sm:$0xff]
        %v2413 = vld [vmem:[#allocation2 + $0x47c] sm:$0xf]
        %v2414 = vld [vmem:[#allocation2 + $0x480] sm:$0xff]
        %v2415 = vld [vmem:[#allocation2 + $0x488] sm:$0xf]
        %v2416 = vld [vmem:[#allocation2 + $0x48c] sm:$0xff]
        %v2417 = vld [vmem:[#allocation2 + $0x494] sm:$0xf]
        %v2418 = vld [vmem:[#allocation2 + $0x498] sm:$0xff]
        %v2419 = vld [vmem:[#allocation2 + $0x4a0] sm:$0xf]
        %v2420 = vld [vmem:[#allocation2 + $0x4a4] sm:$0xff]
        %v2421 = vld [vmem:[#allocation2 + $0x4ac] sm:$0xf]
        %v2422 = vld [vmem:[#allocation2 + $0x4b0] sm:$0xff]
        %v2423 = vld [vmem:[#allocation2 + $0x4b8] sm:$0xf]
        %v2424 = vld [vmem:[#allocation2 + $0x4bc] sm:$0xff]
        %v2425 = vld [vmem:[#allocation2 + $0x4c4] sm:$0xf]
        %v2426 = vld [vmem:[#allocation2 + $0x4c8] sm:$0xff]
        %v2427 = vld [vmem:[#allocation2 + $0x4d0] sm:$0xf]
        %v2428 = vld [vmem:[#allocation2 + $0x4d4] sm:$0xff]
        %v2429 = vld [vmem:[#allocation2 + $0x4dc] sm:$0xf]
        %v2430 = vld [vmem:[#allocation2 + $0x4e0] sm:$0xff]
        %v2431 = vld [vmem:[#allocation2 + $0x4e8] sm:$0xf]
        %v2432 = vld [vmem:[#allocation2 + $0x4ec] sm:$0xff]
        %v2433 = vld [vmem:[#allocation2 + $0x4f4] sm:$0xf]
        %v2434 = vld [vmem:[#allocation2 + $0x4f8] sm:$0xff]
        %v2435 = vld [vmem:[#allocation2 + $0x500] sm:$0xf]
        %v2436 = vld [vmem:[#allocation2 + $0x504] sm:$0xff]
        %v2437 = vld [vmem:[#allocation2 + $0x50c] sm:$0xf]
        %v2438 = vld [vmem:[#allocation2 + $0x510] sm:$0xff]
        %v2439 = vld [vmem:[#allocation2 + $0x518] sm:$0xf]
        %v2440 = vld [vmem:[#allocation2 + $0x51c] sm:$0xff]
        %v2441 = vld [vmem:[#allocation2 + $0x524] sm:$0xf]
        %v2442 = vld [vmem:[#allocation2 + $0x528] sm:$0xff]
        %v2443 = vld [vmem:[#allocation2 + $0x530] sm:$0xf]
        %v2444 = vld [vmem:[#allocation2 + $0x534] sm:$0xff]
        %v2445 = vld [vmem:[#allocation2 + $0x53c] sm:$0xf]
        %v2446 = vld [vmem:[#allocation2 + $0x540] sm:$0xff]
        %v2447 = vld [vmem:[#allocation2 + $0x548] sm:$0xf]
        %v2448 = vld [vmem:[#allocation2 + $0x54c] sm:$0xff]
        %v2449 = vld [vmem:[#allocation2 + $0x554] sm:$0xf]
        %v2450 = vld [vmem:[#allocation2 + $0x558] sm:$0xff]
        %v2451 = vld [vmem:[#allocation2 + $0x560] sm:$0xf]
        %v2452 = vld [vmem:[#allocation2 + $0x564] sm:$0xff]
        %v2453 = vld [vmem:[#allocation2 + $0x56c] sm:$0xf]
        %v2454 = vld [vmem:[#allocation2 + $0x570] sm:$0xff]
        %v2455 = vld [vmem:[#allocation2 + $0x578] sm:$0xf]
        %v2456 = vld [vmem:[#allocation2 + $0x57c] sm:$0xff]
        %v2457 = vld [vmem:[#allocation2 + $0x584] sm:$0xf]
        %v2458 = vld [vmem:[#allocation2 + $0x588] sm:$0xff]
        %v2459 = vld [vmem:[#allocation2 + $0x590] sm:$0xf]
        %v2460 = vld [vmem:[#allocation2 + $0x594] sm:$0xff]
        %v2461 = vld [vmem:[#allocation2 + $0x59c] sm:$0xf]
        %v2462 = vld [vmem:[#allocation2 + $0x5a0] sm:$0xff]
        %v2463 = vld [vmem:[#allocation2 + $0x5a8] sm:$0xf]
        %v2464 = vld [vmem:[#allocation2 + $0x5ac] sm:$0xff]
        %v2465 = vld [vmem:[#allocation2 + $0x5b4] sm:$0xf]
        %v2466 = vld [vmem:[#allocation2 + $0x5b8] sm:$0xff]
        %v2467 = vld [vmem:[#allocation2 + $0x5c0] sm:$0xf]
        %v2468 = vld [vmem:[#allocation2 + $0x5c4] sm:$0xff]
        %v2469 = vld [vmem:[#allocation2 + $0x5cc] sm:$0xf]
        %v2470 = vld [vmem:[#allocation2 + $0x5d0] sm:$0xff]
        %v2471 = vld [vmem:[#allocation2 + $0x5d8] sm:$0xf]
        %v2472 = vld [vmem:[#allocation2 + $0x5dc] sm:$0xff]
        %v2473 = vld [vmem:[#allocation2 + $0x5e4] sm:$0xf]
        %v2474 = vld [vmem:[#allocation2 + $0x5e8] sm:$0xff]
        %v2475 = vld [vmem:[#allocation2 + $0x5f0] sm:$0xf]
        %v2476 = vld [vmem:[#allocation2 + $0x5f4] sm:$0xff]
        %v2477 = vld [vmem:[#allocation2 + $0x5fc] sm:$0xf]
        %v2478 = vld [vmem:[#allocation2 + $0x600] sm:$0xff]
        %v2479 = vld [vmem:[#allocation2 + $0x608] sm:$0xf]
        %v2480 = vld [vmem:[#allocation2 + $0x60c] sm:$0xff]
        %v2481 = vld [vmem:[#allocation2 + $0x614] sm:$0xf]
        %v2482 = vld [vmem:[#allocation2 + $0x618] sm:$0xff]
        %v2483 = vld [vmem:[#allocation2 + $0x620] sm:$0xf]
        %v2484 = vld [vmem:[#allocation2 + $0x624] sm:$0xff]
        %v2485 = vld [vmem:[#allocation2 + $0x62c] sm:$0xf]
        %v2486 = vld [vmem:[#allocation2 + $0x630] sm:$0xff]
        %v2487 = vld [vmem:[#allocation2 + $0x638] sm:$0xf]
        %v2488 = vld [vmem:[#allocation2 + $0x63c] sm:$0xff]
        %v2489 = vld [vmem:[#allocation2 + $0x644] sm:$0xf]
        %v2490 = vld [vmem:[#allocation2 + $0x648] sm:$0xff]
        %v2491 = vld [vmem:[#allocation2 + $0x650] sm:$0xf]
        %v2492 = vld [vmem:[#allocation2 + $0x654] sm:$0xff]
        %v2493 = vld [vmem:[#allocation2 + $0x65c] sm:$0xf]
        %v2494 = vld [vmem:[#allocation2 + $0x660] sm:$0xff]
        %v2495 = vld [vmem:[#allocation2 + $0x668] sm:$0xf]
        %v2496 = vld [vmem:[#allocation2 + $0x66c] sm:$0xff]
        %v2497 = vld [vmem:[#allocation2 + $0x674] sm:$0xf]
        %v2498 = vld [vmem:[#allocation2 + $0x678] sm:$0xff]
        %v2499 = vld [vmem:[#allocation2 + $0x680] sm:$0xf]
        %v2500 = vld [vmem:[#allocation2 + $0x684] sm:$0xff]
        %v2501 = vld [vmem:[#allocation2 + $0x68c] sm:$0xf]
        %v2502 = vld [vmem:[#allocation2 + $0x690] sm:$0xff]
        %v2503 = vld [vmem:[#allocation2 + $0x698] sm:$0xf]
        %v2504 = vld [vmem:[#allocation2 + $0x69c] sm:$0xff]
        %v2505 = vld [vmem:[#allocation2 + $0x6a4] sm:$0xf]
        %v2506 = vld [vmem:[#allocation2 + $0x6a8] sm:$0xff]
        %v2507 = vld [vmem:[#allocation2 + $0x6b0] sm:$0xf]
        %v2508 = vld [vmem:[#allocation2 + $0x6b4] sm:$0xff]
        %v2509 = vld [vmem:[#allocation2 + $0x6bc] sm:$0xf]
        %v2510 = vld [vmem:[%s16 + $0x6] sm:$0x7]
        %v2512 = vlaneseq
        %v2513 = vshrl.u32 %v2512, 7
        %v2514 = vsub.s32 0, %v2513
        %v2515 = vrot.slane %v2510, %v2514
        %v2516 = vlaneseq
        %v2517 = vshrl.u32 %v2516, 7
        %v2518 = vsub.s32 1, %v2517
        %v2519 = vrot.slane %v2510, %v2518
        %v2520 = vlaneseq
        %v2521 = vshrl.u32 %v2520, 7
        %v2522 = vsub.s32 2, %v2521
        %v2523 = vrot.slane %v2510, %v2522
        %v2815 = vunpack.c.l.b16 %v2222
        %v2816 = vunpack.c.h.b16 %v2222
        %v2817 = vunpack.c.l.b16 %v2223
        %v2818 = vunpack.c.l.b16 %v2224
        %v2819 = vunpack.c.h.b16 %v2224
        %v2820 = vunpack.c.l.b16 %v2225
        %v2821 = vunpack.c.l.b16 %v2226
        %v2822 = vunpack.c.h.b16 %v2226
        %v2823 = vunpack.c.l.b16 %v2227
        %v2824 = vunpack.c.l.b16 %v2228
        %v2825 = vunpack.c.h.b16 %v2228
        %v2826 = vunpack.c.l.b16 %v2229
        %v2827 = vunpack.c.l.b16 %v2230
        %v2828 = vunpack.c.h.b16 %v2230
        %v2829 = vunpack.c.l.b16 %v2231
        %v2830 = vunpack.c.l.b16 %v2232
        %v2831 = vunpack.c.h.b16 %v2232
        %v2832 = vunpack.c.l.b16 %v2233
        %v2833 = vunpack.c.l.b16 %v2234
        %v2834 = vunpack.c.h.b16 %v2234
        %v2835 = vunpack.c.l.b16 %v2235
        %v2836 = vunpack.c.l.b16 %v2236
        %v2837 = vunpack.c.h.b16 %v2236
        %v2838 = vunpack.c.l.b16 %v2237
        %v2839 = vunpack.c.l.b16 %v2238
        %v2840 = vunpack.c.h.b16 %v2238
        %v2841 = vunpack.c.l.b16 %v2239
        %v2842 = vunpack.c.l.b16 %v2240
        %v2843 = vunpack.c.h.b16 %v2240
        %v2844 = vunpack.c.l.b16 %v2241
        %v2845 = vunpack.c.l.b16 %v2242
        %v2846 = vunpack.c.h.b16 %v2242
        %v2847 = vunpack.c.l.b16 %v2243
        %v2848 = vunpack.c.l.b16 %v2244
        %v2849 = vunpack.c.h.b16 %v2244
        %v2850 = vunpack.c.l.b16 %v2245
        %v2851 = vunpack.c.l.b16 %v2246
        %v2852 = vunpack.c.h.b16 %v2246
        %v2853 = vunpack.c.l.b16 %v2247
        %v2854 = vunpack.c.l.b16 %v2248
        %v2855 = vunpack.c.h.b16 %v2248
        %v2856 = vunpack.c.l.b16 %v2249
        %v2857 = vunpack.c.l.b16 %v2250
        %v2858 = vunpack.c.h.b16 %v2250
        %v2859 = vunpack.c.l.b16 %v2251
        %v2860 = vunpack.c.l.b16 %v2252
        %v2861 = vunpack.c.h.b16 %v2252
        %v2862 = vunpack.c.l.b16 %v2253
        %v2863 = vunpack.c.l.b16 %v2254
        %v2864 = vunpack.c.h.b16 %v2254
        %v2865 = vunpack.c.l.b16 %v2255
        %v2866 = vunpack.c.l.b16 %v2256
        %v2867 = vunpack.c.h.b16 %v2256
        %v2868 = vunpack.c.l.b16 %v2257
        %v2869 = vunpack.c.l.b16 %v2258
        %v2870 = vunpack.c.h.b16 %v2258
        %v2871 = vunpack.c.l.b16 %v2259
        %v2872 = vunpack.c.l.b16 %v2260
        %v2873 = vunpack.c.h.b16 %v2260
        %v2874 = vunpack.c.l.b16 %v2261
        %v2875 = vunpack.c.l.b16 %v2262
        %v2876 = vunpack.c.h.b16 %v2262
        %v2877 = vunpack.c.l.b16 %v2263
        %v2878 = vunpack.c.l.b16 %v2264
        %v2879 = vunpack.c.h.b16 %v2264
        %v2880 = vunpack.c.l.b16 %v2265
        %v2881 = vunpack.c.l.b16 %v2266
        %v2882 = vunpack.c.h.b16 %v2266
        %v2883 = vunpack.c.l.b16 %v2267
        %v2884 = vunpack.c.l.b16 %v2268
        %v2885 = vunpack.c.h.b16 %v2268
        %v2886 = vunpack.c.l.b16 %v2269
        %v2887 = vunpack.c.l.b16 %v2270
        %v2888 = vunpack.c.h.b16 %v2270
        %v2889 = vunpack.c.l.b16 %v2271
        %v2890 = vunpack.c.l.b16 %v2272
        %v2891 = vunpack.c.h.b16 %v2272
        %v2892 = vunpack.c.l.b16 %v2273
        %v2893 = vunpack.c.l.b16 %v2274
        %v2894 = vunpack.c.h.b16 %v2274
        %v2895 = vunpack.c.l.b16 %v2275
        %v2896 = vunpack.c.l.b16 %v2276
        %v2897 = vunpack.c.h.b16 %v2276
        %v2898 = vunpack.c.l.b16 %v2277
        %v2899 = vunpack.c.l.b16 %v2278
        %v2900 = vunpack.c.h.b16 %v2278
        %v2901 = vunpack.c.l.b16 %v2279
        %v2902 = vunpack.c.l.b16 %v2280
        %v2903 = vunpack.c.h.b16 %v2280
        %v2904 = vunpack.c.l.b16 %v2281
        %v2905 = vunpack.c.l.b16 %v2282
        %v2906 = vunpack.c.h.b16 %v2282
        %v2907 = vunpack.c.l.b16 %v2283
        %v2908 = vunpack.c.l.b16 %v2284
        %v2909 = vunpack.c.h.b16 %v2284
        %v2910 = vunpack.c.l.b16 %v2285
        %v2911 = vunpack.c.l.b16 %v2286
        %v2912 = vunpack.c.h.b16 %v2286
        %v2913 = vunpack.c.l.b16 %v2287
        %v2914 = vunpack.c.l.b16 %v2288
        %v2915 = vunpack.c.h.b16 %v2288
        %v2916 = vunpack.c.l.b16 %v2289
        %v2917 = vunpack.c.l.b16 %v2290
        %v2918 = vunpack.c.h.b16 %v2290
        %v2919 = vunpack.c.l.b16 %v2291
        %v2920 = vunpack.c.l.b16 %v2292
        %v2921 = vunpack.c.h.b16 %v2292
        %v2922 = vunpack.c.l.b16 %v2293
        %v2923 = vunpack.c.l.b16 %v2294
        %v2924 = vunpack.c.h.b16 %v2294
        %v2925 = vunpack.c.l.b16 %v2295
        %v2926 = vunpack.c.l.b16 %v2296
        %v2927 = vunpack.c.h.b16 %v2296
        %v2928 = vunpack.c.l.b16 %v2297
        %v2929 = vunpack.c.l.b16 %v2298
        %v2930 = vunpack.c.h.b16 %v2298
        %v2931 = vunpack.c.l.b16 %v2299
        %v2932 = vunpack.c.l.b16 %v2300
        %v2933 = vunpack.c.h.b16 %v2300
        %v2934 = vunpack.c.l.b16 %v2301
        %v2935 = vunpack.c.l.b16 %v2302
        %v2936 = vunpack.c.h.b16 %v2302
        %v2937 = vunpack.c.l.b16 %v2303
        %v2938 = vunpack.c.l.b16 %v2304
        %v2939 = vunpack.c.h.b16 %v2304
        %v2940 = vunpack.c.l.b16 %v2305
        %v2941 = vunpack.c.l.b16 %v2306
        %v2942 = vunpack.c.h.b16 %v2306
        %v2943 = vunpack.c.l.b16 %v2307
        %v2944 = vunpack.c.l.b16 %v2308
        %v2945 = vunpack.c.h.b16 %v2308
        %v2946 = vunpack.c.l.b16 %v2309
        %v2947 = vunpack.c.l.b16 %v2310
        %v2948 = vunpack.c.h.b16 %v2310
        %v2949 = vunpack.c.l.b16 %v2311
        %v2950 = vunpack.c.l.b16 %v2312
        %v2951 = vunpack.c.h.b16 %v2312
        %v2952 = vunpack.c.l.b16 %v2313
        %v2953 = vunpack.c.l.b16 %v2314
        %v2954 = vunpack.c.h.b16 %v2314
        %v2955 = vunpack.c.l.b16 %v2315
        %v2956 = vunpack.c.l.b16 %v2316
        %v2957 = vunpack.c.h.b16 %v2316
        %v2958 = vunpack.c.l.b16 %v2317
        %v2959 = vunpack.c.l.b16 %v2318
        %v2960 = vunpack.c.h.b16 %v2318
        %v2961 = vunpack.c.l.b16 %v2319
        %v2962 = vunpack.c.l.b16 %v2320
        %v2963 = vunpack.c.h.b16 %v2320
        %v2964 = vunpack.c.l.b16 %v2321
        %v2965 = vunpack.c.l.b16 %v2322
        %v2966 = vunpack.c.h.b16 %v2322
        %v2967 = vunpack.c.l.b16 %v2323
        %v2968 = vunpack.c.l.b16 %v2324
        %v2969 = vunpack.c.h.b16 %v2324
        %v2970 = vunpack.c.l.b16 %v2325
        %v2971 = vunpack.c.l.b16 %v2326
        %v2972 = vunpack.c.h.b16 %v2326
        %v2973 = vunpack.c.l.b16 %v2327
        %v2974 = vunpack.c.l.b16 %v2328
        %v2975 = vunpack.c.h.b16 %v2328
        %v2976 = vunpack.c.l.b16 %v2329
        %v2977 = vunpack.c.l.b16 %v2330
        %v2978 = vunpack.c.h.b16 %v2330
        %v2979 = vunpack.c.l.b16 %v2331
        %v2980 = vunpack.c.l.b16 %v2332
        %v2981 = vunpack.c.h.b16 %v2332
        %v2982 = vunpack.c.l.b16 %v2333
        %v2983 = vunpack.c.l.b16 %v2334
        %v2984 = vunpack.c.h.b16 %v2334
        %v2985 = vunpack.c.l.b16 %v2335
        %v2986 = vunpack.c.l.b16 %v2336
        %v2987 = vunpack.c.h.b16 %v2336
        %v2988 = vunpack.c.l.b16 %v2337
        %v2989 = vunpack.c.l.b16 %v2338
        %v2990 = vunpack.c.h.b16 %v2338
        %v2991 = vunpack.c.l.b16 %v2339
        %v2992 = vunpack.c.l.b16 %v2340
        %v2993 = vunpack.c.h.b16 %v2340
        %v2994 = vunpack.c.l.b16 %v2341
        %v2995 = vunpack.c.l.b16 %v2342
        %v2996 = vunpack.c.h.b16 %v2342
        %v2997 = vunpack.c.l.b16 %v2343
        %v2998 = vunpack.c.l.b16 %v2344
        %v2999 = vunpack.c.h.b16 %v2344
        %v3000 = vunpack.c.l.b16 %v2345
        %v3001 = vunpack.c.l.b16 %v2346
        %v3002 = vunpack.c.h.b16 %v2346
        %v3003 = vunpack.c.l.b16 %v2347
        %v3004 = vunpack.c.l.b16 %v2348
        %v3005 = vunpack.c.h.b16 %v2348
        %v3006 = vunpack.c.l.b16 %v2349
        %v3007 = vunpack.c.l.b16 %v2350
        %v3008 = vunpack.c.h.b16 %v2350
        %v3009 = vunpack.c.l.b16 %v2351
        %v3010 = vunpack.c.l.b16 %v2352
        %v3011 = vunpack.c.h.b16 %v2352
        %v3012 = vunpack.c.l.b16 %v2353
        %v3013 = vunpack.c.l.b16 %v2354
        %v3014 = vunpack.c.h.b16 %v2354
        %v3015 = vunpack.c.l.b16 %v2355
        %v3016 = vunpack.c.l.b16 %v2356
        %v3017 = vunpack.c.h.b16 %v2356
        %v3018 = vunpack.c.l.b16 %v2357
        %v3019 = vunpack.c.l.b16 %v2358
        %v3020 = vunpack.c.h.b16 %v2358
        %v3021 = vunpack.c.l.b16 %v2359
        %v3022 = vunpack.c.l.b16 %v2360
        %v3023 = vunpack.c.h.b16 %v2360
        %v3024 = vunpack.c.l.b16 %v2361
        %v3025 = vunpack.c.l.b16 %v2362
        %v3026 = vunpack.c.h.b16 %v2362
        %v3027 = vunpack.c.l.b16 %v2363
        %v3028 = vunpack.c.l.b16 %v2364
        %v3029 = vunpack.c.h.b16 %v2364
        %v3030 = vunpack.c.l.b16 %v2365
        %v3031 = vunpack.c.l.b16 %v2366
        %v3032 = vunpack.c.h.b16 %v2366
        %v3033 = vunpack.c.l.b16 %v2367
        %v3034 = vunpack.c.l.b16 %v2368
        %v3035 = vunpack.c.h.b16 %v2368
        %v3036 = vunpack.c.l.b16 %v2369
        %v3037 = vunpack.c.l.b16 %v2370
        %v3038 = vunpack.c.h.b16 %v2370
        %v3039 = vunpack.c.l.b16 %v2371
        %v3040 = vunpack.c.l.b16 %v2372
        %v3041 = vunpack.c.h.b16 %v2372
        %v3042 = vunpack.c.l.b16 %v2373
        %v3043 = vunpack.c.l.b16 %v2374
        %v3044 = vunpack.c.h.b16 %v2374
        %v3045 = vunpack.c.l.b16 %v2375
        %v3046 = vunpack.c.l.b16 %v2376
        %v3047 = vunpack.c.h.b16 %v2376
        %v3048 = vunpack.c.l.b16 %v2377
        %v3049 = vunpack.c.l.b16 %v2378
        %v3050 = vunpack.c.h.b16 %v2378
        %v3051 = vunpack.c.l.b16 %v2379
        %v3052 = vunpack.c.l.b16 %v2380
        %v3053 = vunpack.c.h.b16 %v2380
        %v3054 = vunpack.c.l.b16 %v2381
        %v3055 = vunpack.c.l.b16 %v2382
        %v3056 = vunpack.c.h.b16 %v2382
        %v3057 = vunpack.c.l.b16 %v2383
        %v3058 = vunpack.c.l.b16 %v2384
        %v3059 = vunpack.c.h.b16 %v2384
        %v3060 = vunpack.c.l.b16 %v2385
        %v3061 = vunpack.c.l.b16 %v2386
        %v3062 = vunpack.c.h.b16 %v2386
        %v3063 = vunpack.c.l.b16 %v2387
        %v3064 = vunpack.c.l.b16 %v2388
        %v3065 = vunpack.c.h.b16 %v2388
        %v3066 = vunpack.c.l.b16 %v2389
        %v3067 = vunpack.c.l.b16 %v2390
        %v3068 = vunpack.c.h.b16 %v2390
        %v3069 = vunpack.c.l.b16 %v2391
        %v3070 = vunpack.c.l.b16 %v2392
        %v3071 = vunpack.c.h.b16 %v2392
        %v3072 = vunpack.c.l.b16 %v2393
        %v3073 = vunpack.c.l.b16 %v2394
        %v3074 = vunpack.c.h.b16 %v2394
        %v3075 = vunpack.c.l.b16 %v2395
        %v3076 = vunpack.c.l.b16 %v2396
        %v3077 = vunpack.c.h.b16 %v2396
        %v3078 = vunpack.c.l.b16 %v2397
        %v3079 = vunpack.c.l.b16 %v2398
        %v3080 = vunpack.c.h.b16 %v2398
        %v3081 = vunpack.c.l.b16 %v2399
        %v3082 = vunpack.c.l.b16 %v2400
        %v3083 = vunpack.c.h.b16 %v2400
        %v3084 = vunpack.c.l.b16 %v2401
        %v3085 = vunpack.c.l.b16 %v2402
        %v3086 = vunpack.c.h.b16 %v2402
        %v3087 = vunpack.c.l.b16 %v2403
        %v3088 = vunpack.c.l.b16 %v2404
        %v3089 = vunpack.c.h.b16 %v2404
        %v3090 = vunpack.c.l.b16 %v2405
        %v3091 = vunpack.c.l.b16 %v2406
        %v3092 = vunpack.c.h.b16 %v2406
        %v3093 = vunpack.c.l.b16 %v2407
        %v3094 = vunpack.c.l.b16 %v2408
        %v3095 = vunpack.c.h.b16 %v2408
        %v3096 = vunpack.c.l.b16 %v2409
        %v3097 = vunpack.c.l.b16 %v2410
        %v3098 = vunpack.c.h.b16 %v2410
        %v3099 = vunpack.c.l.b16 %v2411
        %v3100 = vunpack.c.l.b16 %v2412
        %v3101 = vunpack.c.h.b16 %v2412
        %v3102 = vunpack.c.l.b16 %v2413
        %v3103 = vunpack.c.l.b16 %v2414
        %v3104 = vunpack.c.h.b16 %v2414
        %v3105 = vunpack.c.l.b16 %v2415
        %v3106 = vunpack.c.l.b16 %v2416
        %v3107 = vunpack.c.h.b16 %v2416
        %v3108 = vunpack.c.l.b16 %v2417
        %v3109 = vunpack.c.l.b16 %v2418
        %v3110 = vunpack.c.h.b16 %v2418
        %v3111 = vunpack.c.l.b16 %v2419
        %v3112 = vunpack.c.l.b16 %v2420
        %v3113 = vunpack.c.h.b16 %v2420
        %v3114 = vunpack.c.l.b16 %v2421
        %v3115 = vunpack.c.l.b16 %v2422
        %v3116 = vunpack.c.h.b16 %v2422
        %v3117 = vunpack.c.l.b16 %v2423
        %v3118 = vunpack.c.l.b16 %v2424
        %v3119 = vunpack.c.h.b16 %v2424
        %v3120 = vunpack.c.l.b16 %v2425
        %v3121 = vunpack.c.l.b16 %v2426
        %v3122 = vunpack.c.h.b16 %v2426
        %v3123 = vunpack.c.l.b16 %v2427
        %v3124 = vunpack.c.l.b16 %v2428
        %v3125 = vunpack.c.h.b16 %v2428
        %v3126 = vunpack.c.l.b16 %v2429
        %v3127 = vunpack.c.l.b16 %v2430
        %v3128 = vunpack.c.h.b16 %v2430
        %v3129 = vunpack.c.l.b16 %v2431
        %v3130 = vunpack.c.l.b16 %v2432
        %v3131 = vunpack.c.h.b16 %v2432
        %v3132 = vunpack.c.l.b16 %v2433
        %v3133 = vunpack.c.l.b16 %v2434
        %v3134 = vunpack.c.h.b16 %v2434
        %v3135 = vunpack.c.l.b16 %v2435
        %v3136 = vunpack.c.l.b16 %v2436
        %v3137 = vunpack.c.h.b16 %v2436
        %v3138 = vunpack.c.l.b16 %v2437
        %v3139 = vunpack.c.l.b16 %v2438
        %v3140 = vunpack.c.h.b16 %v2438
        %v3141 = vunpack.c.l.b16 %v2439
        %v3142 = vunpack.c.l.b16 %v2440
        %v3143 = vunpack.c.h.b16 %v2440
        %v3144 = vunpack.c.l.b16 %v2441
        %v3145 = vunpack.c.l.b16 %v2442
        %v3146 = vunpack.c.h.b16 %v2442
        %v3147 = vunpack.c.l.b16 %v2443
        %v3148 = vunpack.c.l.b16 %v2444
        %v3149 = vunpack.c.h.b16 %v2444
        %v3150 = vunpack.c.l.b16 %v2445
        %v3151 = vunpack.c.l.b16 %v2446
        %v3152 = vunpack.c.h.b16 %v2446
        %v3153 = vunpack.c.l.b16 %v2447
        %v3154 = vunpack.c.l.b16 %v2448
        %v3155 = vunpack.c.h.b16 %v2448
        %v3156 = vunpack.c.l.b16 %v2449
        %v3157 = vunpack.c.l.b16 %v2450
        %v3158 = vunpack.c.h.b16 %v2450
        %v3159 = vunpack.c.l.b16 %v2451
        %v3160 = vunpack.c.l.b16 %v2452
        %v3161 = vunpack.c.h.b16 %v2452
        %v3162 = vunpack.c.l.b16 %v2453
        %v3163 = vunpack.c.l.b16 %v2454
        %v3164 = vunpack.c.h.b16 %v2454
        %v3165 = vunpack.c.l.b16 %v2455
        %v3166 = vunpack.c.l.b16 %v2456
        %v3167 = vunpack.c.h.b16 %v2456
        %v3168 = vunpack.c.l.b16 %v2457
        %v3169 = vunpack.c.l.b16 %v2458
        %v3170 = vunpack.c.h.b16 %v2458
        %v3171 = vunpack.c.l.b16 %v2459
        %v3172 = vunpack.c.l.b16 %v2460
        %v3173 = vunpack.c.h.b16 %v2460
        %v3174 = vunpack.c.l.b16 %v2461
        %v3175 = vunpack.c.l.b16 %v2462
        %v3176 = vunpack.c.h.b16 %v2462
        %v3177 = vunpack.c.l.b16 %v2463
        %v3178 = vunpack.c.l.b16 %v2464
        %v3179 = vunpack.c.h.b16 %v2464
        %v3180 = vunpack.c.l.b16 %v2465
        %v3181 = vunpack.c.l.b16 %v2466
        %v3182 = vunpack.c.h.b16 %v2466
        %v3183 = vunpack.c.l.b16 %v2467
        %v3184 = vunpack.c.l.b16 %v2468
        %v3185 = vunpack.c.h.b16 %v2468
        %v3186 = vunpack.c.l.b16 %v2469
        %v3187 = vunpack.c.l.b16 %v2470
        %v3188 = vunpack.c.h.b16 %v2470
        %v3189 = vunpack.c.l.b16 %v2471
        %v3190 = vunpack.c.l.b16 %v2472
        %v3191 = vunpack.c.h.b16 %v2472
        %v3192 = vunpack.c.l.b16 %v2473
        %v3193 = vunpack.c.l.b16 %v2474
        %v3194 = vunpack.c.h.b16 %v2474
        %v3195 = vunpack.c.l.b16 %v2475
        %v3196 = vunpack.c.l.b16 %v2476
        %v3197 = vunpack.c.h.b16 %v2476
        %v3198 = vunpack.c.l.b16 %v2477
        %v3199 = vunpack.c.l.b16 %v2478
        %v3200 = vunpack.c.h.b16 %v2478
        %v3201 = vunpack.c.l.b16 %v2479
        %v3202 = vunpack.c.l.b16 %v2480
        %v3203 = vunpack.c.h.b16 %v2480
        %v3204 = vunpack.c.l.b16 %v2481
        %v3205 = vunpack.c.l.b16 %v2482
        %v3206 = vunpack.c.h.b16 %v2482
        %v3207 = vunpack.c.l.b16 %v2483
        %v3208 = vunpack.c.l.b16 %v2484
        %v3209 = vunpack.c.h.b16 %v2484
        %v3210 = vunpack.c.l.b16 %v2485
        %v3211 = vunpack.c.l.b16 %v2486
        %v3212 = vunpack.c.h.b16 %v2486
        %v3213 = vunpack.c.l.b16 %v2487
        %v3214 = vunpack.c.l.b16 %v2488
        %v3215 = vunpack.c.h.b16 %v2488
        %v3216 = vunpack.c.l.b16 %v2489
        %v3217 = vunpack.c.l.b16 %v2490
        %v3218 = vunpack.c.h.b16 %v2490
        %v3219 = vunpack.c.l.b16 %v2491
        %v3220 = vunpack.c.l.b16 %v2492
        %v3221 = vunpack.c.h.b16 %v2492
        %v3222 = vunpack.c.l.b16 %v2493
        %v3223 = vunpack.c.l.b16 %v2494
        %v3224 = vunpack.c.h.b16 %v2494
        %v3225 = vunpack.c.l.b16 %v2495
        %v3226 = vunpack.c.l.b16 %v2496
        %v3227 = vunpack.c.h.b16 %v2496
        %v3228 = vunpack.c.l.b16 %v2497
        %v3229 = vunpack.c.l.b16 %v2498
        %v3230 = vunpack.c.h.b16 %v2498
        %v3231 = vunpack.c.l.b16 %v2499
        %v3232 = vunpack.c.l.b16 %v2500
        %v3233 = vunpack.c.h.b16 %v2500
        %v3234 = vunpack.c.l.b16 %v2501
        %v3235 = vunpack.c.l.b16 %v2502
        %v3236 = vunpack.c.h.b16 %v2502
        %v3237 = vunpack.c.l.b16 %v2503
        %v3238 = vunpack.c.l.b16 %v2504
        %v3239 = vunpack.c.h.b16 %v2504
        %v3240 = vunpack.c.l.b16 %v2505
        %v3241 = vunpack.c.l.b16 %v2506
        %v3242 = vunpack.c.h.b16 %v2506
        %v3243 = vunpack.c.l.b16 %v2507
        %v3244 = vunpack.c.l.b16 %v2508
        %v3245 = vunpack.c.h.b16 %v2508
        %v3246 = vunpack.c.l.b16 %v2509
        %v3247 = vpack.c.b16 %v2818, %v2815
        %v3248 = vpack.c.b16 %v2819, %v2816
        %v3249 = vpack.c.b16 %v2820, %v2817
        %v3250 = vpack.c.b16 %v2824, %v2821
        %v3251 = vpack.c.b16 %v2825, %v2822
        %v3252 = vpack.c.b16 %v2826, %v2823
        %v3253 = vpack.c.b16 %v2830, %v2827
        %v3254 = vpack.c.b16 %v2831, %v2828
        %v3255 = vpack.c.b16 %v2832, %v2829
        %v3256 = vpack.c.b16 %v2836, %v2833
        %v3257 = vpack.c.b16 %v2837, %v2834
        %v3258 = vpack.c.b16 %v2838, %v2835
        %v3259 = vpack.c.b16 %v2842, %v2839
        %v3260 = vpack.c.b16 %v2843, %v2840
        %v3261 = vpack.c.b16 %v2844, %v2841
        %v3262 = vpack.c.b16 %v2848, %v2845
        %v3263 = vpack.c.b16 %v2849, %v2846
        %v3264 = vpack.c.b16 %v2850, %v2847
        %v3265 = vpack.c.b16 %v2854, %v2851
        %v3266 = vpack.c.b16 %v2855, %v2852
        %v3267 = vpack.c.b16 %v2856, %v2853
        %v3268 = vpack.c.b16 %v2860, %v2857
        %v3269 = vpack.c.b16 %v2861, %v2858
        %v3270 = vpack.c.b16 %v2862, %v2859
        %v3271 = vpack.c.b16 %v2866, %v2863
        %v3272 = vpack.c.b16 %v2867, %v2864
        %v3273 = vpack.c.b16 %v2868, %v2865
        %v3274 = vpack.c.b16 %v2872, %v2869
        %v3275 = vpack.c.b16 %v2873, %v2870
        %v3276 = vpack.c.b16 %v2874, %v2871
        %v3277 = vpack.c.b16 %v2878, %v2875
        %v3278 = vpack.c.b16 %v2879, %v2876
        %v3279 = vpack.c.b16 %v2880, %v2877
        %v3280 = vpack.c.b16 %v2884, %v2881
        %v3281 = vpack.c.b16 %v2885, %v2882
        %v3282 = vpack.c.b16 %v2886, %v2883
        %v3283 = vpack.c.b16 %v2890, %v2887
        %v3284 = vpack.c.b16 %v2891, %v2888
        %v3285 = vpack.c.b16 %v2892, %v2889
        %v3286 = vpack.c.b16 %v2896, %v2893
        %v3287 = vpack.c.b16 %v2897, %v2894
        %v3288 = vpack.c.b16 %v2898, %v2895
        %v3289 = vpack.c.b16 %v2902, %v2899
        %v3290 = vpack.c.b16 %v2903, %v2900
        %v3291 = vpack.c.b16 %v2904, %v2901
        %v3292 = vpack.c.b16 %v2908, %v2905
        %v3293 = vpack.c.b16 %v2909, %v2906
        %v3294 = vpack.c.b16 %v2910, %v2907
        %v3295 = vpack.c.b16 %v2914, %v2911
        %v3296 = vpack.c.b16 %v2915, %v2912
        %v3297 = vpack.c.b16 %v2916, %v2913
        %v3298 = vpack.c.b16 %v2920, %v2917
        %v3299 = vpack.c.b16 %v2921, %v2918
        %v3300 = vpack.c.b16 %v2922, %v2919
        %v3301 = vpack.c.b16 %v2926, %v2923
        %v3302 = vpack.c.b16 %v2927, %v2924
        %v3303 = vpack.c.b16 %v2928, %v2925
        %v3304 = vpack.c.b16 %v2932, %v2929
        %v3305 = vpack.c.b16 %v2933, %v2930
        %v3306 = vpack.c.b16 %v2934, %v2931
        %v3307 = vpack.c.b16 %v2938, %v2935
        %v3308 = vpack.c.b16 %v2939, %v2936
        %v3309 = vpack.c.b16 %v2940, %v2937
        %v3310 = vpack.c.b16 %v2944, %v2941
        %v3311 = vpack.c.b16 %v2945, %v2942
        %v3312 = vpack.c.b16 %v2946, %v2943
        %v3313 = vpack.c.b16 %v2950, %v2947
        %v3314 = vpack.c.b16 %v2951, %v2948
        %v3315 = vpack.c.b16 %v2952, %v2949
        %v3316 = vpack.c.b16 %v2956, %v2953
        %v3317 = vpack.c.b16 %v2957, %v2954
        %v3318 = vpack.c.b16 %v2958, %v2955
        %v3319 = vpack.c.b16 %v2962, %v2959
        %v3320 = vpack.c.b16 %v2963, %v2960
        %v3321 = vpack.c.b16 %v2964, %v2961
        %v3322 = vpack.c.b16 %v2968, %v2965
        %v3323 = vpack.c.b16 %v2969, %v2966
        %v3324 = vpack.c.b16 %v2970, %v2967
        %v3325 = vpack.c.b16 %v2974, %v2971
        %v3326 = vpack.c.b16 %v2975, %v2972
        %v3327 = vpack.c.b16 %v2976, %v2973
        %v3328 = vpack.c.b16 %v2980, %v2977
        %v3329 = vpack.c.b16 %v2981, %v2978
        %v3330 = vpack.c.b16 %v2982, %v2979
        %v3331 = vpack.c.b16 %v2986, %v2983
        %v3332 = vpack.c.b16 %v2987, %v2984
        %v3333 = vpack.c.b16 %v2988, %v2985
        %v3334 = vpack.c.b16 %v2992, %v2989
        %v3335 = vpack.c.b16 %v2993, %v2990
        %v3336 = vpack.c.b16 %v2994, %v2991
        %v3337 = vpack.c.b16 %v2998, %v2995
        %v3338 = vpack.c.b16 %v2999, %v2996
        %v3339 = vpack.c.b16 %v3000, %v2997
        %v3340 = vpack.c.b16 %v3004, %v3001
        %v3341 = vpack.c.b16 %v3005, %v3002
        %v3342 = vpack.c.b16 %v3006, %v3003
        %v3343 = vpack.c.b16 %v3010, %v3007
        %v3344 = vpack.c.b16 %v3011, %v3008
        %v3345 = vpack.c.b16 %v3012, %v3009
        %v3346 = vpack.c.b16 %v3016, %v3013
        %v3347 = vpack.c.b16 %v3017, %v3014
        %v3348 = vpack.c.b16 %v3018, %v3015
        %v3349 = vpack.c.b16 %v3022, %v3019
        %v3350 = vpack.c.b16 %v3023, %v3020
        %v3351 = vpack.c.b16 %v3024, %v3021
        %v3352 = vpack.c.b16 %v3028, %v3025
        %v3353 = vpack.c.b16 %v3029, %v3026
        %v3354 = vpack.c.b16 %v3030, %v3027
        %v3355 = vpack.c.b16 %v3034, %v3031
        %v3356 = vpack.c.b16 %v3035, %v3032
        %v3357 = vpack.c.b16 %v3036, %v3033
        %v3358 = vpack.c.b16 %v3040, %v3037
        %v3359 = vpack.c.b16 %v3041, %v3038
        %v3360 = vpack.c.b16 %v3042, %v3039
        %v3361 = vpack.c.b16 %v3046, %v3043
        %v3362 = vpack.c.b16 %v3047, %v3044
        %v3363 = vpack.c.b16 %v3048, %v3045
        %v3364 = vpack.c.b16 %v3052, %v3049
        %v3365 = vpack.c.b16 %v3053, %v3050
        %v3366 = vpack.c.b16 %v3054, %v3051
        %v3367 = vpack.c.b16 %v3058, %v3055
        %v3368 = vpack.c.b16 %v3059, %v3056
        %v3369 = vpack.c.b16 %v3060, %v3057
        %v3370 = vpack.c.b16 %v3064, %v3061
        %v3371 = vpack.c.b16 %v3065, %v3062
        %v3372 = vpack.c.b16 %v3066, %v3063
        %v3373 = vpack.c.b16 %v3070, %v3067
        %v3374 = vpack.c.b16 %v3071, %v3068
        %v3375 = vpack.c.b16 %v3072, %v3069
        %v3376 = vpack.c.b16 %v3076, %v3073
        %v3377 = vpack.c.b16 %v3077, %v3074
        %v3378 = vpack.c.b16 %v3078, %v3075
        %v3379 = vpack.c.b16 %v3082, %v3079
        %v3380 = vpack.c.b16 %v3083, %v3080
        %v3381 = vpack.c.b16 %v3084, %v3081
        %v3382 = vpack.c.b16 %v3088, %v3085
        %v3383 = vpack.c.b16 %v3089, %v3086
        %v3384 = vpack.c.b16 %v3090, %v3087
        %v3385 = vpack.c.b16 %v3094, %v3091
        %v3386 = vpack.c.b16 %v3095, %v3092
        %v3387 = vpack.c.b16 %v3096, %v3093
        %v3388 = vpack.c.b16 %v3100, %v3097
        %v3389 = vpack.c.b16 %v3101, %v3098
        %v3390 = vpack.c.b16 %v3102, %v3099
        %v3391 = vpack.c.b16 %v3106, %v3103
        %v3392 = vpack.c.b16 %v3107, %v3104
        %v3393 = vpack.c.b16 %v3108, %v3105
        %v3394 = vpack.c.b16 %v3112, %v3109
        %v3395 = vpack.c.b16 %v3113, %v3110
        %v3396 = vpack.c.b16 %v3114, %v3111
        %v3397 = vpack.c.b16 %v3118, %v3115
        %v3398 = vpack.c.b16 %v3119, %v3116
        %v3399 = vpack.c.b16 %v3120, %v3117
        %v3400 = vpack.c.b16 %v3124, %v3121
        %v3401 = vpack.c.b16 %v3125, %v3122
        %v3402 = vpack.c.b16 %v3126, %v3123
        %v3403 = vpack.c.b16 %v3130, %v3127
        %v3404 = vpack.c.b16 %v3131, %v3128
        %v3405 = vpack.c.b16 %v3132, %v3129
        %v3406 = vpack.c.b16 %v3136, %v3133
        %v3407 = vpack.c.b16 %v3137, %v3134
        %v3408 = vpack.c.b16 %v3138, %v3135
        %v3409 = vpack.c.b16 %v3142, %v3139
        %v3410 = vpack.c.b16 %v3143, %v3140
        %v3411 = vpack.c.b16 %v3144, %v3141
        %v3412 = vpack.c.b16 %v3148, %v3145
        %v3413 = vpack.c.b16 %v3149, %v3146
        %v3414 = vpack.c.b16 %v3150, %v3147
        %v3415 = vpack.c.b16 %v3154, %v3151
        %v3416 = vpack.c.b16 %v3155, %v3152
        %v3417 = vpack.c.b16 %v3156, %v3153
        %v3418 = vpack.c.b16 %v3160, %v3157
        %v3419 = vpack.c.b16 %v3161, %v3158
        %v3420 = vpack.c.b16 %v3162, %v3159
        %v3421 = vpack.c.b16 %v3166, %v3163
        %v3422 = vpack.c.b16 %v3167, %v3164
        %v3423 = vpack.c.b16 %v3168, %v3165
        %v3424 = vpack.c.b16 %v3172, %v3169
        %v3425 = vpack.c.b16 %v3173, %v3170
        %v3426 = vpack.c.b16 %v3174, %v3171
        %v3427 = vpack.c.b16 %v3178, %v3175
        %v3428 = vpack.c.b16 %v3179, %v3176
        %v3429 = vpack.c.b16 %v3180, %v3177
        %v3430 = vpack.c.b16 %v3184, %v3181
        %v3431 = vpack.c.b16 %v3185, %v3182
        %v3432 = vpack.c.b16 %v3186, %v3183
        %v3433 = vpack.c.b16 %v3190, %v3187
        %v3434 = vpack.c.b16 %v3191, %v3188
        %v3435 = vpack.c.b16 %v3192, %v3189
        %v3436 = vpack.c.b16 %v3196, %v3193
        %v3437 = vpack.c.b16 %v3197, %v3194
        %v3438 = vpack.c.b16 %v3198, %v3195
        %v3439 = vpack.c.b16 %v3202, %v3199
        %v3440 = vpack.c.b16 %v3203, %v3200
        %v3441 = vpack.c.b16 %v3204, %v3201
        %v3442 = vpack.c.b16 %v3208, %v3205
        %v3443 = vpack.c.b16 %v3209, %v3206
        %v3444 = vpack.c.b16 %v3210, %v3207
        %v3445 = vpack.c.b16 %v3214, %v3211
        %v3446 = vpack.c.b16 %v3215, %v3212
        %v3447 = vpack.c.b16 %v3216, %v3213
        %v3448 = vpack.c.b16 %v3220, %v3217
        %v3449 = vpack.c.b16 %v3221, %v3218
        %v3450 = vpack.c.b16 %v3222, %v3219
        %v3451 = vpack.c.b16 %v3226, %v3223
        %v3452 = vpack.c.b16 %v3227, %v3224
        %v3453 = vpack.c.b16 %v3228, %v3225
        %v3454 = vpack.c.b16 %v3232, %v3229
        %v3455 = vpack.c.b16 %v3233, %v3230
        %v3456 = vpack.c.b16 %v3234, %v3231
        %v3457 = vpack.c.b16 %v3238, %v3235
        %v3458 = vpack.c.b16 %v3239, %v3236
        %v3459 = vpack.c.b16 %v3240, %v3237
        %v3460 = vpack.c.b16 %v3244, %v3241
        %v3461 = vpack.c.b16 %v3245, %v3242
        %v3462 = vpack.c.b16 %v3246, %v3243
        %3679 = vmatprep.subr.bf16.mxu0 %v3248
        %3680 = vmatpush1.bf16.msra.mxu0 %v3247
        %3681 = vmatprep.subr.bf16.mxu0 %v3251
        %3682 = vmatpush1.bf16.msra.mxu0 %v3250
        %3683 = vmatprep.subr.bf16.mxu0 %v3254
        %3684 = vmatpush1.bf16.msra.mxu0 %v3253
        %3685 = vmatprep.subr.bf16.mxu0 %v3257
        %3686 = vmatpush1.bf16.msra.mxu0 %v3256
        %3687 = vmatprep.subr.bf16.mxu0 %v3260
        %3688 = vmatpush1.bf16.msra.mxu0 %v3259
        %3689 = vmatprep.subr.bf16.mxu0 %v3263
        %3690 = vmatpush1.bf16.msra.mxu0 %v3262
        %3691 = vmatprep.subr.bf16.mxu0 %v3266
        %3692 = vmatpush1.bf16.msra.mxu0 %v3265
        %3693 = vmatprep.subr.bf16.mxu0 %v3269
        %3694 = vmatpush1.bf16.msra.mxu0 %v3268
        %3695 = vmatprep.subr.bf16.mxu0 %v3272
        %3696 = vmatpush1.bf16.msra.mxu0 %v3271
        %3697 = vmatprep.subr.bf16.mxu0 %v3275
        %3698 = vmatpush1.bf16.msra.mxu0 %v3274
        %3699 = vmatprep.subr.bf16.mxu0 %v3278
        %3700 = vmatpush1.bf16.msra.mxu0 %v3277
        %3701 = vmatprep.subr.bf16.mxu0 %v3281
        %3702 = vmatpush1.bf16.msra.mxu0 %v3280
        %3703 = vmatprep.subr.bf16.mxu0 %v3284
        %3704 = vmatpush1.bf16.msra.mxu0 %v3283
        %3705 = vmatprep.subr.bf16.mxu0 %v3287
        %3706 = vmatpush1.bf16.msra.mxu0 %v3286
        %3707 = vmatprep.subr.bf16.mxu0 %v3290
        %3708 = vmatpush1.bf16.msra.mxu0 %v3289
        %3709 = vmatprep.subr.bf16.mxu0 %v3293
        %3710 = vmatpush1.bf16.msra.mxu0 %v3292
        %3711 = vmatprep.mubr.bf16.mxu0 %v2214
        %3712 = vmatmul.mubr.bf16.gmra.mrb[0].mxu0 %v2213
        %v3713 = vpop.f32.mrb[0].mxu0
        %v3714 = vadd.f32 %v2515, %v3713
        %v3715 = vpop.f32.mrb[0].mxu0
        %v3716 = vadd.f32 %v2519, %v3715
        %v3717 = vpop.f32.mrb[0].mxu0
        %v3718 = vadd.f32 %v2515, %v3717
        %v3719 = vpop.f32.mrb[0].mxu0
        %v3720 = vadd.f32 %v2519, %v3719
        %3721 = vdwg.mxu0
        %3722 = vmatprep.subr.bf16.mxu0 %v3296
        %3723 = vmatpush1.bf16.msra.mxu0 %v3295
        %3724 = vmatprep.subr.bf16.mxu0 %v3299
        %3725 = vmatpush1.bf16.msra.mxu0 %v3298
        %3726 = vmatprep.subr.bf16.mxu0 %v3302
        %3727 = vmatpush1.bf16.msra.mxu0 %v3301
        %3728 = vmatprep.subr.bf16.mxu0 %v3305
        %3729 = vmatpush1.bf16.msra.mxu0 %v3304
        %3730 = vmatprep.subr.bf16.mxu0 %v3308
        %3731 = vmatpush1.bf16.msra.mxu0 %v3307
        %3732 = vmatprep.subr.bf16.mxu0 %v3311
        %3733 = vmatpush1.bf16.msra.mxu0 %v3310
        %3734 = vmatprep.subr.bf16.mxu0 %v3314
        %3735 = vmatpush1.bf16.msra.mxu0 %v3313
        %3736 = vmatprep.subr.bf16.mxu0 %v3317
        %3737 = vmatpush1.bf16.msra.mxu0 %v3316
        %3738 = vmatprep.subr.bf16.mxu0 %v3320
        %3739 = vmatpush1.bf16.msra.mxu0 %v3319
        %3740 = vmatprep.subr.bf16.mxu0 %v3323
        %3741 = vmatpush1.bf16.msra.mxu0 %v3322
        %3742 = vmatprep.subr.bf16.mxu0 %v3326
        %3743 = vmatpush1.bf16.msra.mxu0 %v3325
        %3744 = vmatprep.subr.bf16.mxu0 %v3329
        %3745 = vmatpush1.bf16.msra.mxu0 %v3328
        %3746 = vmatprep.subr.bf16.mxu0 %v3332
        %3747 = vmatpush1.bf16.msra.mxu0 %v3331
        %3748 = vmatprep.subr.bf16.mxu0 %v3335
        %3749 = vmatpush1.bf16.msra.mxu0 %v3334
        %3750 = vmatprep.subr.bf16.mxu0 %v3338
        %3751 = vmatpush1.bf16.msra.mxu0 %v3337
        %3752 = vmatprep.subr.bf16.mxu0 %v3341
        %3753 = vmatpush1.bf16.msra.mxu0 %v3340
        %3754 = vmatprep.mubr.bf16.mxu0 %v2216
        %3755 = vmatmul.mubr.bf16.gmra.mrb[0].mxu0 %v2215
        %v3756 = vpop.f32.mrb[0].mxu0
        %v3757 = vadd.f32 %v3714, %v3756
        %v3758 = vpop.f32.mrb[0].mxu0
        %v3759 = vadd.f32 %v3716, %v3758
        %v3760 = vpop.f32.mrb[0].mxu0
        %v3761 = vadd.f32 %v3718, %v3760
        %v3762 = vpop.f32.mrb[0].mxu0
        %v3763 = vadd.f32 %v3720, %v3762
        %3764 = vdwg.mxu0
        %3765 = vmatprep.subr.bf16.mxu0 %v3344
        %3766 = vmatpush1.bf16.msra.mxu0 %v3343
        %3767 = vmatprep.subr.bf16.mxu0 %v3347
        %3768 = vmatpush1.bf16.msra.mxu0 %v3346
        %3769 = vmatprep.subr.bf16.mxu0 %v3350
        %3770 = vmatpush1.bf16.msra.mxu0 %v3349
        %3771 = vmatprep.subr.bf16.mxu0 %v3353
        %3772 = vmatpush1.bf16.msra.mxu0 %v3352
        %3773 = vmatprep.subr.bf16.mxu0 %v3356
        %3774 = vmatpush1.bf16.msra.mxu0 %v3355
        %3775 = vmatprep.subr.bf16.mxu0 %v3359
        %3776 = vmatpush1.bf16.msra.mxu0 %v3358
        %3777 = vmatprep.subr.bf16.mxu0 %v3362
        %3778 = vmatpush1.bf16.msra.mxu0 %v3361
        %3779 = vmatprep.subr.bf16.mxu0 %v3365
        %3780 = vmatpush1.bf16.msra.mxu0 %v3364
        %3781 = vmatprep.subr.bf16.mxu0 %v3368
        %3782 = vmatpush1.bf16.msra.mxu0 %v3367
        %3783 = vmatprep.subr.bf16.mxu0 %v3371
        %3784 = vmatpush1.bf16.msra.mxu0 %v3370
        %3785 = vmatprep.subr.bf16.mxu0 %v3374
        %3786 = vmatpush1.bf16.msra.mxu0 %v3373
        %3787 = vmatprep.subr.bf16.mxu0 %v3377
        %3788 = vmatpush1.bf16.msra.mxu0 %v3376
        %3789 = vmatprep.subr.bf16.mxu0 %v3380
        %3790 = vmatpush1.bf16.msra.mxu0 %v3379
        %3791 = vmatprep.subr.bf16.mxu0 %v3383
        %3792 = vmatpush1.bf16.msra.mxu0 %v3382
        %3793 = vmatprep.subr.bf16.mxu0 %v3386
        %3794 = vmatpush1.bf16.msra.mxu0 %v3385
        %3795 = vmatprep.subr.bf16.mxu0 %v3389
        %3796 = vmatpush1.bf16.msra.mxu0 %v3388
        %3797 = vmatprep.mubr.bf16.mxu0 %v2218
        %3798 = vmatmul.mubr.bf16.gmra.mrb[0].mxu0 %v2217
        %v3799 = vpop.f32.mrb[0].mxu0
        %v3800 = vadd.f32 %v3757, %v3799
        %v3801 = vpop.f32.mrb[0].mxu0
        %v3802 = vadd.f32 %v3759, %v3801
        %v3803 = vpop.f32.mrb[0].mxu0
        %v3804 = vadd.f32 %v3761, %v3803
        %v3805 = vpop.f32.mrb[0].mxu0
        %v3806 = vadd.f32 %v3763, %v3805
        %3807 = vdwg.mxu0
        %3808 = vmatprep.subr.bf16.mxu0 %v3392
        %3809 = vmatpush1.bf16.msra.mxu0 %v3391
        %3810 = vmatprep.subr.bf16.mxu0 %v3395
        %3811 = vmatpush1.bf16.msra.mxu0 %v3394
        %3812 = vmatprep.subr.bf16.mxu0 %v3398
        %3813 = vmatpush1.bf16.msra.mxu0 %v3397
        %3814 = vmatprep.subr.bf16.mxu0 %v3401
        %3815 = vmatpush1.bf16.msra.mxu0 %v3400
        %3816 = vmatprep.subr.bf16.mxu0 %v3404
        %3817 = vmatpush1.bf16.msra.mxu0 %v3403
        %3818 = vmatprep.subr.bf16.mxu0 %v3407
        %3819 = vmatpush1.bf16.msra.mxu0 %v3406
        %3820 = vmatprep.subr.bf16.mxu0 %v3410
        %3821 = vmatpush1.bf16.msra.mxu0 %v3409
        %3822 = vmatprep.subr.bf16.mxu0 %v3413
        %3823 = vmatpush1.bf16.msra.mxu0 %v3412
        %3824 = vmatprep.subr.bf16.mxu0 %v3416
        %3825 = vmatpush1.bf16.msra.mxu0 %v3415
        %3826 = vmatprep.subr.bf16.mxu0 %v3419
        %3827 = vmatpush1.bf16.msra.mxu0 %v3418
        %3828 = vmatprep.subr.bf16.mxu0 %v3422
        %3829 = vmatpush1.bf16.msra.mxu0 %v3421
        %3830 = vmatprep.subr.bf16.mxu0 %v3425
        %3831 = vmatpush1.bf16.msra.mxu0 %v3424
        %3832 = vmatprep.subr.bf16.mxu0 %v3428
        %3833 = vmatpush1.bf16.msra.mxu0 %v3427
        %3834 = vmatprep.subr.bf16.mxu0 %v3431
        %3835 = vmatpush1.bf16.msra.mxu0 %v3430
        %3836 = vmatprep.subr.bf16.mxu0 %v3434
        %3837 = vmatpush1.bf16.msra.mxu0 %v3433
        %3838 = vmatprep.subr.bf16.mxu0 %v3437
        %3839 = vmatpush1.bf16.msra.mxu0 %v3436
        %3840 = vmatprep.mubr.bf16.mxu0 %v2220
        %3841 = vmatmul.mubr.bf16.gmra.mrb[0].mxu0 %v2219
        %v3842 = vpop.f32.mrb[0].mxu0
        %v3843 = vadd.f32 %v3800, %v3842
        %v3844 = vpop.f32.mrb[0].mxu0
        %v3845 = vadd.f32 %v3802, %v3844
        %v3846 = vpop.f32.mrb[0].mxu0
        %v3847 = vadd.f32 %v3804, %v3846
        %v3848 = vpop.f32.mrb[0].mxu0
        %v3849 = vadd.f32 %v3806, %v3848
        %3850 = vdwg.mxu0
        %3851 = vmatprep.subr.bf16.mxu0 %v3440
        %3852 = vmatpush1.bf16.msra.mxu0 %v3439
        %3853 = vmatprep.subr.bf16.mxu0 %v3443
        %3854 = vmatpush1.bf16.msra.mxu0 %v3442
        %3855 = vmatprep.subr.bf16.mxu0 %v3446
        %3856 = vmatpush1.bf16.msra.mxu0 %v3445
        %3857 = vmatprep.subr.bf16.mxu0 %v3449
        %3858 = vmatpush1.bf16.msra.mxu0 %v3448
        %3859 = vmatprep.subr.bf16.mxu0 %v3452
        %3860 = vmatpush1.bf16.msra.mxu0 %v3451
        %3861 = vmatprep.subr.bf16.mxu0 %v3455
        %3862 = vmatpush1.bf16.msra.mxu0 %v3454
        %3863 = vmatprep.subr.bf16.mxu0 %v3458
        %3864 = vmatpush1.bf16.msra.mxu0 %v3457
        %3865 = vmatprep.subr.bf16.mxu0 %v3461
        %3866 = vmatpush1.bf16.msra.mxu0 %v3460
        %3867 = vmatprep.subr.bf16.mxu0 0
        %3868 = vmatpush1.bf16.msra.mxu0 0
        %3869 = vmatprep.subr.bf16.mxu0 0
        %3870 = vmatpush1.bf16.msra.mxu0 0
        %3871 = vmatprep.subr.bf16.mxu0 0
        %3872 = vmatpush1.bf16.msra.mxu0 0
        %3873 = vmatprep.subr.bf16.mxu0 0
        %3874 = vmatpush1.bf16.msra.mxu0 0
        %3875 = vmatprep.subr.bf16.mxu0 0
        %3876 = vmatpush1.bf16.msra.mxu0 0
        %3877 = vmatprep.subr.bf16.mxu0 0
        %3878 = vmatpush1.bf16.msra.mxu0 0
        %3879 = vmatprep.subr.bf16.mxu0 0
        %3880 = vmatpush1.bf16.msra.mxu0 0
        %3881 = vmatprep.subr.bf16.mxu0 0
        %3882 = vmatpush1.bf16.msra.mxu0 0
        %3883 = vmatprep.mubr.bf16.mxu0 0
        %3884 = vmatmul.mubr.bf16.gmra.mrb[0].mxu0 %v2221
        %v3885 = vpop.f32.mrb[0].mxu0
        %v3886 = vadd.f32 %v3843, %v3885
        %v3887 = vpop.f32.mrb[0].mxu0
        %v3888 = vadd.f32 %v3845, %v3887
        %v3889 = vpop.f32.mrb[0].mxu0
        %v3890 = vadd.f32 %v3847, %v3889
        %v3891 = vpop.f32.mrb[0].mxu0
        %v3892 = vadd.f32 %v3849, %v3891
        %3893 = vdwg.mxu0
        %3894 = vmatprep.subr.bf16.mxu0 0
        %3895 = vmatpush1.bf16.msra.mxu0 %v3249
        %3896 = vmatprep.subr.bf16.mxu0 0
        %3897 = vmatpush1.bf16.msra.mxu0 %v3252
        %3898 = vmatprep.subr.bf16.mxu0 0
        %3899 = vmatpush1.bf16.msra.mxu0 %v3255
        %3900 = vmatprep.subr.bf16.mxu0 0
        %3901 = vmatpush1.bf16.msra.mxu0 %v3258
        %3902 = vmatprep.subr.bf16.mxu0 0
        %3903 = vmatpush1.bf16.msra.mxu0 %v3261
        %3904 = vmatprep.subr.bf16.mxu0 0
        %3905 = vmatpush1.bf16.msra.mxu0 %v3264
        %3906 = vmatprep.subr.bf16.mxu0 0
        %3907 = vmatpush1.bf16.msra.mxu0 %v3267
        %3908 = vmatprep.subr.bf16.mxu0 0
        %3909 = vmatpush1.bf16.msra.mxu0 %v3270
        %3910 = vmatprep.subr.bf16.mxu0 0
        %3911 = vmatpush1.bf16.msra.mxu0 %v3273
        %3912 = vmatprep.subr.bf16.mxu0 0
        %3913 = vmatpush1.bf16.msra.mxu0 %v3276
        %3914 = vmatprep.subr.bf16.mxu0 0
        %3915 = vmatpush1.bf16.msra.mxu0 %v3279
        %3916 = vmatprep.subr.bf16.mxu0 0
        %3917 = vmatpush1.bf16.msra.mxu0 %v3282
        %3918 = vmatprep.subr.bf16.mxu0 0
        %3919 = vmatpush1.bf16.msra.mxu0 %v3285
        %3920 = vmatprep.subr.bf16.mxu0 0
        %3921 = vmatpush1.bf16.msra.mxu0 %v3288
        %3922 = vmatprep.subr.bf16.mxu0 0
        %3923 = vmatpush1.bf16.msra.mxu0 %v3291
        %3924 = vmatprep.subr.bf16.mxu0 0
        %3925 = vmatpush1.bf16.msra.mxu0 %v3294
        %3926 = vmatprep.mubr.bf16.mxu0 %v2214
        %3927 = vmatmul.mubr.bf16.gmra.mrb[0].mxu0 %v2213
        %v3928 = vpop.f32.mrb[0].mxu0
        %v3929 = vadd.f32 %v2523, %v3928
        %v3930 = vpop.f32.mrb[0].mxu0
        %v3931 = vpop.f32.mrb[0].mxu0
        %v3932 = vadd.f32 %v2523, %v3931
        %v3933 = vpop.f32.mrb[0].mxu0
        %3934 = vdwg.mxu0
        %3935 = vmatprep.subr.bf16.mxu0 0
        %3936 = vmatpush1.bf16.msra.mxu0 %v3297
        %3937 = vmatprep.subr.bf16.mxu0 0
        %3938 = vmatpush1.bf16.msra.mxu0 %v3300
        %3939 = vmatprep.subr.bf16.mxu0 0
        %3940 = vmatpush1.bf16.msra.mxu0 %v3303
        %3941 = vmatprep.subr.bf16.mxu0 0
        %3942 = vmatpush1.bf16.msra.mxu0 %v3306
        %3943 = vmatprep.subr.bf16.mxu0 0
        %3944 = vmatpush1.bf16.msra.mxu0 %v3309
        %3945 = vmatprep.subr.bf16.mxu0 0
        %3946 = vmatpush1.bf16.msra.mxu0 %v3312
        %3947 = vmatprep.subr.bf16.mxu0 0
        %3948 = vmatpush1.bf16.msra.mxu0 %v3315
        %3949 = vmatprep.subr.bf16.mxu0 0
        %3950 = vmatpush1.bf16.msra.mxu0 %v3318
        %3951 = vmatprep.subr.bf16.mxu0 0
        %3952 = vmatpush1.bf16.msra.mxu0 %v3321
        %3953 = vmatprep.subr.bf16.mxu0 0
        %3954 = vmatpush1.bf16.msra.mxu0 %v3324
        %3955 = vmatprep.subr.bf16.mxu0 0
        %3956 = vmatpush1.bf16.msra.mxu0 %v3327
        %3957 = vmatprep.subr.bf16.mxu0 0
        %3958 = vmatpush1.bf16.msra.mxu0 %v3330
        %3959 = vmatprep.subr.bf16.mxu0 0
        %3960 = vmatpush1.bf16.msra.mxu0 %v3333
        %3961 = vmatprep.subr.bf16.mxu0 0
        %3962 = vmatpush1.bf16.msra.mxu0 %v3336
        %3963 = vmatprep.subr.bf16.mxu0 0
        %3964 = vmatpush1.bf16.msra.mxu0 %v3339
        %3965 = vmatprep.subr.bf16.mxu0 0
        %3966 = vmatpush1.bf16.msra.mxu0 %v3342
        %3967 = vmatprep.mubr.bf16.mxu0 %v2216
        %3968 = vmatmul.mubr.bf16.gmra.mrb[0].mxu0 %v2215
        %v3969 = vpop.f32.mrb[0].mxu0
        %v3970 = vadd.f32 %v3929, %v3969
        %v3971 = vpop.f32.mrb[0].mxu0
        %v3972 = vpop.f32.mrb[0].mxu0
        %v3973 = vadd.f32 %v3932, %v3972
        %v3974 = vpop.f32.mrb[0].mxu0
        %3975 = vdwg.mxu0
        %3976 = vmatprep.subr.bf16.mxu0 0
        %3977 = vmatpush1.bf16.msra.mxu0 %v3345
        %3978 = vmatprep.subr.bf16.mxu0 0
        %3979 = vmatpush1.bf16.msra.mxu0 %v3348
        %3980 = vmatprep.subr.bf16.mxu0 0
        %3981 = vmatpush1.bf16.msra.mxu0 %v3351
        %3982 = vmatprep.subr.bf16.mxu0 0
        %3983 = vmatpush1.bf16.msra.mxu0 %v3354
        %3984 = vmatprep.subr.bf16.mxu0 0
        %3985 = vmatpush1.bf16.msra.mxu0 %v3357
        %3986 = vmatprep.subr.bf16.mxu0 0
        %3987 = vmatpush1.bf16.msra.mxu0 %v3360
        %3988 = vmatprep.subr.bf16.mxu0 0
        %3989 = vmatpush1.bf16.msra.mxu0 %v3363
        %3990 = vmatprep.subr.bf16.mxu0 0
        %3991 = vmatpush1.bf16.msra.mxu0 %v3366
        %3992 = vmatprep.subr.bf16.mxu0 0
        %3993 = vmatpush1.bf16.msra.mxu0 %v3369
        %3994 = vmatprep.subr.bf16.mxu0 0
        %3995 = vmatpush1.bf16.msra.mxu0 %v3372
        %3996 = vmatprep.subr.bf16.mxu0 0
        %3997 = vmatpush1.bf16.msra.mxu0 %v3375
        %3998 = vmatprep.subr.bf16.mxu0 0
        %3999 = vmatpush1.bf16.msra.mxu0 %v3378
        %4000 = vmatprep.subr.bf16.mxu0 0
        %4001 = vmatpush1.bf16.msra.mxu0 %v3381
        %4002 = vmatprep.subr.bf16.mxu0 0
        %4003 = vmatpush1.bf16.msra.mxu0 %v3384
        %4004 = vmatprep.subr.bf16.mxu0 0
        %4005 = vmatpush1.bf16.msra.mxu0 %v3387
        %4006 = vmatprep.subr.bf16.mxu0 0
        %4007 = vmatpush1.bf16.msra.mxu0 %v3390
        %4008 = vmatprep.mubr.bf16.mxu0 %v2218
        %4009 = vmatmul.mubr.bf16.gmra.mrb[0].mxu0 %v2217
        %v4010 = vpop.f32.mrb[0].mxu0
        %v4011 = vadd.f32 %v3970, %v4010
        %v4012 = vpop.f32.mrb[0].mxu0
        %v4013 = vpop.f32.mrb[0].mxu0
        %v4014 = vadd.f32 %v3973, %v4013
        %v4015 = vpop.f32.mrb[0].mxu0
        %4016 = vdwg.mxu0
        %4017 = vmatprep.subr.bf16.mxu0 0
        %4018 = vmatpush1.bf16.msra.mxu0 %v3393
        %4019 = vmatprep.subr.bf16.mxu0 0
        %4020 = vmatpush1.bf16.msra.mxu0 %v3396
        %4021 = vmatprep.subr.bf16.mxu0 0
        %4022 = vmatpush1.bf16.msra.mxu0 %v3399
        %4023 = vmatprep.subr.bf16.mxu0 0
        %4024 = vmatpush1.bf16.msra.mxu0 %v3402
        %4025 = vmatprep.subr.bf16.mxu0 0
        %4026 = vmatpush1.bf16.msra.mxu0 %v3405
        %4027 = vmatprep.subr.bf16.mxu0 0
        %4028 = vmatpush1.bf16.msra.mxu0 %v3408
        %4029 = vmatprep.subr.bf16.mxu0 0
        %4030 = vmatpush1.bf16.msra.mxu0 %v3411
        %4031 = vmatprep.subr.bf16.mxu0 0
        %4032 = vmatpush1.bf16.msra.mxu0 %v3414
        %4033 = vmatprep.subr.bf16.mxu0 0
        %4034 = vmatpush1.bf16.msra.mxu0 %v3417
        %4035 = vmatprep.subr.bf16.mxu0 0
        %4036 = vmatpush1.bf16.msra.mxu0 %v3420
        %4037 = vmatprep.subr.bf16.mxu0 0
        %4038 = vmatpush1.bf16.msra.mxu0 %v3423
        %4039 = vmatprep.subr.bf16.mxu0 0
        %4040 = vmatpush1.bf16.msra.mxu0 %v3426
        %4041 = vmatprep.subr.bf16.mxu0 0
        %4042 = vmatpush1.bf16.msra.mxu0 %v3429
        %4043 = vmatprep.subr.bf16.mxu0 0
        %4044 = vmatpush1.bf16.msra.mxu0 %v3432
        %4045 = vmatprep.subr.bf16.mxu0 0
        %4046 = vmatpush1.bf16.msra.mxu0 %v3435
        %4047 = vmatprep.subr.bf16.mxu0 0
        %4048 = vmatpush1.bf16.msra.mxu0 %v3438
        %4049 = vmatprep.mubr.bf16.mxu0 %v2220
        %4050 = vmatmul.mubr.bf16.gmra.mrb[0].mxu0 %v2219
        %v4051 = vpop.f32.mrb[0].mxu0
        %v4052 = vadd.f32 %v4011, %v4051
        %v4053 = vpop.f32.mrb[0].mxu0
        %v4054 = vpop.f32.mrb[0].mxu0
        %v4055 = vadd.f32 %v4014, %v4054
        %v4056 = vpop.f32.mrb[0].mxu0
        %4057 = vdwg.mxu0
        %4058 = vmatprep.subr.bf16.mxu0 0
        %4059 = vmatpush1.bf16.msra.mxu0 %v3441
        %4060 = vmatprep.subr.bf16.mxu0 0
        %4061 = vmatpush1.bf16.msra.mxu0 %v3444
        %4062 = vmatprep.subr.bf16.mxu0 0
        %4063 = vmatpush1.bf16.msra.mxu0 %v3447
        %4064 = vmatprep.subr.bf16.mxu0 0
        %4065 = vmatpush1.bf16.msra.mxu0 %v3450
        %4066 = vmatprep.subr.bf16.mxu0 0
        %4067 = vmatpush1.bf16.msra.mxu0 %v3453
        %4068 = vmatprep.subr.bf16.mxu0 0
        %4069 = vmatpush1.bf16.msra.mxu0 %v3456
        %4070 = vmatprep.subr.bf16.mxu0 0
        %4071 = vmatpush1.bf16.msra.mxu0 %v3459
        %4072 = vmatprep.subr.bf16.mxu0 0
        %4073 = vmatpush1.bf16.msra.mxu0 %v3462
        %4074 = vmatprep.subr.bf16.mxu0 0
        %4075 = vmatpush1.bf16.msra.mxu0 0
        %4076 = vmatprep.subr.bf16.mxu0 0
        %4077 = vmatpush1.bf16.msra.mxu0 0
        %4078 = vmatprep.subr.bf16.mxu0 0
        %4079 = vmatpush1.bf16.msra.mxu0 0
        %4080 = vmatprep.subr.bf16.mxu0 0
        %4081 = vmatpush1.bf16.msra.mxu0 0
        %4082 = vmatprep.subr.bf16.mxu0 0
        %4083 = vmatpush1.bf16.msra.mxu0 0
        %4084 = vmatprep.subr.bf16.mxu0 0
        %4085 = vmatpush1.bf16.msra.mxu0 0
        %4086 = vmatprep.subr.bf16.mxu0 0
        %4087 = vmatpush1.bf16.msra.mxu0 0
        %4088 = vmatprep.subr.bf16.mxu0 0
        %4089 = vmatpush1.bf16.msra.mxu0 0
        %4090 = vmatprep.mubr.bf16.mxu0 0
        %4091 = vmatmul.mubr.bf16.gmra.mrb[0].mxu0 %v2221
        %v4092 = vpop.f32.mrb[0].mxu0
        %v4093 = vadd.f32 %v4052, %v4092
        %v4094 = vpop.f32.mrb[0].mxu0
        %v4095 = vpop.f32.mrb[0].mxu0
        %v4096 = vadd.f32 %v4055, %v4095
        %v4097 = vpop.f32.mrb[0].mxu0
        %4098 = vdwg.mxu0
        %v4099 = vpack.c.bf16 %v3890, %v3886
        %v4100 = vpack.c.bf16 %v3892, %v3888
        %v4101 = vpack.c.bf16 %v4096, %v4093
        %4102 = vmatprep.subr.bf16.mxu0 %v4100
        %4103 = vmatpush1.bf16.msra.mxu0 %v4099
        %4104 = vmatprep.subr.bf16.mxu0 0
        %4105 = vmatpush1.bf16.msra.mxu0 0
        %4106 = vmatprep.subr.bf16.mxu0 0
        %4107 = vmatpush1.bf16.msra.mxu0 0
        %4108 = vmatprep.subr.bf16.mxu0 0
        %4109 = vmatpush1.bf16.msra.mxu0 0
        %4110 = vmatprep.subr.bf16.mxu0 0
        %4111 = vmatpush1.bf16.msra.mxu0 0
        %4112 = vmatprep.subr.bf16.mxu0 0
        %4113 = vmatpush1.bf16.msra.mxu0 0
        %4114 = vmatprep.subr.bf16.mxu0 0
        %4115 = vmatpush1.bf16.msra.mxu0 0
        %4116 = vmatprep.subr.bf16.mxu0 0
        %4117 = vmatpush1.bf16.msra.mxu0 0
        %4118 = vmatprep.subr.bf16.mxu0 0
        %4119 = vmatpush1.bf16.msra.mxu0 0
        %4120 = vmatprep.subr.bf16.mxu0 0
        %4121 = vmatpush1.bf16.msra.mxu0 0
        %4122 = vmatprep.subr.bf16.mxu0 0
        %4123 = vmatpush1.bf16.msra.mxu0 0
        %4124 = vmatprep.subr.bf16.mxu0 0
        %4125 = vmatpush1.bf16.msra.mxu0 0
        %4126 = vmatprep.subr.bf16.mxu0 0
        %4127 = vmatpush1.bf16.msra.mxu0 0
        %4128 = vmatprep.subr.bf16.mxu0 0
        %4129 = vmatpush1.bf16.msra.mxu0 0
        %4130 = vmatprep.subr.bf16.mxu0 0
        %4131 = vmatpush1.bf16.msra.mxu0 0
        %4132 = vmatprep.subr.bf16.mxu0 0
        %4133 = vmatpush1.bf16.msra.mxu0 0
        %4134 = vmatprep.mubr.bf16.mxu0 0
        %4135 = vmatmul.mubr.bf16.gmra.mrb[0].mxu0 %v2085
        %v4136 = vpop.f32.mrb[0].mxu0
        %v4137 = vadd.f32 0.0, %v4136
        %v4138 = vpop.f32.mrb[0].mxu0
        %v4139 = vadd.f32 0.0, %v4138
        %v4140 = vpop.f32.mrb[0].mxu0
        %v4141 = vadd.f32 0.0, %v4140
        %v4142 = vpop.f32.mrb[0].mxu0
        %v4143 = vadd.f32 0.0, %v4142
        %4144 = vmatprep.mubr.bf16.mxu0 0
        %4145 = vmatmul.mubr.bf16.gmra.mrb[0].mxu0 %v2088
        %v4146 = vpop.f32.mrb[0].mxu0
        %v4147 = vadd.f32 0.0, %v4146
        %v4148 = vpop.f32.mrb[0].mxu0
        %v4149 = vadd.f32 0.0, %v4148
        %v4150 = vpop.f32.mrb[0].mxu0
        %v4151 = vadd.f32 0.0, %v4150
        %v4152 = vpop.f32.mrb[0].mxu0
        %v4153 = vadd.f32 0.0, %v4152
        %4154 = vmatprep.mubr.bf16.mxu0 0
        %4155 = vmatmul.mubr.bf16.gmra.mrb[0].mxu0 %v2091
        %v4156 = vpop.f32.mrb[0].mxu0
        %v4157 = vadd.f32 0.0, %v4156
        %v4158 = vpop.f32.mrb[0].mxu0
        %v4159 = vadd.f32 0.0, %v4158
        %v4160 = vpop.f32.mrb[0].mxu0
        %v4161 = vadd.f32 0.0, %v4160
        %v4162 = vpop.f32.mrb[0].mxu0
        %v4163 = vadd.f32 0.0, %v4162
        %4164 = vdwg.mxu0
        %4165 = vmatprep.subr.bf16.mxu0 0
        %4166 = vmatpush1.bf16.msra.mxu0 %v4101
        %4167 = vmatprep.subr.bf16.mxu0 0
        %4168 = vmatpush1.bf16.msra.mxu0 0
        %4169 = vmatprep.subr.bf16.mxu0 0
        %4170 = vmatpush1.bf16.msra.mxu0 0
        %4171 = vmatprep.subr.bf16.mxu0 0
        %4172 = vmatpush1.bf16.msra.mxu0 0
        %4173 = vmatprep.subr.bf16.mxu0 0
        %4174 = vmatpush1.bf16.msra.mxu0 0
        %4175 = vmatprep.subr.bf16.mxu0 0
        %4176 = vmatpush1.bf16.msra.mxu0 0
        %4177 = vmatprep.subr.bf16.mxu0 0
        %4178 = vmatpush1.bf16.msra.mxu0 0
        %4179 = vmatprep.subr.bf16.mxu0 0
        %4180 = vmatpush1.bf16.msra.mxu0 0
        %4181 = vmatprep.subr.bf16.mxu0 0
        %4182 = vmatpush1.bf16.msra.mxu0 0
        %4183 = vmatprep.subr.bf16.mxu0 0
        %4184 = vmatpush1.bf16.msra.mxu0 0
        %4185 = vmatprep.subr.bf16.mxu0 0
        %4186 = vmatpush1.bf16.msra.mxu0 0
        %4187 = vmatprep.subr.bf16.mxu0 0
        %4188 = vmatpush1.bf16.msra.mxu0 0
        %4189 = vmatprep.subr.bf16.mxu0 0
        %4190 = vmatpush1.bf16.msra.mxu0 0
        %4191 = vmatprep.subr.bf16.mxu0 0
        %4192 = vmatpush1.bf16.msra.mxu0 0
        %4193 = vmatprep.subr.bf16.mxu0 0
        %4194 = vmatpush1.bf16.msra.mxu0 0
        %4195 = vmatprep.subr.bf16.mxu0 0
        %4196 = vmatpush1.bf16.msra.mxu0 0
        %4197 = vmatprep.mubr.bf16.mxu0 0
        %4198 = vmatmul.mubr.bf16.gmra.mrb[0].mxu0 %v2085
        %v4199 = vpop.f32.mrb[0].mxu0
        %v4200 = vadd.f32 0.0, %v4199
        %v4201 = vpop.f32.mrb[0].mxu0
        %v4202 = vpop.f32.mrb[0].mxu0
        %v4203 = vadd.f32 0.0, %v4202
        %v4204 = vpop.f32.mrb[0].mxu0
        %4205 = vmatprep.mubr.bf16.mxu0 0
        %4206 = vmatmul.mubr.bf16.gmra.mrb[0].mxu0 %v2088
        %v4207 = vpop.f32.mrb[0].mxu0
        %v4208 = vadd.f32 0.0, %v4207
        %v4209 = vpop.f32.mrb[0].mxu0
        %v4210 = vpop.f32.mrb[0].mxu0
        %v4211 = vadd.f32 0.0, %v4210
        %v4212 = vpop.f32.mrb[0].mxu0
        %4213 = vmatprep.mubr.bf16.mxu0 0
        %4214 = vmatmul.mubr.bf16.gmra.mrb[0].mxu0 %v2091
        %v4215 = vpop.f32.mrb[0].mxu0
        %v4216 = vadd.f32 0.0, %v4215
        %v4217 = vpop.f32.mrb[0].mxu0
        %v4218 = vpop.f32.mrb[0].mxu0
        %v4219 = vadd.f32 0.0, %v4218
        %v4220 = vpop.f32.mrb[0].mxu0
        %4221 = vdwg.mxu0
        %v4222 = vpack.c.bf16 %v4141, %v4137
        %v4223 = vpack.c.bf16 %v4143, %v4139
        %v4224 = vpack.c.bf16 %v4203, %v4200
        %v4225 = vpack.c.bf16 %v4151, %v4147
        %v4226 = vpack.c.bf16 %v4153, %v4149
        %v4227 = vpack.c.bf16 %v4211, %v4208
        %v4228 = vpack.c.bf16 %v4161, %v4157
        %v4229 = vpack.c.bf16 %v4163, %v4159
        %v4230 = vpack.c.bf16 %v4219, %v4216
        %v4231 = vld [vmem:[#allocation5] sm:$0xff]
        %v4232 = vld [vmem:[#allocation5 + $0x8] sm:$0xf]
        %v4233 = vld [vmem:[#allocation5 + $0xc] sm:$0xff]
        %v4234 = vld [vmem:[#allocation5 + $0x14] sm:$0xf]
        %v4235 = vld [vmem:[#allocation5 + $0x18] sm:$0xff]
        %v4236 = vld [vmem:[#allocation5 + $0x20] sm:$0xf]
        %v4237 = vld [vmem:[#allocation5 + $0x24] sm:$0xff]
        %v4238 = vld [vmem:[#allocation5 + $0x2c] sm:$0xf]
        %v4239 = vld [vmem:[#allocation5 + $0x30] sm:$0xff]
        %v4240 = vld [vmem:[#allocation5 + $0x38] sm:$0xf]
        %v4241 = vld [vmem:[#allocation5 + $0x3c] sm:$0xff]
        %v4242 = vld [vmem:[#allocation5 + $0x44] sm:$0xf]
        %v4243 = vld [vmem:[#allocation5 + $0x48] sm:$0xff]
        %v4244 = vld [vmem:[#allocation5 + $0x50] sm:$0xf]
        %v4245 = vld [vmem:[#allocation5 + $0x54] sm:$0xff]
        %v4246 = vld [vmem:[#allocation5 + $0x5c] sm:$0xf]
        %v4247 = vld [vmem:[#allocation5 + $0x60] sm:$0xff]
        %v4248 = vld [vmem:[#allocation5 + $0x68] sm:$0xf]
        %v4249 = vld [vmem:[#allocation5 + $0x6c] sm:$0xff]
        %v4250 = vld [vmem:[#allocation5 + $0x74] sm:$0xf]
        %v4251 = vld [vmem:[#allocation5 + $0x78] sm:$0xff]
        %v4252 = vld [vmem:[#allocation5 + $0x80] sm:$0xf]
        %v4253 = vld [vmem:[#allocation5 + $0x84] sm:$0xff]
        %v4254 = vld [vmem:[#allocation5 + $0x8c] sm:$0xf]
        %v4255 = vld [vmem:[#allocation5 + $0x90] sm:$0xff]
        %v4256 = vld [vmem:[#allocation5 + $0x98] sm:$0xf]
        %v4257 = vld [vmem:[#allocation5 + $0x9c] sm:$0xff]
        %v4258 = vld [vmem:[#allocation5 + $0xa4] sm:$0xf]
        %v4259 = vld [vmem:[#allocation5 + $0xa8] sm:$0xff]
        %v4260 = vld [vmem:[#allocation5 + $0xb0] sm:$0xf]
        %v4261 = vld [vmem:[#allocation5 + $0xb4] sm:$0xff]
        %v4262 = vld [vmem:[#allocation5 + $0xbc] sm:$0xf]
        %v4263 = vld [vmem:[#allocation5 + $0xc0] sm:$0xff]
        %v4264 = vld [vmem:[#allocation5 + $0xc8] sm:$0xf]
        %v4265 = vld [vmem:[#allocation5 + $0xcc] sm:$0xff]
        %v4266 = vld [vmem:[#allocation5 + $0xd4] sm:$0xf]
        %v4267 = vld [vmem:[#allocation5 + $0xd8] sm:$0xff]
        %v4268 = vld [vmem:[#allocation5 + $0xe0] sm:$0xf]
        %v4269 = vld [vmem:[#allocation5 + $0xe4] sm:$0xff]
        %v4270 = vld [vmem:[#allocation5 + $0xec] sm:$0xf]
        %v4271 = vld [vmem:[#allocation5 + $0xf0] sm:$0xff]
        %v4272 = vld [vmem:[#allocation5 + $0xf8] sm:$0xf]
        %v4273 = vld [vmem:[#allocation5 + $0xfc] sm:$0xff]
        %v4274 = vld [vmem:[#allocation5 + $0x104] sm:$0xf]
        %v4275 = vld [vmem:[#allocation5 + $0x108] sm:$0xff]
        %v4276 = vld [vmem:[#allocation5 + $0x110] sm:$0xf]
        %v4277 = vld [vmem:[#allocation5 + $0x114] sm:$0xff]
        %v4278 = vld [vmem:[#allocation5 + $0x11c] sm:$0xf]
        %v4279 = vld [vmem:[#allocation5 + $0x120] sm:$0xff]
        %v4280 = vld [vmem:[#allocation5 + $0x128] sm:$0xf]
        %v4281 = vld [vmem:[#allocation5 + $0x12c] sm:$0xff]
        %v4282 = vld [vmem:[#allocation5 + $0x134] sm:$0xf]
        %v4283 = vld [vmem:[#allocation5 + $0x138] sm:$0xff]
        %v4284 = vld [vmem:[#allocation5 + $0x140] sm:$0xf]
        %v4285 = vld [vmem:[#allocation5 + $0x144] sm:$0xff]
        %v4286 = vld [vmem:[#allocation5 + $0x14c] sm:$0xf]
        %v4287 = vld [vmem:[#allocation5 + $0x150] sm:$0xff]
        %v4288 = vld [vmem:[#allocation5 + $0x158] sm:$0xf]
        %v4289 = vld [vmem:[#allocation5 + $0x15c] sm:$0xff]
        %v4290 = vld [vmem:[#allocation5 + $0x164] sm:$0xf]
        %v4291 = vld [vmem:[#allocation5 + $0x168] sm:$0xff]
        %v4292 = vld [vmem:[#allocation5 + $0x170] sm:$0xf]
        %v4293 = vld [vmem:[#allocation5 + $0x174] sm:$0xff]
        %v4294 = vld [vmem:[#allocation5 + $0x17c] sm:$0xf]
        %v4295 = vld [vmem:[#allocation5 + $0x180] sm:$0xff]
        %v4296 = vld [vmem:[#allocation5 + $0x188] sm:$0xf]
        %v4297 = vld [vmem:[#allocation5 + $0x18c] sm:$0xff]
        %v4298 = vld [vmem:[#allocation5 + $0x194] sm:$0xf]
        %v4299 = vld [vmem:[#allocation5 + $0x198] sm:$0xff]
        %v4300 = vld [vmem:[#allocation5 + $0x1a0] sm:$0xf]
        %v4301 = vld [vmem:[#allocation5 + $0x1a4] sm:$0xff]
        %v4302 = vld [vmem:[#allocation5 + $0x1ac] sm:$0xf]
        %v4303 = vld [vmem:[#allocation5 + $0x1b0] sm:$0xff]
        %v4304 = vld [vmem:[#allocation5 + $0x1b8] sm:$0xf]
        %v4305 = vld [vmem:[#allocation5 + $0x1bc] sm:$0xff]
        %v4306 = vld [vmem:[#allocation5 + $0x1c4] sm:$0xf]
        %v4307 = vld [vmem:[#allocation5 + $0x1c8] sm:$0xff]
        %v4308 = vld [vmem:[#allocation5 + $0x1d0] sm:$0xf]
        %v4309 = vld [vmem:[#allocation5 + $0x1d4] sm:$0xff]
        %v4310 = vld [vmem:[#allocation5 + $0x1dc] sm:$0xf]
        %v4311 = vld [vmem:[#allocation5 + $0x1e0] sm:$0xff]
        %v4312 = vld [vmem:[#allocation5 + $0x1e8] sm:$0xf]
        %v4313 = vld [vmem:[#allocation5 + $0x1ec] sm:$0xff]
        %v4314 = vld [vmem:[#allocation5 + $0x1f4] sm:$0xf]
        %v4315 = vld [vmem:[#allocation5 + $0x1f8] sm:$0xff]
        %v4316 = vld [vmem:[#allocation5 + $0x200] sm:$0xf]
        %v4317 = vld [vmem:[#allocation5 + $0x204] sm:$0xff]
        %v4318 = vld [vmem:[#allocation5 + $0x20c] sm:$0xf]
        %v4319 = vld [vmem:[#allocation5 + $0x210] sm:$0xff]
        %v4320 = vld [vmem:[#allocation5 + $0x218] sm:$0xf]
        %v4321 = vld [vmem:[#allocation5 + $0x21c] sm:$0xff]
        %v4322 = vld [vmem:[#allocation5 + $0x224] sm:$0xf]
        %v4323 = vld [vmem:[#allocation5 + $0x228] sm:$0xff]
        %v4324 = vld [vmem:[#allocation5 + $0x230] sm:$0xf]
        %v4325 = vld [vmem:[#allocation5 + $0x234] sm:$0xff]
        %v4326 = vld [vmem:[#allocation5 + $0x23c] sm:$0xf]
        %v4327 = vld [vmem:[#allocation5 + $0x240] sm:$0xff]
        %v4328 = vld [vmem:[#allocation5 + $0x248] sm:$0xf]
        %v4329 = vld [vmem:[#allocation5 + $0x24c] sm:$0xff]
        %v4330 = vld [vmem:[#allocation5 + $0x254] sm:$0xf]
        %v4331 = vld [vmem:[#allocation5 + $0x258] sm:$0xff]
        %v4332 = vld [vmem:[#allocation5 + $0x260] sm:$0xf]
        %v4333 = vld [vmem:[#allocation5 + $0x264] sm:$0xff]
        %v4334 = vld [vmem:[#allocation5 + $0x26c] sm:$0xf]
        %v4335 = vld [vmem:[#allocation5 + $0x270] sm:$0xff]
        %v4336 = vld [vmem:[#allocation5 + $0x278] sm:$0xf]
        %v4337 = vld [vmem:[#allocation5 + $0x27c] sm:$0xff]
        %v4338 = vld [vmem:[#allocation5 + $0x284] sm:$0xf]
        %v4339 = vld [vmem:[#allocation5 + $0x288] sm:$0xff]
        %v4340 = vld [vmem:[#allocation5 + $0x290] sm:$0xf]
        %v4341 = vld [vmem:[#allocation5 + $0x294] sm:$0xff]
        %v4342 = vld [vmem:[#allocation5 + $0x29c] sm:$0xf]
        %v4343 = vld [vmem:[#allocation5 + $0x2a0] sm:$0xff]
        %v4344 = vld [vmem:[#allocation5 + $0x2a8] sm:$0xf]
        %v4345 = vld [vmem:[#allocation5 + $0x2ac] sm:$0xff]
        %v4346 = vld [vmem:[#allocation5 + $0x2b4] sm:$0xf]
        %v4347 = vld [vmem:[#allocation5 + $0x2b8] sm:$0xff]
        %v4348 = vld [vmem:[#allocation5 + $0x2c0] sm:$0xf]
        %v4349 = vld [vmem:[#allocation5 + $0x2c4] sm:$0xff]
        %v4350 = vld [vmem:[#allocation5 + $0x2cc] sm:$0xf]
        %v4351 = vld [vmem:[#allocation5 + $0x2d0] sm:$0xff]
        %v4352 = vld [vmem:[#allocation5 + $0x2d8] sm:$0xf]
        %v4353 = vld [vmem:[#allocation5 + $0x2dc] sm:$0xff]
        %v4354 = vld [vmem:[#allocation5 + $0x2e4] sm:$0xf]
        %v4355 = vld [vmem:[#allocation5 + $0x2e8] sm:$0xff]
        %v4356 = vld [vmem:[#allocation5 + $0x2f0] sm:$0xf]
        %v4357 = vld [vmem:[#allocation5 + $0x2f4] sm:$0xff]
        %v4358 = vld [vmem:[#allocation5 + $0x2fc] sm:$0xf]
        %v4359 = vld [vmem:[#allocation5 + $0x300] sm:$0xff]
        %v4360 = vld [vmem:[#allocation5 + $0x308] sm:$0xf]
        %v4361 = vld [vmem:[#allocation5 + $0x30c] sm:$0xff]
        %v4362 = vld [vmem:[#allocation5 + $0x314] sm:$0xf]
        %v4363 = vld [vmem:[#allocation5 + $0x318] sm:$0xff]
        %v4364 = vld [vmem:[#allocation5 + $0x320] sm:$0xf]
        %v4365 = vld [vmem:[#allocation5 + $0x324] sm:$0xff]
        %v4366 = vld [vmem:[#allocation5 + $0x32c] sm:$0xf]
        %v4367 = vld [vmem:[#allocation5 + $0x330] sm:$0xff]
        %v4368 = vld [vmem:[#allocation5 + $0x338] sm:$0xf]
        %v4369 = vld [vmem:[#allocation5 + $0x33c] sm:$0xff]
        %v4370 = vld [vmem:[#allocation5 + $0x344] sm:$0xf]
        %v4371 = vld [vmem:[#allocation5 + $0x348] sm:$0xff]
        %v4372 = vld [vmem:[#allocation5 + $0x350] sm:$0xf]
        %v4373 = vld [vmem:[#allocation5 + $0x354] sm:$0xff]
        %v4374 = vld [vmem:[#allocation5 + $0x35c] sm:$0xf]
        %v4375 = vld [vmem:[#allocation5 + $0x360] sm:$0xff]
        %v4376 = vld [vmem:[#allocation5 + $0x368] sm:$0xf]
        %v4377 = vld [vmem:[#allocation5 + $0x36c] sm:$0xff]
        %v4378 = vld [vmem:[#allocation5 + $0x374] sm:$0xf]
        %v4379 = vld [vmem:[#allocation5 + $0x378] sm:$0xff]
        %v4380 = vld [vmem:[#allocation5 + $0x380] sm:$0xf]
        %v4381 = vld [vmem:[#allocation5 + $0x384] sm:$0xff]
        %v4382 = vld [vmem:[#allocation5 + $0x38c] sm:$0xf]
        %v4383 = vld [vmem:[#allocation5 + $0x390] sm:$0xff]
        %v4384 = vld [vmem:[#allocation5 + $0x398] sm:$0xf]
        %v4385 = vld [vmem:[#allocation5 + $0x39c] sm:$0xff]
        %v4386 = vld [vmem:[#allocation5 + $0x3a4] sm:$0xf]
        %v4387 = vld [vmem:[#allocation5 + $0x3a8] sm:$0xff]
        %v4388 = vld [vmem:[#allocation5 + $0x3b0] sm:$0xf]
        %v4389 = vld [vmem:[#allocation5 + $0x3b4] sm:$0xff]
        %v4390 = vld [vmem:[#allocation5 + $0x3bc] sm:$0xf]
        %v4391 = vld [vmem:[#allocation5 + $0x3c0] sm:$0xff]
        %v4392 = vld [vmem:[#allocation5 + $0x3c8] sm:$0xf]
        %v4393 = vld [vmem:[#allocation5 + $0x3cc] sm:$0xff]
        %v4394 = vld [vmem:[#allocation5 + $0x3d4] sm:$0xf]
        %v4395 = vld [vmem:[#allocation5 + $0x3d8] sm:$0xff]
        %v4396 = vld [vmem:[#allocation5 + $0x3e0] sm:$0xf]
        %v4397 = vld [vmem:[#allocation5 + $0x3e4] sm:$0xff]
        %v4398 = vld [vmem:[#allocation5 + $0x3ec] sm:$0xf]
        %v4399 = vld [vmem:[#allocation5 + $0x3f0] sm:$0xff]
        %v4400 = vld [vmem:[#allocation5 + $0x3f8] sm:$0xf]
        %v4401 = vld [vmem:[#allocation5 + $0x3fc] sm:$0xff]
        %v4402 = vld [vmem:[#allocation5 + $0x404] sm:$0xf]
        %v4403 = vld [vmem:[#allocation5 + $0x408] sm:$0xff]
        %v4404 = vld [vmem:[#allocation5 + $0x410] sm:$0xf]
        %v4405 = vld [vmem:[#allocation5 + $0x414] sm:$0xff]
        %v4406 = vld [vmem:[#allocation5 + $0x41c] sm:$0xf]
        %v4407 = vld [vmem:[#allocation5 + $0x420] sm:$0xff]
        %v4408 = vld [vmem:[#allocation5 + $0x428] sm:$0xf]
        %v4409 = vld [vmem:[#allocation5 + $0x42c] sm:$0xff]
        %v4410 = vld [vmem:[#allocation5 + $0x434] sm:$0xf]
        %v4411 = vld [vmem:[#allocation5 + $0x438] sm:$0xff]
        %v4412 = vld [vmem:[#allocation5 + $0x440] sm:$0xf]
        %v4413 = vld [vmem:[#allocation5 + $0x444] sm:$0xff]
        %v4414 = vld [vmem:[#allocation5 + $0x44c] sm:$0xf]
        %v4415 = vld [vmem:[#allocation5 + $0x450] sm:$0xff]
        %v4416 = vld [vmem:[#allocation5 + $0x458] sm:$0xf]
        %v4417 = vld [vmem:[#allocation5 + $0x45c] sm:$0xff]
        %v4418 = vld [vmem:[#allocation5 + $0x464] sm:$0xf]
        %v4419 = vld [vmem:[#allocation5 + $0x468] sm:$0xff]
        %v4420 = vld [vmem:[#allocation5 + $0x470] sm:$0xf]
        %v4421 = vld [vmem:[#allocation5 + $0x474] sm:$0xff]
        %v4422 = vld [vmem:[#allocation5 + $0x47c] sm:$0xf]
        %v4423 = vld [vmem:[#allocation5 + $0x480] sm:$0xff]
        %v4424 = vld [vmem:[#allocation5 + $0x488] sm:$0xf]
        %v4425 = vld [vmem:[#allocation5 + $0x48c] sm:$0xff]
        %v4426 = vld [vmem:[#allocation5 + $0x494] sm:$0xf]
        %v4427 = vld [vmem:[#allocation5 + $0x498] sm:$0xff]
        %v4428 = vld [vmem:[#allocation5 + $0x4a0] sm:$0xf]
        %v4429 = vld [vmem:[#allocation5 + $0x4a4] sm:$0xff]
        %v4430 = vld [vmem:[#allocation5 + $0x4ac] sm:$0xf]
        %v4431 = vld [vmem:[#allocation5 + $0x4b0] sm:$0xff]
        %v4432 = vld [vmem:[#allocation5 + $0x4b8] sm:$0xf]
        %v4433 = vld [vmem:[#allocation5 + $0x4bc] sm:$0xff]
        %v4434 = vld [vmem:[#allocation5 + $0x4c4] sm:$0xf]
        %v4435 = vld [vmem:[#allocation5 + $0x4c8] sm:$0xff]
        %v4436 = vld [vmem:[#allocation5 + $0x4d0] sm:$0xf]
        %v4437 = vld [vmem:[#allocation5 + $0x4d4] sm:$0xff]
        %v4438 = vld [vmem:[#allocation5 + $0x4dc] sm:$0xf]
        %v4439 = vld [vmem:[#allocation5 + $0x4e0] sm:$0xff]
        %v4440 = vld [vmem:[#allocation5 + $0x4e8] sm:$0xf]
        %v4441 = vld [vmem:[#allocation5 + $0x4ec] sm:$0xff]
        %v4442 = vld [vmem:[#allocation5 + $0x4f4] sm:$0xf]
        %v4443 = vld [vmem:[#allocation5 + $0x4f8] sm:$0xff]
        %v4444 = vld [vmem:[#allocation5 + $0x500] sm:$0xf]
        %v4445 = vld [vmem:[#allocation5 + $0x504] sm:$0xff]
        %v4446 = vld [vmem:[#allocation5 + $0x50c] sm:$0xf]
        %v4447 = vld [vmem:[#allocation5 + $0x510] sm:$0xff]
        %v4448 = vld [vmem:[#allocation5 + $0x518] sm:$0xf]
        %v4449 = vld [vmem:[#allocation5 + $0x51c] sm:$0xff]
        %v4450 = vld [vmem:[#allocation5 + $0x524] sm:$0xf]
        %v4451 = vld [vmem:[#allocation5 + $0x528] sm:$0xff]
        %v4452 = vld [vmem:[#allocation5 + $0x530] sm:$0xf]
        %v4453 = vld [vmem:[#allocation5 + $0x534] sm:$0xff]
        %v4454 = vld [vmem:[#allocation5 + $0x53c] sm:$0xf]
        %v4455 = vld [vmem:[#allocation5 + $0x540] sm:$0xff]
        %v4456 = vld [vmem:[#allocation5 + $0x548] sm:$0xf]
        %v4457 = vld [vmem:[#allocation5 + $0x54c] sm:$0xff]
        %v4458 = vld [vmem:[#allocation5 + $0x554] sm:$0xf]
        %v4459 = vld [vmem:[#allocation5 + $0x558] sm:$0xff]
        %v4460 = vld [vmem:[#allocation5 + $0x560] sm:$0xf]
        %v4461 = vld [vmem:[#allocation5 + $0x564] sm:$0xff]
        %v4462 = vld [vmem:[#allocation5 + $0x56c] sm:$0xf]
        %v4463 = vld [vmem:[#allocation5 + $0x570] sm:$0xff]
        %v4464 = vld [vmem:[#allocation5 + $0x578] sm:$0xf]
        %v4465 = vld [vmem:[#allocation5 + $0x57c] sm:$0xff]
        %v4466 = vld [vmem:[#allocation5 + $0x584] sm:$0xf]
        %v4467 = vld [vmem:[#allocation5 + $0x588] sm:$0xff]
        %v4468 = vld [vmem:[#allocation5 + $0x590] sm:$0xf]
        %v4469 = vld [vmem:[#allocation5 + $0x594] sm:$0xff]
        %v4470 = vld [vmem:[#allocation5 + $0x59c] sm:$0xf]
        %v4471 = vld [vmem:[#allocation5 + $0x5a0] sm:$0xff]
        %v4472 = vld [vmem:[#allocation5 + $0x5a8] sm:$0xf]
        %v4473 = vld [vmem:[#allocation5 + $0x5ac] sm:$0xff]
        %v4474 = vld [vmem:[#allocation5 + $0x5b4] sm:$0xf]
        %v4475 = vld [vmem:[#allocation5 + $0x5b8] sm:$0xff]
        %v4476 = vld [vmem:[#allocation5 + $0x5c0] sm:$0xf]
        %v4477 = vld [vmem:[#allocation5 + $0x5c4] sm:$0xff]
        %v4478 = vld [vmem:[#allocation5 + $0x5cc] sm:$0xf]
        %v4479 = vld [vmem:[#allocation5 + $0x5d0] sm:$0xff]
        %v4480 = vld [vmem:[#allocation5 + $0x5d8] sm:$0xf]
        %v4481 = vld [vmem:[#allocation5 + $0x5dc] sm:$0xff]
        %v4482 = vld [vmem:[#allocation5 + $0x5e4] sm:$0xf]
        %v4483 = vld [vmem:[#allocation5 + $0x5e8] sm:$0xff]
        %v4484 = vld [vmem:[#allocation5 + $0x5f0] sm:$0xf]
        %v4485 = vld [vmem:[#allocation5 + $0x5f4] sm:$0xff]
        %v4486 = vld [vmem:[#allocation5 + $0x5fc] sm:$0xf]
        %v4487 = vld [vmem:[#allocation5 + $0x600] sm:$0xff]
        %v4488 = vld [vmem:[#allocation5 + $0x608] sm:$0xf]
        %v4489 = vld [vmem:[#allocation5 + $0x60c] sm:$0xff]
        %v4490 = vld [vmem:[#allocation5 + $0x614] sm:$0xf]
        %v4491 = vld [vmem:[#allocation5 + $0x618] sm:$0xff]
        %v4492 = vld [vmem:[#allocation5 + $0x620] sm:$0xf]
        %v4493 = vld [vmem:[#allocation5 + $0x624] sm:$0xff]
        %v4494 = vld [vmem:[#allocation5 + $0x62c] sm:$0xf]
        %v4495 = vld [vmem:[#allocation5 + $0x630] sm:$0xff]
        %v4496 = vld [vmem:[#allocation5 + $0x638] sm:$0xf]
        %v4497 = vld [vmem:[#allocation5 + $0x63c] sm:$0xff]
        %v4498 = vld [vmem:[#allocation5 + $0x644] sm:$0xf]
        %v4499 = vld [vmem:[#allocation5 + $0x648] sm:$0xff]
        %v4500 = vld [vmem:[#allocation5 + $0x650] sm:$0xf]
        %v4501 = vld [vmem:[#allocation5 + $0x654] sm:$0xff]
        %v4502 = vld [vmem:[#allocation5 + $0x65c] sm:$0xf]
        %v4503 = vld [vmem:[#allocation5 + $0x660] sm:$0xff]
        %v4504 = vld [vmem:[#allocation5 + $0x668] sm:$0xf]
        %v4505 = vld [vmem:[#allocation5 + $0x66c] sm:$0xff]
        %v4506 = vld [vmem:[#allocation5 + $0x674] sm:$0xf]
        %v4507 = vld [vmem:[#allocation5 + $0x678] sm:$0xff]
        %v4508 = vld [vmem:[#allocation5 + $0x680] sm:$0xf]
        %v4509 = vld [vmem:[#allocation5 + $0x684] sm:$0xff]
        %v4510 = vld [vmem:[#allocation5 + $0x68c] sm:$0xf]
        %v4511 = vld [vmem:[#allocation5 + $0x690] sm:$0xff]
        %v4512 = vld [vmem:[#allocation5 + $0x698] sm:$0xf]
        %v4513 = vld [vmem:[#allocation5 + $0x69c] sm:$0xff]
        %v4514 = vld [vmem:[#allocation5 + $0x6a4] sm:$0xf]
        %v4515 = vld [vmem:[#allocation5 + $0x6a8] sm:$0xff]
        %v4516 = vld [vmem:[#allocation5 + $0x6b0] sm:$0xf]
        %v4517 = vld [vmem:[#allocation5 + $0x6b4] sm:$0xff]
        %v4518 = vld [vmem:[#allocation5 + $0x6bc] sm:$0xf]
        %v4519 = vld [vmem:[%s16 + $0x9] sm:$0x7]
        %v4521 = vlaneseq
        %v4522 = vshrl.u32 %v4521, 7
        %v4523 = vsub.s32 0, %v4522
        %v4524 = vrot.slane %v4519, %v4523
        %v4525 = vlaneseq
        %v4526 = vshrl.u32 %v4525, 7
        %v4527 = vsub.s32 1, %v4526
        %v4528 = vrot.slane %v4519, %v4527
        %v4529 = vlaneseq
        %v4530 = vshrl.u32 %v4529, 7
        %v4531 = vsub.s32 2, %v4530
        %v4532 = vrot.slane %v4519, %v4531
        %v4824 = vunpack.c.l.b16 %v4231
        %v4825 = vunpack.c.h.b16 %v4231
        %v4826 = vunpack.c.l.b16 %v4232
        %v4827 = vunpack.c.l.b16 %v4233
        %v4828 = vunpack.c.h.b16 %v4233
        %v4829 = vunpack.c.l.b16 %v4234
        %v4830 = vunpack.c.l.b16 %v4235
        %v4831 = vunpack.c.h.b16 %v4235
        %v4832 = vunpack.c.l.b16 %v4236
        %v4833 = vunpack.c.l.b16 %v4237
        %v4834 = vunpack.c.h.b16 %v4237
        %v4835 = vunpack.c.l.b16 %v4238
        %v4836 = vunpack.c.l.b16 %v4239
        %v4837 = vunpack.c.h.b16 %v4239
        %v4838 = vunpack.c.l.b16 %v4240
        %v4839 = vunpack.c.l.b16 %v4241
        %v4840 = vunpack.c.h.b16 %v4241
        %v4841 = vunpack.c.l.b16 %v4242
        %v4842 = vunpack.c.l.b16 %v4243
        %v4843 = vunpack.c.h.b16 %v4243
        %v4844 = vunpack.c.l.b16 %v4244
        %v4845 = vunpack.c.l.b16 %v4245
        %v4846 = vunpack.c.h.b16 %v4245
        %v4847 = vunpack.c.l.b16 %v4246
        %v4848 = vunpack.c.l.b16 %v4247
        %v4849 = vunpack.c.h.b16 %v4247
        %v4850 = vunpack.c.l.b16 %v4248
        %v4851 = vunpack.c.l.b16 %v4249
        %v4852 = vunpack.c.h.b16 %v4249
        %v4853 = vunpack.c.l.b16 %v4250
        %v4854 = vunpack.c.l.b16 %v4251
        %v4855 = vunpack.c.h.b16 %v4251
        %v4856 = vunpack.c.l.b16 %v4252
        %v4857 = vunpack.c.l.b16 %v4253
        %v4858 = vunpack.c.h.b16 %v4253
        %v4859 = vunpack.c.l.b16 %v4254
        %v4860 = vunpack.c.l.b16 %v4255
        %v4861 = vunpack.c.h.b16 %v4255
        %v4862 = vunpack.c.l.b16 %v4256
        %v4863 = vunpack.c.l.b16 %v4257
        %v4864 = vunpack.c.h.b16 %v4257
        %v4865 = vunpack.c.l.b16 %v4258
        %v4866 = vunpack.c.l.b16 %v4259
        %v4867 = vunpack.c.h.b16 %v4259
        %v4868 = vunpack.c.l.b16 %v4260
        %v4869 = vunpack.c.l.b16 %v4261
        %v4870 = vunpack.c.h.b16 %v4261
        %v4871 = vunpack.c.l.b16 %v4262
        %v4872 = vunpack.c.l.b16 %v4263
        %v4873 = vunpack.c.h.b16 %v4263
        %v4874 = vunpack.c.l.b16 %v4264
        %v4875 = vunpack.c.l.b16 %v4265
        %v4876 = vunpack.c.h.b16 %v4265
        %v4877 = vunpack.c.l.b16 %v4266
        %v4878 = vunpack.c.l.b16 %v4267
        %v4879 = vunpack.c.h.b16 %v4267
        %v4880 = vunpack.c.l.b16 %v4268
        %v4881 = vunpack.c.l.b16 %v4269
        %v4882 = vunpack.c.h.b16 %v4269
        %v4883 = vunpack.c.l.b16 %v4270
        %v4884 = vunpack.c.l.b16 %v4271
        %v4885 = vunpack.c.h.b16 %v4271
        %v4886 = vunpack.c.l.b16 %v4272
        %v4887 = vunpack.c.l.b16 %v4273
        %v4888 = vunpack.c.h.b16 %v4273
        %v4889 = vunpack.c.l.b16 %v4274
        %v4890 = vunpack.c.l.b16 %v4275
        %v4891 = vunpack.c.h.b16 %v4275
        %v4892 = vunpack.c.l.b16 %v4276
        %v4893 = vunpack.c.l.b16 %v4277
        %v4894 = vunpack.c.h.b16 %v4277
        %v4895 = vunpack.c.l.b16 %v4278
        %v4896 = vunpack.c.l.b16 %v4279
        %v4897 = vunpack.c.h.b16 %v4279
        %v4898 = vunpack.c.l.b16 %v4280
        %v4899 = vunpack.c.l.b16 %v4281
        %v4900 = vunpack.c.h.b16 %v4281
        %v4901 = vunpack.c.l.b16 %v4282
        %v4902 = vunpack.c.l.b16 %v4283
        %v4903 = vunpack.c.h.b16 %v4283
        %v4904 = vunpack.c.l.b16 %v4284
        %v4905 = vunpack.c.l.b16 %v4285
        %v4906 = vunpack.c.h.b16 %v4285
        %v4907 = vunpack.c.l.b16 %v4286
        %v4908 = vunpack.c.l.b16 %v4287
        %v4909 = vunpack.c.h.b16 %v4287
        %v4910 = vunpack.c.l.b16 %v4288
        %v4911 = vunpack.c.l.b16 %v4289
        %v4912 = vunpack.c.h.b16 %v4289
        %v4913 = vunpack.c.l.b16 %v4290
        %v4914 = vunpack.c.l.b16 %v4291
        %v4915 = vunpack.c.h.b16 %v4291
        %v4916 = vunpack.c.l.b16 %v4292
        %v4917 = vunpack.c.l.b16 %v4293
        %v4918 = vunpack.c.h.b16 %v4293
        %v4919 = vunpack.c.l.b16 %v4294
        %v4920 = vunpack.c.l.b16 %v4295
        %v4921 = vunpack.c.h.b16 %v4295
        %v4922 = vunpack.c.l.b16 %v4296
        %v4923 = vunpack.c.l.b16 %v4297
        %v4924 = vunpack.c.h.b16 %v4297
        %v4925 = vunpack.c.l.b16 %v4298
        %v4926 = vunpack.c.l.b16 %v4299
        %v4927 = vunpack.c.h.b16 %v4299
        %v4928 = vunpack.c.l.b16 %v4300
        %v4929 = vunpack.c.l.b16 %v4301
        %v4930 = vunpack.c.h.b16 %v4301
        %v4931 = vunpack.c.l.b16 %v4302
        %v4932 = vunpack.c.l.b16 %v4303
        %v4933 = vunpack.c.h.b16 %v4303
        %v4934 = vunpack.c.l.b16 %v4304
        %v4935 = vunpack.c.l.b16 %v4305
        %v4936 = vunpack.c.h.b16 %v4305
        %v4937 = vunpack.c.l.b16 %v4306
        %v4938 = vunpack.c.l.b16 %v4307
        %v4939 = vunpack.c.h.b16 %v4307
        %v4940 = vunpack.c.l.b16 %v4308
        %v4941 = vunpack.c.l.b16 %v4309
        %v4942 = vunpack.c.h.b16 %v4309
        %v4943 = vunpack.c.l.b16 %v4310
        %v4944 = vunpack.c.l.b16 %v4311
        %v4945 = vunpack.c.h.b16 %v4311
        %v4946 = vunpack.c.l.b16 %v4312
        %v4947 = vunpack.c.l.b16 %v4313
        %v4948 = vunpack.c.h.b16 %v4313
        %v4949 = vunpack.c.l.b16 %v4314
        %v4950 = vunpack.c.l.b16 %v4315
        %v4951 = vunpack.c.h.b16 %v4315
        %v4952 = vunpack.c.l.b16 %v4316
        %v4953 = vunpack.c.l.b16 %v4317
        %v4954 = vunpack.c.h.b16 %v4317
        %v4955 = vunpack.c.l.b16 %v4318
        %v4956 = vunpack.c.l.b16 %v4319
        %v4957 = vunpack.c.h.b16 %v4319
        %v4958 = vunpack.c.l.b16 %v4320
        %v4959 = vunpack.c.l.b16 %v4321
        %v4960 = vunpack.c.h.b16 %v4321
        %v4961 = vunpack.c.l.b16 %v4322
        %v4962 = vunpack.c.l.b16 %v4323
        %v4963 = vunpack.c.h.b16 %v4323
        %v4964 = vunpack.c.l.b16 %v4324
        %v4965 = vunpack.c.l.b16 %v4325
        %v4966 = vunpack.c.h.b16 %v4325
        %v4967 = vunpack.c.l.b16 %v4326
        %v4968 = vunpack.c.l.b16 %v4327
        %v4969 = vunpack.c.h.b16 %v4327
        %v4970 = vunpack.c.l.b16 %v4328
        %v4971 = vunpack.c.l.b16 %v4329
        %v4972 = vunpack.c.h.b16 %v4329
        %v4973 = vunpack.c.l.b16 %v4330
        %v4974 = vunpack.c.l.b16 %v4331
        %v4975 = vunpack.c.h.b16 %v4331
        %v4976 = vunpack.c.l.b16 %v4332
        %v4977 = vunpack.c.l.b16 %v4333
        %v4978 = vunpack.c.h.b16 %v4333
        %v4979 = vunpack.c.l.b16 %v4334
        %v4980 = vunpack.c.l.b16 %v4335
        %v4981 = vunpack.c.h.b16 %v4335
        %v4982 = vunpack.c.l.b16 %v4336
        %v4983 = vunpack.c.l.b16 %v4337
        %v4984 = vunpack.c.h.b16 %v4337
        %v4985 = vunpack.c.l.b16 %v4338
        %v4986 = vunpack.c.l.b16 %v4339
        %v4987 = vunpack.c.h.b16 %v4339
        %v4988 = vunpack.c.l.b16 %v4340
        %v4989 = vunpack.c.l.b16 %v4341
        %v4990 = vunpack.c.h.b16 %v4341
        %v4991 = vunpack.c.l.b16 %v4342
        %v4992 = vunpack.c.l.b16 %v4343
        %v4993 = vunpack.c.h.b16 %v4343
        %v4994 = vunpack.c.l.b16 %v4344
        %v4995 = vunpack.c.l.b16 %v4345
        %v4996 = vunpack.c.h.b16 %v4345
        %v4997 = vunpack.c.l.b16 %v4346
        %v4998 = vunpack.c.l.b16 %v4347
        %v4999 = vunpack.c.h.b16 %v4347
        %v5000 = vunpack.c.l.b16 %v4348
        %v5001 = vunpack.c.l.b16 %v4349
        %v5002 = vunpack.c.h.b16 %v4349
        %v5003 = vunpack.c.l.b16 %v4350
        %v5004 = vunpack.c.l.b16 %v4351
        %v5005 = vunpack.c.h.b16 %v4351
        %v5006 = vunpack.c.l.b16 %v4352
        %v5007 = vunpack.c.l.b16 %v4353
        %v5008 = vunpack.c.h.b16 %v4353
        %v5009 = vunpack.c.l.b16 %v4354
        %v5010 = vunpack.c.l.b16 %v4355
        %v5011 = vunpack.c.h.b16 %v4355
        %v5012 = vunpack.c.l.b16 %v4356
        %v5013 = vunpack.c.l.b16 %v4357
        %v5014 = vunpack.c.h.b16 %v4357
        %v5015 = vunpack.c.l.b16 %v4358
        %v5016 = vunpack.c.l.b16 %v4359
        %v5017 = vunpack.c.h.b16 %v4359
        %v5018 = vunpack.c.l.b16 %v4360
        %v5019 = vunpack.c.l.b16 %v4361
        %v5020 = vunpack.c.h.b16 %v4361
        %v5021 = vunpack.c.l.b16 %v4362
        %v5022 = vunpack.c.l.b16 %v4363
        %v5023 = vunpack.c.h.b16 %v4363
        %v5024 = vunpack.c.l.b16 %v4364
        %v5025 = vunpack.c.l.b16 %v4365
        %v5026 = vunpack.c.h.b16 %v4365
        %v5027 = vunpack.c.l.b16 %v4366
        %v5028 = vunpack.c.l.b16 %v4367
        %v5029 = vunpack.c.h.b16 %v4367
        %v5030 = vunpack.c.l.b16 %v4368
        %v5031 = vunpack.c.l.b16 %v4369
        %v5032 = vunpack.c.h.b16 %v4369
        %v5033 = vunpack.c.l.b16 %v4370
        %v5034 = vunpack.c.l.b16 %v4371
        %v5035 = vunpack.c.h.b16 %v4371
        %v5036 = vunpack.c.l.b16 %v4372
        %v5037 = vunpack.c.l.b16 %v4373
        %v5038 = vunpack.c.h.b16 %v4373
        %v5039 = vunpack.c.l.b16 %v4374
        %v5040 = vunpack.c.l.b16 %v4375
        %v5041 = vunpack.c.h.b16 %v4375
        %v5042 = vunpack.c.l.b16 %v4376
        %v5043 = vunpack.c.l.b16 %v4377
        %v5044 = vunpack.c.h.b16 %v4377
        %v5045 = vunpack.c.l.b16 %v4378
        %v5046 = vunpack.c.l.b16 %v4379
        %v5047 = vunpack.c.h.b16 %v4379
        %v5048 = vunpack.c.l.b16 %v4380
        %v5049 = vunpack.c.l.b16 %v4381
        %v5050 = vunpack.c.h.b16 %v4381
        %v5051 = vunpack.c.l.b16 %v4382
        %v5052 = vunpack.c.l.b16 %v4383
        %v5053 = vunpack.c.h.b16 %v4383
        %v5054 = vunpack.c.l.b16 %v4384
        %v5055 = vunpack.c.l.b16 %v4385
        %v5056 = vunpack.c.h.b16 %v4385
        %v5057 = vunpack.c.l.b16 %v4386
        %v5058 = vunpack.c.l.b16 %v4387
        %v5059 = vunpack.c.h.b16 %v4387
        %v5060 = vunpack.c.l.b16 %v4388
        %v5061 = vunpack.c.l.b16 %v4389
        %v5062 = vunpack.c.h.b16 %v4389
        %v5063 = vunpack.c.l.b16 %v4390
        %v5064 = vunpack.c.l.b16 %v4391
        %v5065 = vunpack.c.h.b16 %v4391
        %v5066 = vunpack.c.l.b16 %v4392
        %v5067 = vunpack.c.l.b16 %v4393
        %v5068 = vunpack.c.h.b16 %v4393
        %v5069 = vunpack.c.l.b16 %v4394
        %v5070 = vunpack.c.l.b16 %v4395
        %v5071 = vunpack.c.h.b16 %v4395
        %v5072 = vunpack.c.l.b16 %v4396
        %v5073 = vunpack.c.l.b16 %v4397
        %v5074 = vunpack.c.h.b16 %v4397
        %v5075 = vunpack.c.l.b16 %v4398
        %v5076 = vunpack.c.l.b16 %v4399
        %v5077 = vunpack.c.h.b16 %v4399
        %v5078 = vunpack.c.l.b16 %v4400
        %v5079 = vunpack.c.l.b16 %v4401
        %v5080 = vunpack.c.h.b16 %v4401
        %v5081 = vunpack.c.l.b16 %v4402
        %v5082 = vunpack.c.l.b16 %v4403
        %v5083 = vunpack.c.h.b16 %v4403
        %v5084 = vunpack.c.l.b16 %v4404
        %v5085 = vunpack.c.l.b16 %v4405
        %v5086 = vunpack.c.h.b16 %v4405
        %v5087 = vunpack.c.l.b16 %v4406
        %v5088 = vunpack.c.l.b16 %v4407
        %v5089 = vunpack.c.h.b16 %v4407
        %v5090 = vunpack.c.l.b16 %v4408
        %v5091 = vunpack.c.l.b16 %v4409
        %v5092 = vunpack.c.h.b16 %v4409
        %v5093 = vunpack.c.l.b16 %v4410
        %v5094 = vunpack.c.l.b16 %v4411
        %v5095 = vunpack.c.h.b16 %v4411
        %v5096 = vunpack.c.l.b16 %v4412
        %v5097 = vunpack.c.l.b16 %v4413
        %v5098 = vunpack.c.h.b16 %v4413
        %v5099 = vunpack.c.l.b16 %v4414
        %v5100 = vunpack.c.l.b16 %v4415
        %v5101 = vunpack.c.h.b16 %v4415
        %v5102 = vunpack.c.l.b16 %v4416
        %v5103 = vunpack.c.l.b16 %v4417
        %v5104 = vunpack.c.h.b16 %v4417
        %v5105 = vunpack.c.l.b16 %v4418
        %v5106 = vunpack.c.l.b16 %v4419
        %v5107 = vunpack.c.h.b16 %v4419
        %v5108 = vunpack.c.l.b16 %v4420
        %v5109 = vunpack.c.l.b16 %v4421
        %v5110 = vunpack.c.h.b16 %v4421
        %v5111 = vunpack.c.l.b16 %v4422
        %v5112 = vunpack.c.l.b16 %v4423
        %v5113 = vunpack.c.h.b16 %v4423
        %v5114 = vunpack.c.l.b16 %v4424
        %v5115 = vunpack.c.l.b16 %v4425
        %v5116 = vunpack.c.h.b16 %v4425
        %v5117 = vunpack.c.l.b16 %v4426
        %v5118 = vunpack.c.l.b16 %v4427
        %v5119 = vunpack.c.h.b16 %v4427
        %v5120 = vunpack.c.l.b16 %v4428
        %v5121 = vunpack.c.l.b16 %v4429
        %v5122 = vunpack.c.h.b16 %v4429
        %v5123 = vunpack.c.l.b16 %v4430
        %v5124 = vunpack.c.l.b16 %v4431
        %v5125 = vunpack.c.h.b16 %v4431
        %v5126 = vunpack.c.l.b16 %v4432
        %v5127 = vunpack.c.l.b16 %v4433
        %v5128 = vunpack.c.h.b16 %v4433
        %v5129 = vunpack.c.l.b16 %v4434
        %v5130 = vunpack.c.l.b16 %v4435
        %v5131 = vunpack.c.h.b16 %v4435
        %v5132 = vunpack.c.l.b16 %v4436
        %v5133 = vunpack.c.l.b16 %v4437
        %v5134 = vunpack.c.h.b16 %v4437
        %v5135 = vunpack.c.l.b16 %v4438
        %v5136 = vunpack.c.l.b16 %v4439
        %v5137 = vunpack.c.h.b16 %v4439
        %v5138 = vunpack.c.l.b16 %v4440
        %v5139 = vunpack.c.l.b16 %v4441
        %v5140 = vunpack.c.h.b16 %v4441
        %v5141 = vunpack.c.l.b16 %v4442
        %v5142 = vunpack.c.l.b16 %v4443
        %v5143 = vunpack.c.h.b16 %v4443
        %v5144 = vunpack.c.l.b16 %v4444
        %v5145 = vunpack.c.l.b16 %v4445
        %v5146 = vunpack.c.h.b16 %v4445
        %v5147 = vunpack.c.l.b16 %v4446
        %v5148 = vunpack.c.l.b16 %v4447
        %v5149 = vunpack.c.h.b16 %v4447
        %v5150 = vunpack.c.l.b16 %v4448
        %v5151 = vunpack.c.l.b16 %v4449
        %v5152 = vunpack.c.h.b16 %v4449
        %v5153 = vunpack.c.l.b16 %v4450
        %v5154 = vunpack.c.l.b16 %v4451
        %v5155 = vunpack.c.h.b16 %v4451
        %v5156 = vunpack.c.l.b16 %v4452
        %v5157 = vunpack.c.l.b16 %v4453
        %v5158 = vunpack.c.h.b16 %v4453
        %v5159 = vunpack.c.l.b16 %v4454
        %v5160 = vunpack.c.l.b16 %v4455
        %v5161 = vunpack.c.h.b16 %v4455
        %v5162 = vunpack.c.l.b16 %v4456
        %v5163 = vunpack.c.l.b16 %v4457
        %v5164 = vunpack.c.h.b16 %v4457
        %v5165 = vunpack.c.l.b16 %v4458
        %v5166 = vunpack.c.l.b16 %v4459
        %v5167 = vunpack.c.h.b16 %v4459
        %v5168 = vunpack.c.l.b16 %v4460
        %v5169 = vunpack.c.l.b16 %v4461
        %v5170 = vunpack.c.h.b16 %v4461
        %v5171 = vunpack.c.l.b16 %v4462
        %v5172 = vunpack.c.l.b16 %v4463
        %v5173 = vunpack.c.h.b16 %v4463
        %v5174 = vunpack.c.l.b16 %v4464
        %v5175 = vunpack.c.l.b16 %v4465
        %v5176 = vunpack.c.h.b16 %v4465
        %v5177 = vunpack.c.l.b16 %v4466
        %v5178 = vunpack.c.l.b16 %v4467
        %v5179 = vunpack.c.h.b16 %v4467
        %v5180 = vunpack.c.l.b16 %v4468
        %v5181 = vunpack.c.l.b16 %v4469
        %v5182 = vunpack.c.h.b16 %v4469
        %v5183 = vunpack.c.l.b16 %v4470
        %v5184 = vunpack.c.l.b16 %v4471
        %v5185 = vunpack.c.h.b16 %v4471
        %v5186 = vunpack.c.l.b16 %v4472
        %v5187 = vunpack.c.l.b16 %v4473
        %v5188 = vunpack.c.h.b16 %v4473
        %v5189 = vunpack.c.l.b16 %v4474
        %v5190 = vunpack.c.l.b16 %v4475
        %v5191 = vunpack.c.h.b16 %v4475
        %v5192 = vunpack.c.l.b16 %v4476
        %v5193 = vunpack.c.l.b16 %v4477
        %v5194 = vunpack.c.h.b16 %v4477
        %v5195 = vunpack.c.l.b16 %v4478
        %v5196 = vunpack.c.l.b16 %v4479
        %v5197 = vunpack.c.h.b16 %v4479
        %v5198 = vunpack.c.l.b16 %v4480
        %v5199 = vunpack.c.l.b16 %v4481
        %v5200 = vunpack.c.h.b16 %v4481
        %v5201 = vunpack.c.l.b16 %v4482
        %v5202 = vunpack.c.l.b16 %v4483
        %v5203 = vunpack.c.h.b16 %v4483
        %v5204 = vunpack.c.l.b16 %v4484
        %v5205 = vunpack.c.l.b16 %v4485
        %v5206 = vunpack.c.h.b16 %v4485
        %v5207 = vunpack.c.l.b16 %v4486
        %v5208 = vunpack.c.l.b16 %v4487
        %v5209 = vunpack.c.h.b16 %v4487
        %v5210 = vunpack.c.l.b16 %v4488
        %v5211 = vunpack.c.l.b16 %v4489
        %v5212 = vunpack.c.h.b16 %v4489
        %v5213 = vunpack.c.l.b16 %v4490
        %v5214 = vunpack.c.l.b16 %v4491
        %v5215 = vunpack.c.h.b16 %v4491
        %v5216 = vunpack.c.l.b16 %v4492
        %v5217 = vunpack.c.l.b16 %v4493
        %v5218 = vunpack.c.h.b16 %v4493
        %v5219 = vunpack.c.l.b16 %v4494
        %v5220 = vunpack.c.l.b16 %v4495
        %v5221 = vunpack.c.h.b16 %v4495
        %v5222 = vunpack.c.l.b16 %v4496
        %v5223 = vunpack.c.l.b16 %v4497
        %v5224 = vunpack.c.h.b16 %v4497
        %v5225 = vunpack.c.l.b16 %v4498
        %v5226 = vunpack.c.l.b16 %v4499
        %v5227 = vunpack.c.h.b16 %v4499
        %v5228 = vunpack.c.l.b16 %v4500
        %v5229 = vunpack.c.l.b16 %v4501
        %v5230 = vunpack.c.h.b16 %v4501
        %v5231 = vunpack.c.l.b16 %v4502
        %v5232 = vunpack.c.l.b16 %v4503
        %v5233 = vunpack.c.h.b16 %v4503
        %v5234 = vunpack.c.l.b16 %v4504
        %v5235 = vunpack.c.l.b16 %v4505
        %v5236 = vunpack.c.h.b16 %v4505
        %v5237 = vunpack.c.l.b16 %v4506
        %v5238 = vunpack.c.l.b16 %v4507
        %v5239 = vunpack.c.h.b16 %v4507
        %v5240 = vunpack.c.l.b16 %v4508
        %v5241 = vunpack.c.l.b16 %v4509
        %v5242 = vunpack.c.h.b16 %v4509
        %v5243 = vunpack.c.l.b16 %v4510
        %v5244 = vunpack.c.l.b16 %v4511
        %v5245 = vunpack.c.h.b16 %v4511
        %v5246 = vunpack.c.l.b16 %v4512
        %v5247 = vunpack.c.l.b16 %v4513
        %v5248 = vunpack.c.h.b16 %v4513
        %v5249 = vunpack.c.l.b16 %v4514
        %v5250 = vunpack.c.l.b16 %v4515
        %v5251 = vunpack.c.h.b16 %v4515
        %v5252 = vunpack.c.l.b16 %v4516
        %v5253 = vunpack.c.l.b16 %v4517
        %v5254 = vunpack.c.h.b16 %v4517
        %v5255 = vunpack.c.l.b16 %v4518
        %v5256 = vpack.c.b16 %v4827, %v4824
        %v5257 = vpack.c.b16 %v4828, %v4825
        %v5258 = vpack.c.b16 %v4829, %v4826
        %v5259 = vpack.c.b16 %v4833, %v4830
        %v5260 = vpack.c.b16 %v4834, %v4831
        %v5261 = vpack.c.b16 %v4835, %v4832
        %v5262 = vpack.c.b16 %v4839, %v4836
        %v5263 = vpack.c.b16 %v4840, %v4837
        %v5264 = vpack.c.b16 %v4841, %v4838
        %v5265 = vpack.c.b16 %v4845, %v4842
        %v5266 = vpack.c.b16 %v4846, %v4843
        %v5267 = vpack.c.b16 %v4847, %v4844
        %v5268 = vpack.c.b16 %v4851, %v4848
        %v5269 = vpack.c.b16 %v4852, %v4849
        %v5270 = vpack.c.b16 %v4853, %v4850
        %v5271 = vpack.c.b16 %v4857, %v4854
        %v5272 = vpack.c.b16 %v4858, %v4855
        %v5273 = vpack.c.b16 %v4859, %v4856
        %v5274 = vpack.c.b16 %v4863, %v4860
        %v5275 = vpack.c.b16 %v4864, %v4861
        %v5276 = vpack.c.b16 %v4865, %v4862
        %v5277 = vpack.c.b16 %v4869, %v4866
        %v5278 = vpack.c.b16 %v4870, %v4867
        %v5279 = vpack.c.b16 %v4871, %v4868
        %v5280 = vpack.c.b16 %v4875, %v4872
        %v5281 = vpack.c.b16 %v4876, %v4873
        %v5282 = vpack.c.b16 %v4877, %v4874
        %v5283 = vpack.c.b16 %v4881, %v4878
        %v5284 = vpack.c.b16 %v4882, %v4879
        %v5285 = vpack.c.b16 %v4883, %v4880
        %v5286 = vpack.c.b16 %v4887, %v4884
        %v5287 = vpack.c.b16 %v4888, %v4885
        %v5288 = vpack.c.b16 %v4889, %v4886
        %v5289 = vpack.c.b16 %v4893, %v4890
        %v5290 = vpack.c.b16 %v4894, %v4891
        %v5291 = vpack.c.b16 %v4895, %v4892
        %v5292 = vpack.c.b16 %v4899, %v4896
        %v5293 = vpack.c.b16 %v4900, %v4897
        %v5294 = vpack.c.b16 %v4901, %v4898
        %v5295 = vpack.c.b16 %v4905, %v4902
        %v5296 = vpack.c.b16 %v4906, %v4903
        %v5297 = vpack.c.b16 %v4907, %v4904
        %v5298 = vpack.c.b16 %v4911, %v4908
        %v5299 = vpack.c.b16 %v4912, %v4909
        %v5300 = vpack.c.b16 %v4913, %v4910
        %v5301 = vpack.c.b16 %v4917, %v4914
        %v5302 = vpack.c.b16 %v4918, %v4915
        %v5303 = vpack.c.b16 %v4919, %v4916
        %v5304 = vpack.c.b16 %v4923, %v4920
        %v5305 = vpack.c.b16 %v4924, %v4921
        %v5306 = vpack.c.b16 %v4925, %v4922
        %v5307 = vpack.c.b16 %v4929, %v4926
        %v5308 = vpack.c.b16 %v4930, %v4927
        %v5309 = vpack.c.b16 %v4931, %v4928
        %v5310 = vpack.c.b16 %v4935, %v4932
        %v5311 = vpack.c.b16 %v4936, %v4933
        %v5312 = vpack.c.b16 %v4937, %v4934
        %v5313 = vpack.c.b16 %v4941, %v4938
        %v5314 = vpack.c.b16 %v4942, %v4939
        %v5315 = vpack.c.b16 %v4943, %v4940
        %v5316 = vpack.c.b16 %v4947, %v4944
        %v5317 = vpack.c.b16 %v4948, %v4945
        %v5318 = vpack.c.b16 %v4949, %v4946
        %v5319 = vpack.c.b16 %v4953, %v4950
        %v5320 = vpack.c.b16 %v4954, %v4951
        %v5321 = vpack.c.b16 %v4955, %v4952
        %v5322 = vpack.c.b16 %v4959, %v4956
        %v5323 = vpack.c.b16 %v4960, %v4957
        %v5324 = vpack.c.b16 %v4961, %v4958
        %v5325 = vpack.c.b16 %v4965, %v4962
        %v5326 = vpack.c.b16 %v4966, %v4963
        %v5327 = vpack.c.b16 %v4967, %v4964
        %v5328 = vpack.c.b16 %v4971, %v4968
        %v5329 = vpack.c.b16 %v4972, %v4969
        %v5330 = vpack.c.b16 %v4973, %v4970
        %v5331 = vpack.c.b16 %v4977, %v4974
        %v5332 = vpack.c.b16 %v4978, %v4975
        %v5333 = vpack.c.b16 %v4979, %v4976
        %v5334 = vpack.c.b16 %v4983, %v4980
        %v5335 = vpack.c.b16 %v4984, %v4981
        %v5336 = vpack.c.b16 %v4985, %v4982
        %v5337 = vpack.c.b16 %v4989, %v4986
        %v5338 = vpack.c.b16 %v4990, %v4987
        %v5339 = vpack.c.b16 %v4991, %v4988
        %v5340 = vpack.c.b16 %v4995, %v4992
        %v5341 = vpack.c.b16 %v4996, %v4993
        %v5342 = vpack.c.b16 %v4997, %v4994
        %v5343 = vpack.c.b16 %v5001, %v4998
        %v5344 = vpack.c.b16 %v5002, %v4999
        %v5345 = vpack.c.b16 %v5003, %v5000
        %v5346 = vpack.c.b16 %v5007, %v5004
        %v5347 = vpack.c.b16 %v5008, %v5005
        %v5348 = vpack.c.b16 %v5009, %v5006
        %v5349 = vpack.c.b16 %v5013, %v5010
        %v5350 = vpack.c.b16 %v5014, %v5011
        %v5351 = vpack.c.b16 %v5015, %v5012
        %v5352 = vpack.c.b16 %v5019, %v5016
        %v5353 = vpack.c.b16 %v5020, %v5017
        %v5354 = vpack.c.b16 %v5021, %v5018
        %v5355 = vpack.c.b16 %v5025, %v5022
        %v5356 = vpack.c.b16 %v5026, %v5023
        %v5357 = vpack.c.b16 %v5027, %v5024
        %v5358 = vpack.c.b16 %v5031, %v5028
        %v5359 = vpack.c.b16 %v5032, %v5029
        %v5360 = vpack.c.b16 %v5033, %v5030
        %v5361 = vpack.c.b16 %v5037, %v5034
        %v5362 = vpack.c.b16 %v5038, %v5035
        %v5363 = vpack.c.b16 %v5039, %v5036
        %v5364 = vpack.c.b16 %v5043, %v5040
        %v5365 = vpack.c.b16 %v5044, %v5041
        %v5366 = vpack.c.b16 %v5045, %v5042
        %v5367 = vpack.c.b16 %v5049, %v5046
        %v5368 = vpack.c.b16 %v5050, %v5047
        %v5369 = vpack.c.b16 %v5051, %v5048
        %v5370 = vpack.c.b16 %v5055, %v5052
        %v5371 = vpack.c.b16 %v5056, %v5053
        %v5372 = vpack.c.b16 %v5057, %v5054
        %v5373 = vpack.c.b16 %v5061, %v5058
        %v5374 = vpack.c.b16 %v5062, %v5059
        %v5375 = vpack.c.b16 %v5063, %v5060
        %v5376 = vpack.c.b16 %v5067, %v5064
        %v5377 = vpack.c.b16 %v5068, %v5065
        %v5378 = vpack.c.b16 %v5069, %v5066
        %v5379 = vpack.c.b16 %v5073, %v5070
        %v5380 = vpack.c.b16 %v5074, %v5071
        %v5381 = vpack.c.b16 %v5075, %v5072
        %v5382 = vpack.c.b16 %v5079, %v5076
        %v5383 = vpack.c.b16 %v5080, %v5077
        %v5384 = vpack.c.b16 %v5081, %v5078
        %v5385 = vpack.c.b16 %v5085, %v5082
        %v5386 = vpack.c.b16 %v5086, %v5083
        %v5387 = vpack.c.b16 %v5087, %v5084
        %v5388 = vpack.c.b16 %v5091, %v5088
        %v5389 = vpack.c.b16 %v5092, %v5089
        %v5390 = vpack.c.b16 %v5093, %v5090
        %v5391 = vpack.c.b16 %v5097, %v5094
        %v5392 = vpack.c.b16 %v5098, %v5095
        %v5393 = vpack.c.b16 %v5099, %v5096
        %v5394 = vpack.c.b16 %v5103, %v5100
        %v5395 = vpack.c.b16 %v5104, %v5101
        %v5396 = vpack.c.b16 %v5105, %v5102
        %v5397 = vpack.c.b16 %v5109, %v5106
        %v5398 = vpack.c.b16 %v5110, %v5107
        %v5399 = vpack.c.b16 %v5111, %v5108
        %v5400 = vpack.c.b16 %v5115, %v5112
        %v5401 = vpack.c.b16 %v5116, %v5113
        %v5402 = vpack.c.b16 %v5117, %v5114
        %v5403 = vpack.c.b16 %v5121, %v5118
        %v5404 = vpack.c.b16 %v5122, %v5119
        %v5405 = vpack.c.b16 %v5123, %v5120
        %v5406 = vpack.c.b16 %v5127, %v5124
        %v5407 = vpack.c.b16 %v5128, %v5125
        %v5408 = vpack.c.b16 %v5129, %v5126
        %v5409 = vpack.c.b16 %v5133, %v5130
        %v5410 = vpack.c.b16 %v5134, %v5131
        %v5411 = vpack.c.b16 %v5135, %v5132
        %v5412 = vpack.c.b16 %v5139, %v5136
        %v5413 = vpack.c.b16 %v5140, %v5137
        %v5414 = vpack.c.b16 %v5141, %v5138
        %v5415 = vpack.c.b16 %v5145, %v5142
        %v5416 = vpack.c.b16 %v5146, %v5143
        %v5417 = vpack.c.b16 %v5147, %v5144
        %v5418 = vpack.c.b16 %v5151, %v5148
        %v5419 = vpack.c.b16 %v5152, %v5149
        %v5420 = vpack.c.b16 %v5153, %v5150
        %v5421 = vpack.c.b16 %v5157, %v5154
        %v5422 = vpack.c.b16 %v5158, %v5155
        %v5423 = vpack.c.b16 %v5159, %v5156
        %v5424 = vpack.c.b16 %v5163, %v5160
        %v5425 = vpack.c.b16 %v5164, %v5161
        %v5426 = vpack.c.b16 %v5165, %v5162
        %v5427 = vpack.c.b16 %v5169, %v5166
        %v5428 = vpack.c.b16 %v5170, %v5167
        %v5429 = vpack.c.b16 %v5171, %v5168
        %v5430 = vpack.c.b16 %v5175, %v5172
        %v5431 = vpack.c.b16 %v5176, %v5173
        %v5432 = vpack.c.b16 %v5177, %v5174
        %v5433 = vpack.c.b16 %v5181, %v5178
        %v5434 = vpack.c.b16 %v5182, %v5179
        %v5435 = vpack.c.b16 %v5183, %v5180
        %v5436 = vpack.c.b16 %v5187, %v5184
        %v5437 = vpack.c.b16 %v5188, %v5185
        %v5438 = vpack.c.b16 %v5189, %v5186
        %v5439 = vpack.c.b16 %v5193, %v5190
        %v5440 = vpack.c.b16 %v5194, %v5191
        %v5441 = vpack.c.b16 %v5195, %v5192
        %v5442 = vpack.c.b16 %v5199, %v5196
        %v5443 = vpack.c.b16 %v5200, %v5197
        %v5444 = vpack.c.b16 %v5201, %v5198
        %v5445 = vpack.c.b16 %v5205, %v5202
        %v5446 = vpack.c.b16 %v5206, %v5203
        %v5447 = vpack.c.b16 %v5207, %v5204
        %v5448 = vpack.c.b16 %v5211, %v5208
        %v5449 = vpack.c.b16 %v5212, %v5209
        %v5450 = vpack.c.b16 %v5213, %v5210
        %v5451 = vpack.c.b16 %v5217, %v5214
        %v5452 = vpack.c.b16 %v5218, %v5215
        %v5453 = vpack.c.b16 %v5219, %v5216
        %v5454 = vpack.c.b16 %v5223, %v5220
        %v5455 = vpack.c.b16 %v5224, %v5221
        %v5456 = vpack.c.b16 %v5225, %v5222
        %v5457 = vpack.c.b16 %v5229, %v5226
        %v5458 = vpack.c.b16 %v5230, %v5227
        %v5459 = vpack.c.b16 %v5231, %v5228
        %v5460 = vpack.c.b16 %v5235, %v5232
        %v5461 = vpack.c.b16 %v5236, %v5233
        %v5462 = vpack.c.b16 %v5237, %v5234
        %v5463 = vpack.c.b16 %v5241, %v5238
        %v5464 = vpack.c.b16 %v5242, %v5239
        %v5465 = vpack.c.b16 %v5243, %v5240
        %v5466 = vpack.c.b16 %v5247, %v5244
        %v5467 = vpack.c.b16 %v5248, %v5245
        %v5468 = vpack.c.b16 %v5249, %v5246
        %v5469 = vpack.c.b16 %v5253, %v5250
        %v5470 = vpack.c.b16 %v5254, %v5251
        %v5471 = vpack.c.b16 %v5255, %v5252
        %5688 = vmatprep.subr.bf16.mxu0 %v5257
        %5689 = vmatpush1.bf16.msra.mxu0 %v5256
        %5690 = vmatprep.subr.bf16.mxu0 %v5260
        %5691 = vmatpush1.bf16.msra.mxu0 %v5259
        %5692 = vmatprep.subr.bf16.mxu0 %v5263
        %5693 = vmatpush1.bf16.msra.mxu0 %v5262
        %5694 = vmatprep.subr.bf16.mxu0 %v5266
        %5695 = vmatpush1.bf16.msra.mxu0 %v5265
        %5696 = vmatprep.subr.bf16.mxu0 %v5269
        %5697 = vmatpush1.bf16.msra.mxu0 %v5268
        %5698 = vmatprep.subr.bf16.mxu0 %v5272
        %5699 = vmatpush1.bf16.msra.mxu0 %v5271
        %5700 = vmatprep.subr.bf16.mxu0 %v5275
        %5701 = vmatpush1.bf16.msra.mxu0 %v5274
        %5702 = vmatprep.subr.bf16.mxu0 %v5278
        %5703 = vmatpush1.bf16.msra.mxu0 %v5277
        %5704 = vmatprep.subr.bf16.mxu0 %v5281
        %5705 = vmatpush1.bf16.msra.mxu0 %v5280
        %5706 = vmatprep.subr.bf16.mxu0 %v5284
        %5707 = vmatpush1.bf16.msra.mxu0 %v5283
        %5708 = vmatprep.subr.bf16.mxu0 %v5287
        %5709 = vmatpush1.bf16.msra.mxu0 %v5286
        %5710 = vmatprep.subr.bf16.mxu0 %v5290
        %5711 = vmatpush1.bf16.msra.mxu0 %v5289
        %5712 = vmatprep.subr.bf16.mxu0 %v5293
        %5713 = vmatpush1.bf16.msra.mxu0 %v5292
        %5714 = vmatprep.subr.bf16.mxu0 %v5296
        %5715 = vmatpush1.bf16.msra.mxu0 %v5295
        %5716 = vmatprep.subr.bf16.mxu0 %v5299
        %5717 = vmatpush1.bf16.msra.mxu0 %v5298
        %5718 = vmatprep.subr.bf16.mxu0 %v5302
        %5719 = vmatpush1.bf16.msra.mxu0 %v5301
        %5720 = vmatprep.mubr.bf16.mxu0 %v4223
        %5721 = vmatmul.mubr.bf16.gmra.mrb[0].mxu0 %v4222
        %v5722 = vpop.f32.mrb[0].mxu0
        %v5723 = vadd.f32 %v4524, %v5722
        %v5724 = vpop.f32.mrb[0].mxu0
        %v5725 = vadd.f32 %v4528, %v5724
        %v5726 = vpop.f32.mrb[0].mxu0
        %v5727 = vadd.f32 %v4524, %v5726
        %v5728 = vpop.f32.mrb[0].mxu0
        %v5729 = vadd.f32 %v4528, %v5728
        %5730 = vdwg.mxu0
        %5731 = vmatprep.subr.bf16.mxu0 %v5305
        %5732 = vmatpush1.bf16.msra.mxu0 %v5304
        %5733 = vmatprep.subr.bf16.mxu0 %v5308
        %5734 = vmatpush1.bf16.msra.mxu0 %v5307
        %5735 = vmatprep.subr.bf16.mxu0 %v5311
        %5736 = vmatpush1.bf16.msra.mxu0 %v5310
        %5737 = vmatprep.subr.bf16.mxu0 %v5314
        %5738 = vmatpush1.bf16.msra.mxu0 %v5313
        %5739 = vmatprep.subr.bf16.mxu0 %v5317
        %5740 = vmatpush1.bf16.msra.mxu0 %v5316
        %5741 = vmatprep.subr.bf16.mxu0 %v5320
        %5742 = vmatpush1.bf16.msra.mxu0 %v5319
        %5743 = vmatprep.subr.bf16.mxu0 %v5323
        %5744 = vmatpush1.bf16.msra.mxu0 %v5322
        %5745 = vmatprep.subr.bf16.mxu0 %v5326
        %5746 = vmatpush1.bf16.msra.mxu0 %v5325
        %5747 = vmatprep.subr.bf16.mxu0 %v5329
        %5748 = vmatpush1.bf16.msra.mxu0 %v5328
        %5749 = vmatprep.subr.bf16.mxu0 %v5332
        %5750 = vmatpush1.bf16.msra.mxu0 %v5331
        %5751 = vmatprep.subr.bf16.mxu0 %v5335
        %5752 = vmatpush1.bf16.msra.mxu0 %v5334
        %5753 = vmatprep.subr.bf16.mxu0 %v5338
        %5754 = vmatpush1.bf16.msra.mxu0 %v5337
        %5755 = vmatprep.subr.bf16.mxu0 %v5341
        %5756 = vmatpush1.bf16.msra.mxu0 %v5340
        %5757 = vmatprep.subr.bf16.mxu0 %v5344
        %5758 = vmatpush1.bf16.msra.mxu0 %v5343
        %5759 = vmatprep.subr.bf16.mxu0 %v5347
        %5760 = vmatpush1.bf16.msra.mxu0 %v5346
        %5761 = vmatprep.subr.bf16.mxu0 %v5350
        %5762 = vmatpush1.bf16.msra.mxu0 %v5349
        %5763 = vmatprep.mubr.bf16.mxu0 %v4225
        %5764 = vmatmul.mubr.bf16.gmra.mrb[0].mxu0 %v4224
        %v5765 = vpop.f32.mrb[0].mxu0
        %v5766 = vadd.f32 %v5723, %v5765
        %v5767 = vpop.f32.mrb[0].mxu0
        %v5768 = vadd.f32 %v5725, %v5767
        %v5769 = vpop.f32.mrb[0].mxu0
        %v5770 = vadd.f32 %v5727, %v5769
        %v5771 = vpop.f32.mrb[0].mxu0
        %v5772 = vadd.f32 %v5729, %v5771
        %5773 = vdwg.mxu0
        %5774 = vmatprep.subr.bf16.mxu0 %v5353
        %5775 = vmatpush1.bf16.msra.mxu0 %v5352
        %5776 = vmatprep.subr.bf16.mxu0 %v5356
        %5777 = vmatpush1.bf16.msra.mxu0 %v5355
        %5778 = vmatprep.subr.bf16.mxu0 %v5359
        %5779 = vmatpush1.bf16.msra.mxu0 %v5358
        %5780 = vmatprep.subr.bf16.mxu0 %v5362
        %5781 = vmatpush1.bf16.msra.mxu0 %v5361
        %5782 = vmatprep.subr.bf16.mxu0 %v5365
        %5783 = vmatpush1.bf16.msra.mxu0 %v5364
        %5784 = vmatprep.subr.bf16.mxu0 %v5368
        %5785 = vmatpush1.bf16.msra.mxu0 %v5367
        %5786 = vmatprep.subr.bf16.mxu0 %v5371
        %5787 = vmatpush1.bf16.msra.mxu0 %v5370
        %5788 = vmatprep.subr.bf16.mxu0 %v5374
        %5789 = vmatpush1.bf16.msra.mxu0 %v5373
        %5790 = vmatprep.subr.bf16.mxu0 %v5377
        %5791 = vmatpush1.bf16.msra.mxu0 %v5376
        %5792 = vmatprep.subr.bf16.mxu0 %v5380
        %5793 = vmatpush1.bf16.msra.mxu0 %v5379
        %5794 = vmatprep.subr.bf16.mxu0 %v5383
        %5795 = vmatpush1.bf16.msra.mxu0 %v5382
        %5796 = vmatprep.subr.bf16.mxu0 %v5386
        %5797 = vmatpush1.bf16.msra.mxu0 %v5385
        %5798 = vmatprep.subr.bf16.mxu0 %v5389
        %5799 = vmatpush1.bf16.msra.mxu0 %v5388
        %5800 = vmatprep.subr.bf16.mxu0 %v5392
        %5801 = vmatpush1.bf16.msra.mxu0 %v5391
        %5802 = vmatprep.subr.bf16.mxu0 %v5395
        %5803 = vmatpush1.bf16.msra.mxu0 %v5394
        %5804 = vmatprep.subr.bf16.mxu0 %v5398
        %5805 = vmatpush1.bf16.msra.mxu0 %v5397
        %5806 = vmatprep.mubr.bf16.mxu0 %v4227
        %5807 = vmatmul.mubr.bf16.gmra.mrb[0].mxu0 %v4226
        %v5808 = vpop.f32.mrb[0].mxu0
        %v5809 = vadd.f32 %v5766, %v5808
        %v5810 = vpop.f32.mrb[0].mxu0
        %v5811 = vadd.f32 %v5768, %v5810
        %v5812 = vpop.f32.mrb[0].mxu0
        %v5813 = vadd.f32 %v5770, %v5812
        %v5814 = vpop.f32.mrb[0].mxu0
        %v5815 = vadd.f32 %v5772, %v5814
        %5816 = vdwg.mxu0
        %5817 = vmatprep.subr.bf16.mxu0 %v5401
        %5818 = vmatpush1.bf16.msra.mxu0 %v5400
        %5819 = vmatprep.subr.bf16.mxu0 %v5404
        %5820 = vmatpush1.bf16.msra.mxu0 %v5403
        %5821 = vmatprep.subr.bf16.mxu0 %v5407
        %5822 = vmatpush1.bf16.msra.mxu0 %v5406
        %5823 = vmatprep.subr.bf16.mxu0 %v5410
        %5824 = vmatpush1.bf16.msra.mxu0 %v5409
        %5825 = vmatprep.subr.bf16.mxu0 %v5413
        %5826 = vmatpush1.bf16.msra.mxu0 %v5412
        %5827 = vmatprep.subr.bf16.mxu0 %v5416
        %5828 = vmatpush1.bf16.msra.mxu0 %v5415
        %5829 = vmatprep.subr.bf16.mxu0 %v5419
        %5830 = vmatpush1.bf16.msra.mxu0 %v5418
        %5831 = vmatprep.subr.bf16.mxu0 %v5422
        %5832 = vmatpush1.bf16.msra.mxu0 %v5421
        %5833 = vmatprep.subr.bf16.mxu0 %v5425
        %5834 = vmatpush1.bf16.msra.mxu0 %v5424
        %5835 = vmatprep.subr.bf16.mxu0 %v5428
        %5836 = vmatpush1.bf16.msra.mxu0 %v5427
        %5837 = vmatprep.subr.bf16.mxu0 %v5431
        %5838 = vmatpush1.bf16.msra.mxu0 %v5430
        %5839 = vmatprep.subr.bf16.mxu0 %v5434
        %5840 = vmatpush1.bf16.msra.mxu0 %v5433
        %5841 = vmatprep.subr.bf16.mxu0 %v5437
        %5842 = vmatpush1.bf16.msra.mxu0 %v5436
        %5843 = vmatprep.subr.bf16.mxu0 %v5440
        %5844 = vmatpush1.bf16.msra.mxu0 %v5439
        %5845 = vmatprep.subr.bf16.mxu0 %v5443
        %5846 = vmatpush1.bf16.msra.mxu0 %v5442
        %5847 = vmatprep.subr.bf16.mxu0 %v5446
        %5848 = vmatpush1.bf16.msra.mxu0 %v5445
        %5849 = vmatprep.mubr.bf16.mxu0 %v4229
        %5850 = vmatmul.mubr.bf16.gmra.mrb[0].mxu0 %v4228
        %v5851 = vpop.f32.mrb[0].mxu0
        %v5852 = vadd.f32 %v5809, %v5851
        %v5853 = vpop.f32.mrb[0].mxu0
        %v5854 = vadd.f32 %v5811, %v5853
        %v5855 = vpop.f32.mrb[0].mxu0
        %v5856 = vadd.f32 %v5813, %v5855
        %v5857 = vpop.f32.mrb[0].mxu0
        %v5858 = vadd.f32 %v5815, %v5857
        %5859 = vdwg.mxu0
        %5860 = vmatprep.subr.bf16.mxu0 %v5449
        %5861 = vmatpush1.bf16.msra.mxu0 %v5448
        %5862 = vmatprep.subr.bf16.mxu0 %v5452
        %5863 = vmatpush1.bf16.msra.mxu0 %v5451
        %5864 = vmatprep.subr.bf16.mxu0 %v5455
        %5865 = vmatpush1.bf16.msra.mxu0 %v5454
        %5866 = vmatprep.subr.bf16.mxu0 %v5458
        %5867 = vmatpush1.bf16.msra.mxu0 %v5457
        %5868 = vmatprep.subr.bf16.mxu0 %v5461
        %5869 = vmatpush1.bf16.msra.mxu0 %v5460
        %5870 = vmatprep.subr.bf16.mxu0 %v5464
        %5871 = vmatpush1.bf16.msra.mxu0 %v5463
        %5872 = vmatprep.subr.bf16.mxu0 %v5467
        %5873 = vmatpush1.bf16.msra.mxu0 %v5466
        %5874 = vmatprep.subr.bf16.mxu0 %v5470
        %5875 = vmatpush1.bf16.msra.mxu0 %v5469
        %5876 = vmatprep.subr.bf16.mxu0 0
        %5877 = vmatpush1.bf16.msra.mxu0 0
        %5878 = vmatprep.subr.bf16.mxu0 0
        %5879 = vmatpush1.bf16.msra.mxu0 0
        %5880 = vmatprep.subr.bf16.mxu0 0
        %5881 = vmatpush1.bf16.msra.mxu0 0
        %5882 = vmatprep.subr.bf16.mxu0 0
        %5883 = vmatpush1.bf16.msra.mxu0 0
        %5884 = vmatprep.subr.bf16.mxu0 0
        %5885 = vmatpush1.bf16.msra.mxu0 0
        %5886 = vmatprep.subr.bf16.mxu0 0
        %5887 = vmatpush1.bf16.msra.mxu0 0
        %5888 = vmatprep.subr.bf16.mxu0 0
        %5889 = vmatpush1.bf16.msra.mxu0 0
        %5890 = vmatprep.subr.bf16.mxu0 0
        %5891 = vmatpush1.bf16.msra.mxu0 0
        %5892 = vmatprep.mubr.bf16.mxu0 0
        %5893 = vmatmul.mubr.bf16.gmra.mrb[0].mxu0 %v4230
        %v5894 = vpop.f32.mrb[0].mxu0
        %v5895 = vadd.f32 %v5852, %v5894
        %v5896 = vpop.f32.mrb[0].mxu0
        %v5897 = vadd.f32 %v5854, %v5896
        %v5898 = vpop.f32.mrb[0].mxu0
        %v5899 = vadd.f32 %v5856, %v5898
        %v5900 = vpop.f32.mrb[0].mxu0
        %v5901 = vadd.f32 %v5858, %v5900
        %5902 = vdwg.mxu0
        %5903 = vmatprep.subr.bf16.mxu0 0
        %5904 = vmatpush1.bf16.msra.mxu0 %v5258
        %5905 = vmatprep.subr.bf16.mxu0 0
        %5906 = vmatpush1.bf16.msra.mxu0 %v5261
        %5907 = vmatprep.subr.bf16.mxu0 0
        %5908 = vmatpush1.bf16.msra.mxu0 %v5264
        %5909 = vmatprep.subr.bf16.mxu0 0
        %5910 = vmatpush1.bf16.msra.mxu0 %v5267
        %5911 = vmatprep.subr.bf16.mxu0 0
        %5912 = vmatpush1.bf16.msra.mxu0 %v5270
        %5913 = vmatprep.subr.bf16.mxu0 0
        %5914 = vmatpush1.bf16.msra.mxu0 %v5273
        %5915 = vmatprep.subr.bf16.mxu0 0
        %5916 = vmatpush1.bf16.msra.mxu0 %v5276
        %5917 = vmatprep.subr.bf16.mxu0 0
        %5918 = vmatpush1.bf16.msra.mxu0 %v5279
        %5919 = vmatprep.subr.bf16.mxu0 0
        %5920 = vmatpush1.bf16.msra.mxu0 %v5282
        %5921 = vmatprep.subr.bf16.mxu0 0
        %5922 = vmatpush1.bf16.msra.mxu0 %v5285
        %5923 = vmatprep.subr.bf16.mxu0 0
        %5924 = vmatpush1.bf16.msra.mxu0 %v5288
        %5925 = vmatprep.subr.bf16.mxu0 0
        %5926 = vmatpush1.bf16.msra.mxu0 %v5291
        %5927 = vmatprep.subr.bf16.mxu0 0
        %5928 = vmatpush1.bf16.msra.mxu0 %v5294
        %5929 = vmatprep.subr.bf16.mxu0 0
        %5930 = vmatpush1.bf16.msra.mxu0 %v5297
        %5931 = vmatprep.subr.bf16.mxu0 0
        %5932 = vmatpush1.bf16.msra.mxu0 %v5300
        %5933 = vmatprep.subr.bf16.mxu0 0
        %5934 = vmatpush1.bf16.msra.mxu0 %v5303
        %5935 = vmatprep.mubr.bf16.mxu0 %v4223
        %5936 = vmatmul.mubr.bf16.gmra.mrb[0].mxu0 %v4222
        %v5937 = vpop.f32.mrb[0].mxu0
        %v5938 = vadd.f32 %v4532, %v5937
        %v5939 = vpop.f32.mrb[0].mxu0
        %v5940 = vpop.f32.mrb[0].mxu0
        %v5941 = vadd.f32 %v4532, %v5940
        %v5942 = vpop.f32.mrb[0].mxu0
        %5943 = vdwg.mxu0
        %5944 = vmatprep.subr.bf16.mxu0 0
        %5945 = vmatpush1.bf16.msra.mxu0 %v5306
        %5946 = vmatprep.subr.bf16.mxu0 0
        %5947 = vmatpush1.bf16.msra.mxu0 %v5309
        %5948 = vmatprep.subr.bf16.mxu0 0
        %5949 = vmatpush1.bf16.msra.mxu0 %v5312
        %5950 = vmatprep.subr.bf16.mxu0 0
        %5951 = vmatpush1.bf16.msra.mxu0 %v5315
        %5952 = vmatprep.subr.bf16.mxu0 0
        %5953 = vmatpush1.bf16.msra.mxu0 %v5318
        %5954 = vmatprep.subr.bf16.mxu0 0
        %5955 = vmatpush1.bf16.msra.mxu0 %v5321
        %5956 = vmatprep.subr.bf16.mxu0 0
        %5957 = vmatpush1.bf16.msra.mxu0 %v5324
        %5958 = vmatprep.subr.bf16.mxu0 0
        %5959 = vmatpush1.bf16.msra.mxu0 %v5327
        %5960 = vmatprep.subr.bf16.mxu0 0
        %5961 = vmatpush1.bf16.msra.mxu0 %v5330
        %5962 = vmatprep.subr.bf16.mxu0 0
        %5963 = vmatpush1.bf16.msra.mxu0 %v5333
        %5964 = vmatprep.subr.bf16.mxu0 0
        %5965 = vmatpush1.bf16.msra.mxu0 %v5336
        %5966 = vmatprep.subr.bf16.mxu0 0
        %5967 = vmatpush1.bf16.msra.mxu0 %v5339
        %5968 = vmatprep.subr.bf16.mxu0 0
        %5969 = vmatpush1.bf16.msra.mxu0 %v5342
        %5970 = vmatprep.subr.bf16.mxu0 0
        %5971 = vmatpush1.bf16.msra.mxu0 %v5345
        %5972 = vmatprep.subr.bf16.mxu0 0
        %5973 = vmatpush1.bf16.msra.mxu0 %v5348
        %5974 = vmatprep.subr.bf16.mxu0 0
        %5975 = vmatpush1.bf16.msra.mxu0 %v5351
        %5976 = vmatprep.mubr.bf16.mxu0 %v4225
        %5977 = vmatmul.mubr.bf16.gmra.mrb[0].mxu0 %v4224
        %v5978 = vpop.f32.mrb[0].mxu0
        %v5979 = vadd.f32 %v5938, %v5978
        %v5980 = vpop.f32.mrb[0].mxu0
        %v5981 = vpop.f32.mrb[0].mxu0
        %v5982 = vadd.f32 %v5941, %v5981
        %v5983 = vpop.f32.mrb[0].mxu0
        %5984 = vdwg.mxu0
        %5985 = vmatprep.subr.bf16.mxu0 0
        %5986 = vmatpush1.bf16.msra.mxu0 %v5354
        %5987 = vmatprep.subr.bf16.mxu0 0
        %5988 = vmatpush1.bf16.msra.mxu0 %v5357
        %5989 = vmatprep.subr.bf16.mxu0 0
        %5990 = vmatpush1.bf16.msra.mxu0 %v5360
        %5991 = vmatprep.subr.bf16.mxu0 0
        %5992 = vmatpush1.bf16.msra.mxu0 %v5363
        %5993 = vmatprep.subr.bf16.mxu0 0
        %5994 = vmatpush1.bf16.msra.mxu0 %v5366
        %5995 = vmatprep.subr.bf16.mxu0 0
        %5996 = vmatpush1.bf16.msra.mxu0 %v5369
        %5997 = vmatprep.subr.bf16.mxu0 0
        %5998 = vmatpush1.bf16.msra.mxu0 %v5372
        %5999 = vmatprep.subr.bf16.mxu0 0
        %6000 = vmatpush1.bf16.msra.mxu0 %v5375
        %6001 = vmatprep.subr.bf16.mxu0 0
        %6002 = vmatpush1.bf16.msra.mxu0 %v5378
        %6003 = vmatprep.subr.bf16.mxu0 0
        %6004 = vmatpush1.bf16.msra.mxu0 %v5381
        %6005 = vmatprep.subr.bf16.mxu0 0
        %6006 = vmatpush1.bf16.msra.mxu0 %v5384
        %6007 = vmatprep.subr.bf16.mxu0 0
        %6008 = vmatpush1.bf16.msra.mxu0 %v5387
        %6009 = vmatprep.subr.bf16.mxu0 0
        %6010 = vmatpush1.bf16.msra.mxu0 %v5390
        %6011 = vmatprep.subr.bf16.mxu0 0
        %6012 = vmatpush1.bf16.msra.mxu0 %v5393
        %6013 = vmatprep.subr.bf16.mxu0 0
        %6014 = vmatpush1.bf16.msra.mxu0 %v5396
        %6015 = vmatprep.subr.bf16.mxu0 0
        %6016 = vmatpush1.bf16.msra.mxu0 %v5399
        %6017 = vmatprep.mubr.bf16.mxu0 %v4227
        %6018 = vmatmul.mubr.bf16.gmra.mrb[0].mxu0 %v4226
        %v6019 = vpop.f32.mrb[0].mxu0
        %v6020 = vadd.f32 %v5979, %v6019
        %v6021 = vpop.f32.mrb[0].mxu0
        %v6022 = vpop.f32.mrb[0].mxu0
        %v6023 = vadd.f32 %v5982, %v6022
        %v6024 = vpop.f32.mrb[0].mxu0
        %6025 = vdwg.mxu0
        %6026 = vmatprep.subr.bf16.mxu0 0
        %6027 = vmatpush1.bf16.msra.mxu0 %v5402
        %6028 = vmatprep.subr.bf16.mxu0 0
        %6029 = vmatpush1.bf16.msra.mxu0 %v5405
        %6030 = vmatprep.subr.bf16.mxu0 0
        %6031 = vmatpush1.bf16.msra.mxu0 %v5408
        %6032 = vmatprep.subr.bf16.mxu0 0
        %6033 = vmatpush1.bf16.msra.mxu0 %v5411
        %6034 = vmatprep.subr.bf16.mxu0 0
        %6035 = vmatpush1.bf16.msra.mxu0 %v5414
        %6036 = vmatprep.subr.bf16.mxu0 0
        %6037 = vmatpush1.bf16.msra.mxu0 %v5417
        %6038 = vmatprep.subr.bf16.mxu0 0
        %6039 = vmatpush1.bf16.msra.mxu0 %v5420
        %6040 = vmatprep.subr.bf16.mxu0 0
        %6041 = vmatpush1.bf16.msra.mxu0 %v5423
        %6042 = vmatprep.subr.bf16.mxu0 0
        %6043 = vmatpush1.bf16.msra.mxu0 %v5426
        %6044 = vmatprep.subr.bf16.mxu0 0
        %6045 = vmatpush1.bf16.msra.mxu0 %v5429
        %6046 = vmatprep.subr.bf16.mxu0 0
        %6047 = vmatpush1.bf16.msra.mxu0 %v5432
        %6048 = vmatprep.subr.bf16.mxu0 0
        %6049 = vmatpush1.bf16.msra.mxu0 %v5435
        %6050 = vmatprep.subr.bf16.mxu0 0
        %6051 = vmatpush1.bf16.msra.mxu0 %v5438
        %6052 = vmatprep.subr.bf16.mxu0 0
        %6053 = vmatpush1.bf16.msra.mxu0 %v5441
        %6054 = vmatprep.subr.bf16.mxu0 0
        %6055 = vmatpush1.bf16.msra.mxu0 %v5444
        %6056 = vmatprep.subr.bf16.mxu0 0
        %6057 = vmatpush1.bf16.msra.mxu0 %v5447
        %6058 = vmatprep.mubr.bf16.mxu0 %v4229
        %6059 = vmatmul.mubr.bf16.gmra.mrb[0].mxu0 %v4228
        %v6060 = vpop.f32.mrb[0].mxu0
        %v6061 = vadd.f32 %v6020, %v6060
        %v6062 = vpop.f32.mrb[0].mxu0
        %v6063 = vpop.f32.mrb[0].mxu0
        %v6064 = vadd.f32 %v6023, %v6063
        %v6065 = vpop.f32.mrb[0].mxu0
        %6066 = vdwg.mxu0
        %6067 = vmatprep.subr.bf16.mxu0 0
        %6068 = vmatpush1.bf16.msra.mxu0 %v5450
        %6069 = vmatprep.subr.bf16.mxu0 0
        %6070 = vmatpush1.bf16.msra.mxu0 %v5453
        %6071 = vmatprep.subr.bf16.mxu0 0
        %6072 = vmatpush1.bf16.msra.mxu0 %v5456
        %6073 = vmatprep.subr.bf16.mxu0 0
        %6074 = vmatpush1.bf16.msra.mxu0 %v5459
        %6075 = vmatprep.subr.bf16.mxu0 0
        %6076 = vmatpush1.bf16.msra.mxu0 %v5462
        %6077 = vmatprep.subr.bf16.mxu0 0
        %6078 = vmatpush1.bf16.msra.mxu0 %v5465
        %6079 = vmatprep.subr.bf16.mxu0 0
        %6080 = vmatpush1.bf16.msra.mxu0 %v5468
        %6081 = vmatprep.subr.bf16.mxu0 0
        %6082 = vmatpush1.bf16.msra.mxu0 %v5471
        %6083 = vmatprep.subr.bf16.mxu0 0
        %6084 = vmatpush1.bf16.msra.mxu0 0
        %6085 = vmatprep.subr.bf16.mxu0 0
        %6086 = vmatpush1.bf16.msra.mxu0 0
        %6087 = vmatprep.subr.bf16.mxu0 0
        %6088 = vmatpush1.bf16.msra.mxu0 0
        %6089 = vmatprep.subr.bf16.mxu0 0
        %6090 = vmatpush1.bf16.msra.mxu0 0
        %6091 = vmatprep.subr.bf16.mxu0 0
        %6092 = vmatpush1.bf16.msra.mxu0 0
        %6093 = vmatprep.subr.bf16.mxu0 0
        %6094 = vmatpush1.bf16.msra.mxu0 0
        %6095 = vmatprep.subr.bf16.mxu0 0
        %6096 = vmatpush1.bf16.msra.mxu0 0
        %6097 = vmatprep.subr.bf16.mxu0 0
        %6098 = vmatpush1.bf16.msra.mxu0 0
        %6099 = vmatprep.mubr.bf16.mxu0 0
        %6100 = vmatmul.mubr.bf16.gmra.mrb[0].mxu0 %v4230
        %v6101 = vpop.f32.mrb[0].mxu0
        %v6102 = vadd.f32 %v6061, %v6101
        %v6103 = vpop.f32.mrb[0].mxu0
        %v6104 = vpop.f32.mrb[0].mxu0
        %v6105 = vadd.f32 %v6064, %v6104
        %v6106 = vpop.f32.mrb[0].mxu0
        %6107 = vdwg.mxu0
        %v6108 = vpack.c.bf16 %v5899, %v5895
        %v6109 = vpack.c.bf16 %v5901, %v5897
        %v6110 = vpack.c.bf16 %v6105, %v6102
        %v6111 = vld [vmem:[%s15] sm:$0xf]
        %v6112 = vld [vmem:[%s15 + $0x4] sm:$0xf]
        %v6113 = vld [vmem:[%s15 + $0x8] sm:$0xf]
        %v6114 = vld [vmem:[%s15 + $0xc] sm:$0xf]
        %v6115 = vld [vmem:[%s15 + $0x10] sm:$0xf]
        %v6116 = vld [vmem:[%s15 + $0x14] sm:$0xf]
        %v6117 = vld [vmem:[%s15 + $0x18] sm:$0xf]
        %v6118 = vld [vmem:[%s15 + $0x1c] sm:$0xf]
        %v6119 = vld [vmem:[%s15 + $0x20] sm:$0xf]
        %v6120 = vld [vmem:[%s15 + $0x24] sm:$0xf]
        %v6121 = vld [vmem:[%s15 + $0x28] sm:$0xf]
        %v6122 = vld [vmem:[%s15 + $0x2c] sm:$0xf]
        %v6123 = vld [vmem:[%s15 + $0x30] sm:$0xf]
        %v6124 = vld [vmem:[%s15 + $0x34] sm:$0xf]
        %v6125 = vld [vmem:[%s15 + $0x38] sm:$0xf]
        %v6126 = vld [vmem:[%s15 + $0x3c] sm:$0xf]
        %v6127 = vld [vmem:[%s15 + $0x40] sm:$0xf]
        %v6128 = vld [vmem:[%s15 + $0x44] sm:$0xf]
        %v6129 = vld [vmem:[%s15 + $0x48] sm:$0xf]
        %v6130 = vld [vmem:[%s15 + $0x4c] sm:$0xf]
        %v6131 = vld [vmem:[%s15 + $0x50] sm:$0xf]
        %v6132 = vld [vmem:[%s15 + $0x54] sm:$0xf]
        %v6133 = vld [vmem:[%s15 + $0x58] sm:$0xf]
        %v6134 = vld [vmem:[%s15 + $0x5c] sm:$0xf]
        %v6135 = vld [vmem:[%s15 + $0x60] sm:$0xf]
        %v6136 = vld [vmem:[%s15 + $0x64] sm:$0xf]
        %v6137 = vld [vmem:[%s15 + $0x68] sm:$0xf]
        %v6138 = vld [vmem:[%s15 + $0x6c] sm:$0xf]
        %v6139 = vld [vmem:[%s15 + $0x70] sm:$0xf]
        %v6140 = vld [vmem:[%s15 + $0x74] sm:$0xf]
        %v6141 = vld [vmem:[%s15 + $0x78] sm:$0xf]
        %v6142 = vld [vmem:[%s15 + $0x7c] sm:$0xf]
        %v6143 = vld [vmem:[%s15 + $0x80] sm:$0xf]
        %v6144 = vld [vmem:[%s15 + $0x84] sm:$0xf]
        %v6145 = vld [vmem:[%s15 + $0x88] sm:$0xf]
        %v6146 = vld [vmem:[%s15 + $0x8c] sm:$0xf]
        %v6147 = vld [vmem:[%s15 + $0x90] sm:$0xf]
        %v6148 = vld [vmem:[%s15 + $0x94] sm:$0xf]
        %v6149 = vld [vmem:[%s15 + $0x98] sm:$0xf]
        %v6150 = vld [vmem:[%s15 + $0x9c] sm:$0xf]
        %v6151 = vld [vmem:[%s15 + $0xa0] sm:$0xf]
        %v6152 = vld [vmem:[%s15 + $0xa4] sm:$0xf]
        %v6153 = vld [vmem:[%s15 + $0xa8] sm:$0xf]
        %v6154 = vld [vmem:[%s15 + $0xac] sm:$0xf]
        %v6155 = vld [vmem:[%s15 + $0xb0] sm:$0xf]
        %v6156 = vld [vmem:[%s15 + $0xb4] sm:$0xf]
        %v6157 = vld [vmem:[%s15 + $0xb8] sm:$0xf]
        %v6158 = vld [vmem:[%s15 + $0xbc] sm:$0xf]
        %v6159 = vld [vmem:[%s16 + $0xc] sm:$0x1]
        %v6161 = vlaneseq
        %v6162 = vshrl.u32 %v6161, 7
        %v6163 = vsub.s32 0, %v6162
        %v6164 = vrot.slane %v6159, %v6163
        %v6214 = vunpack.c.l.b16 %v6111
        %v6215 = vunpack.c.l.b16 %v6112
        %v6216 = vunpack.c.l.b16 %v6113
        %v6217 = vunpack.c.l.b16 %v6114
        %v6218 = vunpack.c.l.b16 %v6115
        %v6219 = vunpack.c.l.b16 %v6116
        %v6220 = vunpack.c.l.b16 %v6117
        %v6221 = vunpack.c.l.b16 %v6118
        %v6222 = vunpack.c.l.b16 %v6119
        %v6223 = vunpack.c.l.b16 %v6120
        %v6224 = vunpack.c.l.b16 %v6121
        %v6225 = vunpack.c.l.b16 %v6122
        %v6226 = vunpack.c.l.b16 %v6123
        %v6227 = vunpack.c.l.b16 %v6124
        %v6228 = vunpack.c.l.b16 %v6125
        %v6229 = vunpack.c.l.b16 %v6126
        %v6230 = vunpack.c.l.b16 %v6127
        %v6231 = vunpack.c.l.b16 %v6128
        %v6232 = vunpack.c.l.b16 %v6129
        %v6233 = vunpack.c.l.b16 %v6130
        %v6234 = vunpack.c.l.b16 %v6131
        %v6235 = vunpack.c.l.b16 %v6132
        %v6236 = vunpack.c.l.b16 %v6133
        %v6237 = vunpack.c.l.b16 %v6134
        %v6238 = vunpack.c.l.b16 %v6135
        %v6239 = vunpack.c.l.b16 %v6136
        %v6240 = vunpack.c.l.b16 %v6137
        %v6241 = vunpack.c.l.b16 %v6138
        %v6242 = vunpack.c.l.b16 %v6139
        %v6243 = vunpack.c.l.b16 %v6140
        %v6244 = vunpack.c.l.b16 %v6141
        %v6245 = vunpack.c.l.b16 %v6142
        %v6246 = vunpack.c.l.b16 %v6143
        %v6247 = vunpack.c.l.b16 %v6144
        %v6248 = vunpack.c.l.b16 %v6145
        %v6249 = vunpack.c.l.b16 %v6146
        %v6250 = vunpack.c.l.b16 %v6147
        %v6251 = vunpack.c.l.b16 %v6148
        %v6252 = vunpack.c.l.b16 %v6149
        %v6253 = vunpack.c.l.b16 %v6150
        %v6254 = vunpack.c.l.b16 %v6151
        %v6255 = vunpack.c.l.b16 %v6152
        %v6256 = vunpack.c.l.b16 %v6153
        %v6257 = vunpack.c.l.b16 %v6154
        %v6258 = vunpack.c.l.b16 %v6155
        %v6259 = vunpack.c.l.b16 %v6156
        %v6260 = vunpack.c.l.b16 %v6157
        %v6261 = vunpack.c.l.b16 %v6158
        %v6262 = vpack.c.b16 %v6215, %v6214
        %v6263 = vpack.c.b16 %v6217, %v6216
        %v6264 = vpack.c.b16 %v6219, %v6218
        %v6265 = vpack.c.b16 %v6221, %v6220
        %v6266 = vpack.c.b16 %v6223, %v6222
        %v6267 = vpack.c.b16 %v6225, %v6224
        %v6268 = vpack.c.b16 %v6227, %v6226
        %v6269 = vpack.c.b16 %v6229, %v6228
        %v6270 = vpack.c.b16 %v6231, %v6230
        %v6271 = vpack.c.b16 %v6233, %v6232
        %v6272 = vpack.c.b16 %v6235, %v6234
        %v6273 = vpack.c.b16 %v6237, %v6236
        %v6274 = vpack.c.b16 %v6239, %v6238
        %v6275 = vpack.c.b16 %v6241, %v6240
        %v6276 = vpack.c.b16 %v6243, %v6242
        %v6277 = vpack.c.b16 %v6245, %v6244
        %v6278 = vpack.c.b16 %v6247, %v6246
        %v6279 = vpack.c.b16 %v6249, %v6248
        %v6280 = vpack.c.b16 %v6251, %v6250
        %v6281 = vpack.c.b16 %v6253, %v6252
        %v6282 = vpack.c.b16 %v6255, %v6254
        %v6283 = vpack.c.b16 %v6257, %v6256
        %v6284 = vpack.c.b16 %v6259, %v6258
        %v6285 = vpack.c.b16 %v6261, %v6260
        %6310 = vmatprep.subr.bf16.mxu0 0
        %6311 = vmatpush1.bf16.msra.mxu0 %v6262
        %6312 = vmatprep.subr.bf16.mxu0 0
        %6313 = vmatpush1.bf16.msra.mxu0 %v6263
        %6314 = vmatprep.subr.bf16.mxu0 0
        %6315 = vmatpush1.bf16.msra.mxu0 %v6264
        %6316 = vmatprep.subr.bf16.mxu0 0
        %6317 = vmatpush1.bf16.msra.mxu0 %v6265
        %6318 = vmatprep.subr.bf16.mxu0 0
        %6319 = vmatpush1.bf16.msra.mxu0 %v6266
        %6320 = vmatprep.subr.bf16.mxu0 0
        %6321 = vmatpush1.bf16.msra.mxu0 %v6267
        %6322 = vmatprep.subr.bf16.mxu0 0
        %6323 = vmatpush1.bf16.msra.mxu0 %v6268
        %6324 = vmatprep.subr.bf16.mxu0 0
        %6325 = vmatpush1.bf16.msra.mxu0 %v6269
        %6326 = vmatprep.subr.bf16.mxu0 0
        %6327 = vmatpush1.bf16.msra.mxu0 %v6270
        %6328 = vmatprep.subr.bf16.mxu0 0
        %6329 = vmatpush1.bf16.msra.mxu0 %v6271
        %6330 = vmatprep.subr.bf16.mxu0 0
        %6331 = vmatpush1.bf16.msra.mxu0 %v6272
        %6332 = vmatprep.subr.bf16.mxu0 0
        %6333 = vmatpush1.bf16.msra.mxu0 %v6273
        %6334 = vmatprep.subr.bf16.mxu0 0
        %6335 = vmatpush1.bf16.msra.mxu0 %v6274
        %6336 = vmatprep.subr.bf16.mxu0 0
        %6337 = vmatpush1.bf16.msra.mxu0 %v6275
        %6338 = vmatprep.subr.bf16.mxu0 0
        %6339 = vmatpush1.bf16.msra.mxu0 %v6276
        %6340 = vmatprep.subr.bf16.mxu0 0
        %6341 = vmatpush1.bf16.msra.mxu0 %v6277
        %6342 = vmatprep.mubr.bf16.mxu0 %v6109
        %6343 = vmatmul.mubr.bf16.gmra.mrb[0].mxu0 %v6108
        %v6344 = vpop.f32.mrb[0].mxu0
        %v6345 = vadd.f32 %v6164, %v6344
        %v6346 = vpop.f32.mrb[0].mxu0
        %v6347 = vpop.f32.mrb[0].mxu0
        %v6348 = vadd.f32 %v6164, %v6347
        %v6349 = vpop.f32.mrb[0].mxu0
        %6350 = vdwg.mxu0
        %6351 = vmatprep.subr.bf16.mxu0 0
        %6352 = vmatpush1.bf16.msra.mxu0 %v6278
        %6353 = vmatprep.subr.bf16.mxu0 0
        %6354 = vmatpush1.bf16.msra.mxu0 %v6279
        %6355 = vmatprep.subr.bf16.mxu0 0
        %6356 = vmatpush1.bf16.msra.mxu0 %v6280
        %6357 = vmatprep.subr.bf16.mxu0 0
        %6358 = vmatpush1.bf16.msra.mxu0 %v6281
        %6359 = vmatprep.subr.bf16.mxu0 0
        %6360 = vmatpush1.bf16.msra.mxu0 %v6282
        %6361 = vmatprep.subr.bf16.mxu0 0
        %6362 = vmatpush1.bf16.msra.mxu0 %v6283
        %6363 = vmatprep.subr.bf16.mxu0 0
        %6364 = vmatpush1.bf16.msra.mxu0 %v6284
        %6365 = vmatprep.subr.bf16.mxu0 0
        %6366 = vmatpush1.bf16.msra.mxu0 %v6285
        %6367 = vmatprep.subr.bf16.mxu0 0
        %6368 = vmatpush1.bf16.msra.mxu0 0
        %6369 = vmatprep.subr.bf16.mxu0 0
        %6370 = vmatpush1.bf16.msra.mxu0 0
        %6371 = vmatprep.subr.bf16.mxu0 0
        %6372 = vmatpush1.bf16.msra.mxu0 0
        %6373 = vmatprep.subr.bf16.mxu0 0
        %6374 = vmatpush1.bf16.msra.mxu0 0
        %6375 = vmatprep.subr.bf16.mxu0 0
        %6376 = vmatpush1.bf16.msra.mxu0 0
        %6377 = vmatprep.subr.bf16.mxu0 0
        %6378 = vmatpush1.bf16.msra.mxu0 0
        %6379 = vmatprep.subr.bf16.mxu0 0
        %6380 = vmatpush1.bf16.msra.mxu0 0
        %6381 = vmatprep.subr.bf16.mxu0 0
        %6382 = vmatpush1.bf16.msra.mxu0 0
        %6383 = vmatprep.mubr.bf16.mxu0 0
        %6384 = vmatmul.mubr.bf16.gmra.mrb[0].mxu0 %v6110
        %v6385 = vpop.f32.mrb[0].mxu0
        %v6386 = vadd.f32 %v6345, %v6385
        %v6387 = vpop.f32.mrb[0].mxu0
        %v6388 = vpop.f32.mrb[0].mxu0
        %v6389 = vadd.f32 %v6348, %v6388
        %v6390 = vpop.f32.mrb[0].mxu0
        %6391 = vdwg.mxu0
        %6392 = vst.msk [vmem:[%s597] sm:$0xff] %vm2083, %v6386
        %6393 = vst.msk [vmem:[%s597 + $0x8] sm:$0xff] %vm2083, %v6389
        %s6394 = sand.u32 %s413, 1
        %s6395 = scalar_lea.sflag [#allocation4], %s6394
        %s6396 = sand.u32 %s413, 1
        %s6397 = smul.addr %s6396, 16
        %s6398 = scalar_lea.vmem [#allocation7], %s6397
        // Predicated region
        $region97: #{aggregation_forward.1} parent=87 // pred_check
          %p6399 = pneg %p423
        $region98: #{aggregation_forward.1} parent=87 // pred_check_branch
          %6401 = sbr.rel (%p6399) target = $region100
        $region99: #{aggregation_forward.1} parent=87 // pred_region
          %s6403 = ssub.s32 256, 256
          %6404 = vsyncadd %s6395, %s6403
          %s6405 = smul.addr %s33, 2
          %s6406 = smul.addr %s6405, 128
          %s6407 = scalar_lea.hbm %s17, %s6406
          %s6408 = sshll.u32 %s6398, 4
          %s6409 = int_to_ptr.vmem [resolvable:$true] %s6408
          %6414 = dma.vmem_to_hbm [thread:$0]  %s6409, 256, %s6407, %s6395, 128, 128, 8
        $region100: #{aggregation_forward.1} parent=87 // pred_fallthru
          _
      $region88: #{aggregation_forward.1} parent=5 // pred_fallthru
        _
      %p6415 = scmp.le.s32.totalorder 2, %s28
      // Predicated region
      $region101: #{aggregation_forward.1} parent=5 // pred_check
        %p6416 = pneg %p6415
      $region102: #{aggregation_forward.1} parent=5 // pred_check_branch
        %6418 = sbr.rel (%p6416) target = $region104
      $region103: #{aggregation_forward.1} parent=5 // pred_region
        %s6419 = ssub.s32 %s28, 2
        // Predicated region
        $region105: #{aggregation_forward.1} parent=103 // pred_check
          %p6420 = pneg %p429
        $region106: #{aggregation_forward.1} parent=103 // pred_check_branch
          %6422 = sbr.rel (%p6420) target = $region108
        $region107: #{aggregation_forward.1} parent=103 // pred_region
          %s6423 = sand.u32 %s414, 1
          %s6424 = scalar_lea.sflag [#allocation4], %s6423
          %s6425 = sand.u32 %s414, 1
          %s6426 = smul.addr %s6425, 16
          %s6427 = scalar_lea.vmem [#allocation7], %s6426
          %6428 = dma.done %s6424, 256
        $region108: #{aggregation_forward.1} parent=103 // pred_fallthru
          _
      $region104: #{aggregation_forward.1} parent=5 // pred_fallthru
        _
    $region6: #{aggregation_forward.1} parent=1 // loop_footer
      %s32 = sadd.s32 1, %s28
    $region7: #{aggregation_forward.1} parent=1 // loop_footer_branch
      %27 = sbr.rel target = $region3
    $region8: #{aggregation_forward.1} parent=1 // loop_exit
      _
    %6429 = vsyncpa [#allocation3], 1
    %s6430 = scalar_lea.sflag [#allocation3], 1
    %6431 = vsyncpa %s6430, 1
    %6432 = vsyncpa [#allocation6], 1
    %6433 = vsyncpa [#allocation4], 1
    %s6434 = scalar_lea.sflag [#allocation4], 1
    %6435 = vsyncpa %s6434, 1

</llo_original>
